<compile_context>
chip_gen: v6e
topology: v6e:2x2x1
jax: 0.10.0
libtpu: 0.0.40
codegen_flags: <defaults>
</compile_context>

<pallas_src>
import jax
import jax.numpy as jnp
from jax import lax
from jax.experimental import pallas as pl
from jax.experimental.pallas import tpu as pltpu

# ----- small synthetic sizes (stand-ins for 2048 / 768 / 1024 in the module) --
N_FRAMES = 8      # number of video frames (LSTM sequence length)
C_IN = 4          # frame channels
H_IMG = 16
W_IMG = 16
CNN_DIM = 64      # stand-in for ResNet50's 2048-d embedding
HIDDEN = 32       # stand-in for hidden_size=768
BERT_DIM = 32     # stand-in for BERT hidden 768
FEAT_DIM = HIDDEN + BERT_DIM      # == input_dim = 768*2 analogue
HEAD_HIDDEN = 128                 # stand-in for 1024
N_CLASSES = 21
B_Q = 2           # questions per task
SEQ = 8           # token sequence length
VOCAB = 100

PATCH_DIM = C_IN * 9              # 36 (im2col contraction width)
PATCH_PAD = 128                   # lane-padded contraction width
K_PAD = 128                       # lane-dense padded head output width
TASKS = ("descriptive", "explanatory", "predictive", "counterfactual")


# ----------------------------- Pallas kernels --------------------------------
def video_kernel(p_ref, gap_ref, cw_ref, cb_ref, h0_ref, c0_ref,
                 wih_ref, whh_ref, bl_ref, o_ref, pre_ref):
    """Fused CNN (conv+ReLU+GAP stand-in) + unbatched LSTM -> video_enc [1, H]."""
    # 3x3 SAME conv as one im2col matmul over every frame at once.
    y = jnp.dot(p_ref[...], cw_ref[...],
                preferred_element_type=jnp.float32) + cb_ref[...]     # [N*HW, OC]
    y = jnp.maximum(y, 0.0)                                           # ReLU
    # Per-frame global average pool as a segment-mean matmul: [N, N*HW]@[N*HW, OC].
    emb = jnp.dot(gap_ref[...], y, preferred_element_type=jnp.float32)  # [N, OC]

    # Hoisted LSTM input projection for all time steps (lane-dense [N, 4H]).
    pre_ref[...] = jnp.dot(emb.astype(wih_ref.dtype), wih_ref[...],
                           preferred_element_type=jnp.float32) + bl_ref[...]

    def step(t, carry):
        h, c = carry
        z = (jnp.dot(h, whh_ref[...], preferred_element_type=jnp.float32)
             + pre_ref[pl.ds(t, 1), :])                               # [1, 4H]
        # PyTorch LSTM packed gate order along the 4H axis: i, f, g, o.
        i_g = jax.nn.sigmoid(z[:, 0:HIDDEN])
        f_g = jax.nn.sigmoid(z[:, HIDDEN:2 * HIDDEN])
        g_g = jnp.tanh(z[:, 2 * HIDDEN:3 * HIDDEN])
        o_g = jax.nn.sigmoid(z[:, 3 * HIDDEN:4 * HIDDEN])
        c_new = f_g * c + i_g * g_g
        h_new = o_g * jnp.tanh(c_new)
        return h_new, c_new

    h_final, _ = lax.fori_loop(0, N_FRAMES, step,
                               (h0_ref[...], c0_ref[...]), unroll=True)
    o_ref[...] = h_final                                              # video_enc


def task_kernel(vid_ref, cls_ref, pw_ref, pb_ref,
                w1_ref, b1_ref, w2_ref, b2_ref, m_ref, o_ref):
    """Fused BERT pooler + task head for one task (grid axis = task)."""
    # BERT pooler: Linear + tanh on the [CLS] hidden state.
    pooled = jnp.tanh(
        jnp.dot(cls_ref[0], pw_ref[...], preferred_element_type=jnp.float32)
        + pb_ref[...])                                                # [Bq, D] f32

    w1 = w1_ref[0]                                                    # [FEAT_DIM, HH]
    # features = hstack([video_enc.repeat(Bq,1), pooled]); the concat is folded
    # into the first Linear by splitting w1 into its video / pooled row blocks.
    vid_pre = jnp.dot(vid_ref[...].astype(w1.dtype), w1[0:HIDDEN, :],
                      preferred_element_type=jnp.float32)             # [1, HH]
    h = (jnp.dot(pooled.astype(w1.dtype), w1[HIDDEN:, :],
                 preferred_element_type=jnp.float32)
         + vid_pre + b1_ref[0])
    h = jnp.maximum(h, 0.0)                       # ReLU (Dropout = identity in eval)
    y = jnp.dot(h.astype(w2_ref.dtype), w2_ref[0],
                preferred_element_type=jnp.float32) + b2_ref[0]       # [Bq, K_PAD]
    m = m_ref[0]                                  # 1.0 -> sigmoid head, 0.0 -> logits
    o_ref[0] = m * jax.nn.sigmoid(y) + (1.0 - m) * y


# ----------------------------- wrappers ---------------------------------------
def video_forward(frames, params):
    """frames [N, C, H, W] -> video_enc [1, HIDDEN] with a single pallas_call."""
    n, c, h, w = frames.shape
    hw = h * w
    # im2col -> [N*HW, C*9], zero-padded to a 128-lane contraction width.
    xp = jnp.pad(frames, ((0, 0), (0, 0), (1, 1), (1, 1)))
    cols = [xp[:, :, dh:dh + h, dw:dw + w] for dh in range(3) for dw in range(3)]
    patches = jnp.stack(cols, axis=2)                                  # [N, C, 9, H, W]
    patches = patches.transpose(0, 3, 4, 1, 2).reshape(n * hw, c * 9)
    patches = jnp.pad(patches, ((0, 0), (0, PATCH_PAD - c * 9))).astype(jnp.bfloat16)
    # Segment-mean matrix for the per-frame global average pool.
    gap_mat = jnp.repeat(jnp.eye(n, dtype=jnp.float32), hw, axis=1) / float(hw)

    return pl.pallas_call(
        video_kernel,
        out_shape=jax.ShapeDtypeStruct((1, HIDDEN), jnp.float32),
        grid=(1,),
        in_specs=[
            pl.BlockSpec((n * hw, PATCH_PAD), lambda i: (0, 0)),
            pl.BlockSpec((n, n * hw), lambda i: (0, 0)),
            pl.BlockSpec((PATCH_PAD, CNN_DIM), lambda i: (0, 0)),
            pl.BlockSpec((1, CNN_DIM), lambda i: (0, 0)),
            pl.BlockSpec((1, HIDDEN), lambda i: (0, 0)),
            pl.BlockSpec((1, HIDDEN), lambda i: (0, 0)),
            pl.BlockSpec((CNN_DIM, 4 * HIDDEN), lambda i: (0, 0)),
            pl.BlockSpec((HIDDEN, 4 * HIDDEN), lambda i: (0, 0)),
            pl.BlockSpec((1, 4 * HIDDEN), lambda i: (0, 0)),
        ],
        out_specs=pl.BlockSpec((1, HIDDEN), lambda i: (0, 0)),
        scratch_shapes=[pltpu.VMEM((N_FRAMES, 4 * HIDDEN), jnp.float32)],
        compiler_params=pltpu.CompilerParams(dimension_semantics=("arbitrary",)),
    )(patches, gap_mat, params["conv_w"], params["conv_b"],
      params["h0"], params["c0"],
      params["lstm_wih"], params["lstm_whh"], params["lstm_b"])


def tasks_forward(video_enc, cls_stacked, params):
    """All 4 tasks in one pallas_call; grid axis = task (parallel on v7x)."""
    n_tasks = cls_stacked.shape[0]
    return pl.pallas_call(
        task_kernel,
        out_shape=jax.ShapeDtypeStruct((n_tasks, B_Q, K_PAD), jnp.float32),
        grid=(n_tasks,),
        in_specs=[
            pl.BlockSpec((1, HIDDEN), lambda i: (0, 0)),
            pl.BlockSpec((1, B_Q, BERT_DIM), lambda i: (i, 0, 0)),
            pl.BlockSpec((BERT_DIM, BERT_DIM), lambda i: (0, 0)),
            pl.BlockSpec((1, BERT_DIM), lambda i: (0, 0)),
            pl.BlockSpec((1, FEAT_DIM, HEAD_HIDDEN), lambda i: (i, 0, 0)),
            pl.BlockSpec((1, 1, HEAD_HIDDEN), lambda i: (i, 0, 0)),
            pl.BlockSpec((1, HEAD_HIDDEN, K_PAD), lambda i: (i, 0, 0)),
            pl.BlockSpec((1, 1, K_PAD), lambda i: (i, 0, 0)),
            pl.BlockSpec((1, 1, K_PAD), lambda i: (i, 0, 0)),
        ],
        out_specs=pl.BlockSpec((1, B_Q, K_PAD), lambda i: (i, 0, 0)),
        compiler_params=pltpu.CompilerParams(dimension_semantics=("parallel",)),
    )(video_enc, cls_stacked, params["pool_w"], params["pool_b"],
      params["head_w1"], params["head_b1"], params["head_w2"], params["head_b2"],
      params["sig_mask"])


# ----------------------------- params / forward -------------------------------
def init_params(key):
    ks = jax.random.split(key, 16)

    def nrm(k, shape, scale=0.1):
        return (scale * jax.random.normal(k, shape)).astype(jnp.float32)

    conv_w = nrm(ks[0], (PATCH_DIM, CNN_DIM))
    conv_w = jnp.pad(conv_w, ((0, PATCH_PAD - PATCH_DIM), (0, 0)))   # zero rows for
    params = {                                                       # padded lanes
        "conv_w":   conv_w.astype(jnp.bfloat16),
        "conv_b":   nrm(ks[1], (1, CNN_DIM)),
        # Packed LSTM gates along the 4H axis in PyTorch order (i, f, g, o).
        "lstm_wih": nrm(ks[2], (CNN_DIM, 4 * HIDDEN)).astype(jnp.bfloat16),
        "lstm_whh": nrm(ks[3], (HIDDEN, 4 * HIDDEN)),   # recurrence kept in f32
        "lstm_b":   nrm(ks[4], (1, 4 * HIDDEN)),        # b_ih + b_hh folded together
        "h0":       nrm(ks[5], (1, HIDDEN)),            # nn.Parameter ~ N(0, 0.1)
        "c0":       nrm(ks[6], (1, HIDDEN)),
        "bert_emb": nrm(ks[7], (VOCAB, BERT_DIM)).astype(jnp.bfloat16),
        "pool_w":   nrm(ks[8], (BERT_DIM, BERT_DIM)).astype(jnp.bfloat16),
        "pool_b":   nrm(ks[9], (1, BERT_DIM)),
    }

    head_out = {"descriptive": N_CLASSES, "explanatory": 1,
                "predictive": 1, "counterfactual": 1}
    w1s, b1s, w2s, b2s, masks = [], [], [], [], []
    for i, task in enumerate(TASKS):
        kout = head_out[task]
        kk = jax.random.split(ks[10 + i], 4)
        w1s.append(nrm(kk[0], (FEAT_DIM, HEAD_HIDDEN)))
        b1s.append(nrm(kk[1], (1, HEAD_HIDDEN)))
        w2s.append(jnp.pad(nrm(kk[2], (HEAD_HIDDEN, kout)),
                           ((0, 0), (0, K_PAD - kout))))
        b2s.append(jnp.pad(nrm(kk[3], (1, kout)), ((0, 0), (0, K_PAD - kout))))
        masks.append(jnp.full((1, K_PAD),
                              0.0 if task == "descriptive" else 1.0, jnp.float32))
    params["head_w1"] = jnp.stack(w1s).astype(jnp.bfloat16)   # [4, FEAT_DIM, HH]
    params["head_b1"] = jnp.stack(b1s)                        # [4, 1, HH]
    params["head_w2"] = jnp.stack(w2s).astype(jnp.bfloat16)   # [4, HH, K_PAD]
    params["head_b2"] = jnp.stack(b2s)                        # [4, 1, K_PAD]
    params["sig_mask"] = jnp.stack(masks)                     # [4, 1, K_PAD]
    return params


def bert_cnn_forward(params, example):
    frames = example["frames"]                                 # [N, C, H, W]
    # TODO(synk): the pretrained ResNet50 backbone is not reproducible here; a
    # 3x3-conv + ReLU + global-average-pool stand-in (fused with the LSTM in a
    # single Pallas kernel) produces the per-frame embedding of width CNN_DIM.
    video_enc = video_forward(frames, params)                  # [1, HIDDEN]

    # TODO(synk): the pretrained BERT encoder stack is not reproduced; the
    # stand-in embeds each question's [CLS] token (gather stays in JAX) and the
    # BERT pooler (Linear + tanh) runs inside the fused per-task Pallas kernel.
    cls_stacked = jnp.stack([
        jnp.take(params["bert_emb"],
                 example["ques_dict"][t]["tokens"]["input_ids"][:, 0], axis=0)
        for t in TASKS])                                       # [4, Bq, BERT_DIM]

    out = tasks_forward(video_enc, cls_stacked, params)        # [4, Bq, K_PAD]

    preds = {}
    for i, task in enumerate(TASKS):
        if task == "descriptive":
            preds[task] = out[i, :, :N_CLASSES]                # [Bq, 21] logits
        else:
            preds[task] = out[i, :, 0]                         # sigmoid, .reshape(-1)
    return preds


if __name__ == "__main__":
    key = jax.random.PRNGKey(0)
    kp, kf, kt = jax.random.split(key, 3)
    params = init_params(kp)

    frames = jax.random.normal(kf, (N_FRAMES, C_IN, H_IMG, W_IMG), dtype=jnp.float32)
    tkeys = jax.random.split(kt, len(TASKS))
    ques_dict = {
        t: {"tokens": {"input_ids": jax.random.randint(tkeys[i], (B_Q, SEQ), 0, VOCAB)}}
        for i, t in enumerate(TASKS)
    }
    example = {"frames": frames, "ques_dict": ques_dict}

    preds = bert_cnn_forward(params, example)
    preds = jax.block_until_ready(preds)

    assert preds["descriptive"].shape == (B_Q, N_CLASSES)
    assert preds["explanatory"].shape == (B_Q,)
    assert preds["predictive"].shape == (B_Q,)
    assert preds["counterfactual"].shape == (B_Q,)
    assert bool(jnp.all(jnp.isfinite(preds["descriptive"])))
    assert bool(jnp.all((preds["predictive"] >= 0) & (preds["predictive"] <= 1)))
    assert bool(jnp.all((preds["explanatory"] >= 0) & (preds["explanatory"] <= 1)))
    assert bool(jnp.all((preds["counterfactual"] >= 0) & (preds["counterfactual"] <= 1)))
    print("KERNEL_OK")
</pallas_src>

<mosaic_0001>
module attributes {stable_mosaic.version = 11 : i64} {
  func.func @video_kernel(%arg0: i32, %arg1: memref<2048x128xbf16, #tpu.memory_space<vmem>>, %arg2: memref<8x2048xf32, #tpu.memory_space<vmem>>, %arg3: memref<128x64xbf16, #tpu.memory_space<vmem>>, %arg4: memref<1x64xf32, #tpu.memory_space<vmem>>, %arg5: memref<1x32xf32, #tpu.memory_space<vmem>>, %arg6: memref<1x32xf32, #tpu.memory_space<vmem>>, %arg7: memref<64x128xbf16, #tpu.memory_space<vmem>>, %arg8: memref<32x128xf32, #tpu.memory_space<vmem>>, %arg9: memref<1x128xf32, #tpu.memory_space<vmem>>, %arg10: memref<1x32xf32, #tpu.memory_space<vmem>>, %arg11: memref<8x128xf32, #tpu.memory_space<vmem>>) attributes {dimension_semantics = [#tpu.dimension_semantics<arbitrary>], iteration_bounds = array<i64: 1>, scalar_prefetch = 0 : i64, scratch_operands = 1 : i64, tpu.core_type = #tpu.core_type<tc>, window_params = [{pipeline_mode = #tpu.pipeline_mode<synchronous>, transform_indices = @transform_0, window_bounds = array<i64: 2048, 128>}, {pipeline_mode = #tpu.pipeline_mode<synchronous>, transform_indices = @transform_1, window_bounds = array<i64: 8, 2048>}, {pipeline_mode = #tpu.pipeline_mode<synchronous>, transform_indices = @transform_2, window_bounds = array<i64: 128, 64>}, {pipeline_mode = #tpu.pipeline_mode<synchronous>, transform_indices = @transform_3, window_bounds = array<i64: 1, 64>}, {pipeline_mode = #tpu.pipeline_mode<synchronous>, transform_indices = @transform_4, window_bounds = array<i64: 1, 32>}, {pipeline_mode = #tpu.pipeline_mode<synchronous>, transform_indices = @transform_5, window_bounds = array<i64: 1, 32>}, {pipeline_mode = #tpu.pipeline_mode<synchronous>, transform_indices = @transform_6, window_bounds = array<i64: 64, 128>}, {pipeline_mode = #tpu.pipeline_mode<synchronous>, transform_indices = @transform_7, window_bounds = array<i64: 32, 128>}, {pipeline_mode = #tpu.pipeline_mode<synchronous>, transform_indices = @transform_8, window_bounds = array<i64: 1, 128>}, {pipeline_mode = #tpu.pipeline_mode<synchronous>, transform_indices = @transform_9, window_bounds = array<i64: 1, 32>}]} {
    %c0 = arith.constant 0 : index
    %c0_0 = arith.constant 0 : index
    %0 = vector.load %arg1[%c0, %c0_0] : memref<2048x128xbf16, #tpu.memory_space<vmem>>, vector<2048x128xbf16>
    %c0_1 = arith.constant 0 : index
    %c0_2 = arith.constant 0 : index
    %1 = vector.load %arg3[%c0_1, %c0_2] : memref<128x64xbf16, #tpu.memory_space<vmem>>, vector<128x64xbf16>
    %cst = arith.constant dense<0.000000e+00> : vector<2048x64xf32>
    %2 = tpu.matmul %0, %1, %cst {dimension_numbers = #tpu.dot_dimension_numbers<[1], [0], [0], [1], [0, 0, 1, 1], [], []>} : vector<2048x128xbf16>, vector<128x64xbf16>, vector<2048x64xf32> -> vector<2048x64xf32>
    %c0_3 = arith.constant 0 : index
    %c0_4 = arith.constant 0 : index
    %3 = vector.load %arg4[%c0_3, %c0_4] : memref<1x64xf32, #tpu.memory_space<vmem>>, vector<1x64xf32>
    %4 = vector.broadcast %3 : vector<1x64xf32> to vector<2048x64xf32>
    %5 = arith.addf %2, %4 : vector<2048x64xf32>
    %cst_5 = arith.constant 0.000000e+00 : f32
    %6 = vector.broadcast %cst_5 : f32 to vector<2048x64xf32>
    %7 = arith.maximumf %5, %6 : vector<2048x64xf32>
    %c0_6 = arith.constant 0 : index
    %c0_7 = arith.constant 0 : index
    %8 = vector.load %arg2[%c0_6, %c0_7] : memref<8x2048xf32, #tpu.memory_space<vmem>>, vector<8x2048xf32>
    %cst_8 = arith.constant dense<0.000000e+00> : vector<8x64xf32>
    %9 = tpu.matmul %8, %7, %cst_8 {dimension_numbers = #tpu.dot_dimension_numbers<[1], [0], [0], [1], [0, 0, 1, 1], [], []>} : vector<8x2048xf32>, vector<2048x64xf32>, vector<8x64xf32> -> vector<8x64xf32>
    %10 = arith.truncf %9 : vector<8x64xf32> to vector<8x64xbf16>
    %c0_9 = arith.constant 0 : index
    %c0_10 = arith.constant 0 : index
    %11 = vector.load %arg7[%c0_9, %c0_10] : memref<64x128xbf16, #tpu.memory_space<vmem>>, vector<64x128xbf16>
    %cst_11 = arith.constant dense<0.000000e+00> : vector<8x128xf32>
    %12 = tpu.matmul %10, %11, %cst_11 {dimension_numbers = #tpu.dot_dimension_numbers<[1], [0], [0], [1], [0, 0, 1, 1], [], []>} : vector<8x64xbf16>, vector<64x128xbf16>, vector<8x128xf32> -> vector<8x128xf32>
    %c0_12 = arith.constant 0 : index
    %c0_13 = arith.constant 0 : index
    %13 = vector.load %arg9[%c0_12, %c0_13] : memref<1x128xf32, #tpu.memory_space<vmem>>, vector<1x128xf32>
    %14 = vector.broadcast %13 : vector<1x128xf32> to vector<8x128xf32>
    %15 = arith.addf %12, %14 : vector<8x128xf32>
    %c0_14 = arith.constant 0 : index
    %c0_15 = arith.constant 0 : index
    %16 = vector.load %arg11[%c0_14, %c0_15] : memref<8x128xf32, #tpu.memory_space<vmem>>, vector<8x128xf32>
    tpu.vector_store %arg11[%c0_14, %c0_15], %15 {strides = array<i32>} : memref<8x128xf32, #tpu.memory_space<vmem>>, vector<8x128xf32>,
    %c0_16 = arith.constant 0 : index
    %c0_17 = arith.constant 0 : index
    %17 = vector.load %arg5[%c0_16, %c0_17] : memref<1x32xf32, #tpu.memory_space<vmem>>, vector<1x32xf32>
    %c0_18 = arith.constant 0 : index
    %c0_19 = arith.constant 0 : index
    %18 = vector.load %arg6[%c0_18, %c0_19] : memref<1x32xf32, #tpu.memory_space<vmem>>, vector<1x32xf32>
    %c0_i32 = arith.constant 0 : i32
    %c0_20 = arith.constant 0 : index
    %c0_21 = arith.constant 0 : index
    %19 = vector.load %arg8[%c0_20, %c0_21] : memref<32x128xf32, #tpu.memory_space<vmem>>, vector<32x128xf32>
    %cst_22 = arith.constant dense<0.000000e+00> : vector<1x128xf32>
    %20 = tpu.matmul %17, %19, %cst_22 {dimension_numbers = #tpu.dot_dimension_numbers<[1], [0], [0], [1], [0, 0, 1, 1], [], []>} : vector<1x32xf32>, vector<32x128xf32>, vector<1x128xf32> -> vector<1x128xf32>
    %21 = arith.index_cast %c0_i32 : i32 to index
    %c0_23 = arith.constant 0 : index
    %22 = vector.load %arg11[%21, %c0_23] : memref<8x128xf32, #tpu.memory_space<vmem>>, vector<1x128xf32>
    %23 = arith.addf %20, %22 : vector<1x128xf32>
    %24 = vector.extract_strided_slice %23 {offsets = [0, 0], sizes = [1, 32], strides = [1, 1]} : vector<1x128xf32> to vector<1x32xf32>
    %25 = arith.negf %24 : vector<1x32xf32>
    %26 = math.exp %25 : vector<1x32xf32>
    %cst_24 = arith.constant 1.000000e+00 : f32
    %27 = vector.broadcast %cst_24 : f32 to vector<1x32xf32>
    %28 = arith.addf %27, %26 : vector<1x32xf32>
    %29 = arith.divf %27, %28 : vector<1x32xf32>
    %30 = vector.extract_strided_slice %23 {offsets = [0, 32], sizes = [1, 32], strides = [1, 1]} : vector<1x128xf32> to vector<1x32xf32>
    %31 = arith.negf %30 : vector<1x32xf32>
    %32 = math.exp %31 : vector<1x32xf32>
    %cst_25 = arith.constant 1.000000e+00 : f32
    %33 = vector.broadcast %cst_25 : f32 to vector<1x32xf32>
    %34 = arith.addf %33, %32 : vector<1x32xf32>
    %35 = arith.divf %33, %34 : vector<1x32xf32>
    %36 = vector.extract_strided_slice %23 {offsets = [0, 64], sizes = [1, 32], strides = [1, 1]} : vector<1x128xf32> to vector<1x32xf32>
    %37 = math.tanh %36 : vector<1x32xf32>
    %38 = vector.extract_strided_slice %23 {offsets = [0, 96], sizes = [1, 32], strides = [1, 1]} : vector<1x128xf32> to vector<1x32xf32>
    %39 = arith.negf %38 : vector<1x32xf32>
    %40 = math.exp %39 : vector<1x32xf32>
    %cst_26 = arith.constant 1.000000e+00 : f32
    %41 = vector.broadcast %cst_26 : f32 to vector<1x32xf32>
    %42 = arith.addf %41, %40 : vector<1x32xf32>
    %43 = arith.divf %41, %42 : vector<1x32xf32>
    %44 = arith.mulf %35, %18 : vector<1x32xf32>
    %45 = arith.mulf %29, %37 : vector<1x32xf32>
    %46 = arith.addf %44, %45 : vector<1x32xf32>
    %47 = math.tanh %46 : vector<1x32xf32>
    %48 = arith.mulf %43, %47 : vector<1x32xf32>
    %c1_i32 = arith.constant 1 : i32
    %c0_27 = arith.constant 0 : index
    %c0_28 = arith.constant 0 : index
    %49 = vector.load %arg8[%c0_27, %c0_28] : memref<32x128xf32, #tpu.memory_space<vmem>>, vector<32x128xf32>
    %cst_29 = arith.constant dense<0.000000e+00> : vector<1x128xf32>
    %50 = tpu.matmul %48, %49, %cst_29 {dimension_numbers = #tpu.dot_dimension_numbers<[1], [0], [0], [1], [0, 0, 1, 1], [], []>} : vector<1x32xf32>, vector<32x128xf32>, vector<1x128xf32> -> vector<1x128xf32>
    %51 = arith.index_cast %c1_i32 : i32 to index
    %c0_30 = arith.constant 0 : index
    %52 = vector.load %arg11[%51, %c0_30] : memref<8x128xf32, #tpu.memory_space<vmem>>, vector<1x128xf32>
    %53 = arith.addf %50, %52 : vector<1x128xf32>
    %54 = vector.extract_strided_slice %53 {offsets = [0, 0], sizes = [1, 32], strides = [1, 1]} : vector<1x128xf32> to vector<1x32xf32>
    %55 = arith.negf %54 : vector<1x32xf32>
    %56 = math.exp %55 : vector<1x32xf32>
    %cst_31 = arith.constant 1.000000e+00 : f32
    %57 = vector.broadcast %cst_31 : f32 to vector<1x32xf32>
    %58 = arith.addf %57, %56 : vector<1x32xf32>
    %59 = arith.divf %57, %58 : vector<1x32xf32>
    %60 = vector.extract_strided_slice %53 {offsets = [0, 32], sizes = [1, 32], strides = [1, 1]} : vector<1x128xf32> to vector<1x32xf32>
    %61 = arith.negf %60 : vector<1x32xf32>
    %62 = math.exp %61 : vector<1x32xf32>
    %cst_32 = arith.constant 1.000000e+00 : f32
    %63 = vector.broadcast %cst_32 : f32 to vector<1x32xf32>
    %64 = arith.addf %63, %62 : vector<1x32xf32>
    %65 = arith.divf %63, %64 : vector<1x32xf32>
    %66 = vector.extract_strided_slice %53 {offsets = [0, 64], sizes = [1, 32], strides = [1, 1]} : vector<1x128xf32> to vector<1x32xf32>
    %67 = math.tanh %66 : vector<1x32xf32>
    %68 = vector.extract_strided_slice %53 {offsets = [0, 96], sizes = [1, 32], strides = [1, 1]} : vector<1x128xf32> to vector<1x32xf32>
    %69 = arith.negf %68 : vector<1x32xf32>
    %70 = math.exp %69 : vector<1x32xf32>
    %cst_33 = arith.constant 1.000000e+00 : f32
    %71 = vector.broadcast %cst_33 : f32 to vector<1x32xf32>
    %72 = arith.addf %71, %70 : vector<1x32xf32>
    %73 = arith.divf %71, %72 : vector<1x32xf32>
    %74 = arith.mulf %65, %46 : vector<1x32xf32>
    %75 = arith.mulf %59, %67 : vector<1x32xf32>
    %76 = arith.addf %74, %75 : vector<1x32xf32>
    %77 = math.tanh %76 : vector<1x32xf32>
    %78 = arith.mulf %73, %77 : vector<1x32xf32>
    %c2_i32 = arith.constant 2 : i32
    %c0_34 = arith.constant 0 : index
    %c0_35 = arith.constant 0 : index
    %79 = vector.load %arg8[%c0_34, %c0_35] : memref<32x128xf32, #tpu.memory_space<vmem>>, vector<32x128xf32>
    %cst_36 = arith.constant dense<0.000000e+00> : vector<1x128xf32>
    %80 = tpu.matmul %78, %79, %cst_36 {dimension_numbers = #tpu.dot_dimension_numbers<[1], [0], [0], [1], [0, 0, 1, 1], [], []>} : vector<1x32xf32>, vector<32x128xf32>, vector<1x128xf32> -> vector<1x128xf32>
    %81 = arith.index_cast %c2_i32 : i32 to index
    %c0_37 = arith.constant 0 : index
    %82 = vector.load %arg11[%81, %c0_37] : memref<8x128xf32, #tpu.memory_space<vmem>>, vector<1x128xf32>
    %83 = arith.addf %80, %82 : vector<1x128xf32>
    %84 = vector.extract_strided_slice %83 {offsets = [0, 0], sizes = [1, 32], strides = [1, 1]} : vector<1x128xf32> to vector<1x32xf32>
    %85 = arith.negf %84 : vector<1x32xf32>
    %86 = math.exp %85 : vector<1x32xf32>
    %cst_38 = arith.constant 1.000000e+00 : f32
    %87 = vector.broadcast %cst_38 : f32 to vector<1x32xf32>
    %88 = arith.addf %87, %86 : vector<1x32xf32>
    %89 = arith.divf %87, %88 : vector<1x32xf32>
    %90 = vector.extract_strided_slice %83 {offsets = [0, 32], sizes = [1, 32], strides = [1, 1]} : vector<1x128xf32> to vector<1x32xf32>
    %91 = arith.negf %90 : vector<1x32xf32>
    %92 = math.exp %91 : vector<1x32xf32>
    %cst_39 = arith.constant 1.000000e+00 : f32
    %93 = vector.broadcast %cst_39 : f32 to vector<1x32xf32>
    %94 = arith.addf %93, %92 : vector<1x32xf32>
    %95 = arith.divf %93, %94 : vector<1x32xf32>
    %96 = vector.extract_strided_slice %83 {offsets = [0, 64], sizes = [1, 32], strides = [1, 1]} : vector<1x128xf32> to vector<1x32xf32>
    %97 = math.tanh %96 : vector<1x32xf32>
    %98 = vector.extract_strided_slice %83 {offsets = [0, 96], sizes = [1, 32], strides = [1, 1]} : vector<1x128xf32> to vector<1x32xf32>
    %99 = arith.negf %98 : vector<1x32xf32>
    %100 = math.exp %99 : vector<1x32xf32>
    %cst_40 = arith.constant 1.000000e+00 : f32
    %101 = vector.broadcast %cst_40 : f32 to vector<1x32xf32>
    %102 = arith.addf %101, %100 : vector<1x32xf32>
    %103 = arith.divf %101, %102 : vector<1x32xf32>
    %104 = arith.mulf %95, %76 : vector<1x32xf32>
    %105 = arith.mulf %89, %97 : vector<1x32xf32>
    %106 = arith.addf %104, %105 : vector<1x32xf32>
    %107 = math.tanh %106 : vector<1x32xf32>
    %108 = arith.mulf %103, %107 : vector<1x32xf32>
    %c3_i32 = arith.constant 3 : i32
    %c0_41 = arith.constant 0 : index
    %c0_42 = arith.constant 0 : index
    %109 = vector.load %arg8[%c0_41, %c0_42] : memref<32x128xf32, #tpu.memory_space<vmem>>, vector<32x128xf32>
    %cst_43 = arith.constant dense<0.000000e+00> : vector<1x128xf32>
    %110 = tpu.matmul %108, %109, %cst_43 {dimension_numbers = #tpu.dot_dimension_numbers<[1], [0], [0], [1], [0, 0, 1, 1], [], []>} : vector<1x32xf32>, vector<32x128xf32>, vector<1x128xf32> -> vector<1x128xf32>
    %111 = arith.index_cast %c3_i32 : i32 to index
    %c0_44 = arith.constant 0 : index
    %112 = vector.load %arg11[%111, %c0_44] : memref<8x128xf32, #tpu.memory_space<vmem>>, vector<1x128xf32>
    %113 = arith.addf %110, %112 : vector<1x128xf32>
    %114 = vector.extract_strided_slice %113 {offsets = [0, 0], sizes = [1, 32], strides = [1, 1]} : vector<1x128xf32> to vector<1x32xf32>
    %115 = arith.negf %114 : vector<1x32xf32>
    %116 = math.exp %115 : vector<1x32xf32>
    %cst_45 = arith.constant 1.000000e+00 : f32
    %117 = vector.broadcast %cst_45 : f32 to vector<1x32xf32>
    %118 = arith.addf %117, %116 : vector<1x32xf32>
    %119 = arith.divf %117, %118 : vector<1x32xf32>
    %120 = vector.extract_strided_slice %113 {offsets = [0, 32], sizes = [1, 32], strides = [1, 1]} : vector<1x128xf32> to vector<1x32xf32>
    %121 = arith.negf %120 : vector<1x32xf32>
    %122 = math.exp %121 : vector<1x32xf32>
    %cst_46 = arith.constant 1.000000e+00 : f32
    %123 = vector.broadcast %cst_46 : f32 to vector<1x32xf32>
    %124 = arith.addf %123, %122 : vector<1x32xf32>
    %125 = arith.divf %123, %124 : vector<1x32xf32>
    %126 = vector.extract_strided_slice %113 {offsets = [0, 64], sizes = [1, 32], strides = [1, 1]} : vector<1x128xf32> to vector<1x32xf32>
    %127 = math.tanh %126 : vector<1x32xf32>
    %128 = vector.extract_strided_slice %113 {offsets = [0, 96], sizes = [1, 32], strides = [1, 1]} : vector<1x128xf32> to vector<1x32xf32>
    %129 = arith.negf %128 : vector<1x32xf32>
    %130 = math.exp %129 : vector<1x32xf32>
    %cst_47 = arith.constant 1.000000e+00 : f32
    %131 = vector.broadcast %cst_47 : f32 to vector<1x32xf32>
    %132 = arith.addf %131, %130 : vector<1x32xf32>
    %133 = arith.divf %131, %132 : vector<1x32xf32>
    %134 = arith.mulf %125, %106 : vector<1x32xf32>
    %135 = arith.mulf %119, %127 : vector<1x32xf32>
    %136 = arith.addf %134, %135 : vector<1x32xf32>
    %137 = math.tanh %136 : vector<1x32xf32>
    %138 = arith.mulf %133, %137 : vector<1x32xf32>
    %c4_i32 = arith.constant 4 : i32
    %c0_48 = arith.constant 0 : index
    %c0_49 = arith.constant 0 : index
    %139 = vector.load %arg8[%c0_48, %c0_49] : memref<32x128xf32, #tpu.memory_space<vmem>>, vector<32x128xf32>
    %cst_50 = arith.constant dense<0.000000e+00> : vector<1x128xf32>
    %140 = tpu.matmul %138, %139, %cst_50 {dimension_numbers = #tpu.dot_dimension_numbers<[1], [0], [0], [1], [0, 0, 1, 1], [], []>} : vector<1x32xf32>, vector<32x128xf32>, vector<1x128xf32> -> vector<1x128xf32>
    %141 = arith.index_cast %c4_i32 : i32 to index
    %c0_51 = arith.constant 0 : index
    %142 = vector.load %arg11[%141, %c0_51] : memref<8x128xf32, #tpu.memory_space<vmem>>, vector<1x128xf32>
    %143 = arith.addf %140, %142 : vector<1x128xf32>
    %144 = vector.extract_strided_slice %143 {offsets = [0, 0], sizes = [1, 32], strides = [1, 1]} : vector<1x128xf32> to vector<1x32xf32>
    %145 = arith.negf %144 : vector<1x32xf32>
    %146 = math.exp %145 : vector<1x32xf32>
    %cst_52 = arith.constant 1.000000e+00 : f32
    %147 = vector.broadcast %cst_52 : f32 to vector<1x32xf32>
    %148 = arith.addf %147, %146 : vector<1x32xf32>
    %149 = arith.divf %147, %148 : vector<1x32xf32>
    %150 = vector.extract_strided_slice %143 {offsets = [0, 32], sizes = [1, 32], strides = [1, 1]} : vector<1x128xf32> to vector<1x32xf32>
    %151 = arith.negf %150 : vector<1x32xf32>
    %152 = math.exp %151 : vector<1x32xf32>
    %cst_53 = arith.constant 1.000000e+00 : f32
    %153 = vector.broadcast %cst_53 : f32 to vector<1x32xf32>
    %154 = arith.addf %153, %152 : vector<1x32xf32>
    %155 = arith.divf %153, %154 : vector<1x32xf32>
    %156 = vector.extract_strided_slice %143 {offsets = [0, 64], sizes = [1, 32], strides = [1, 1]} : vector<1x128xf32> to vector<1x32xf32>
    %157 = math.tanh %156 : vector<1x32xf32>
    %158 = vector.extract_strided_slice %143 {offsets = [0, 96], sizes = [1, 32], strides = [1, 1]} : vector<1x128xf32> to vector<1x32xf32>
    %159 = arith.negf %158 : vector<1x32xf32>
    %160 = math.exp %159 : vector<1x32xf32>
    %cst_54 = arith.constant 1.000000e+00 : f32
    %161 = vector.broadcast %cst_54 : f32 to vector<1x32xf32>
    %162 = arith.addf %161, %160 : vector<1x32xf32>
    %163 = arith.divf %161, %162 : vector<1x32xf32>
    %164 = arith.mulf %155, %136 : vector<1x32xf32>
    %165 = arith.mulf %149, %157 : vector<1x32xf32>
    %166 = arith.addf %164, %165 : vector<1x32xf32>
    %167 = math.tanh %166 : vector<1x32xf32>
    %168 = arith.mulf %163, %167 : vector<1x32xf32>
    %c5_i32 = arith.constant 5 : i32
    %c0_55 = arith.constant 0 : index
    %c0_56 = arith.constant 0 : index
    %169 = vector.load %arg8[%c0_55, %c0_56] : memref<32x128xf32, #tpu.memory_space<vmem>>, vector<32x128xf32>
    %cst_57 = arith.constant dense<0.000000e+00> : vector<1x128xf32>
    %170 = tpu.matmul %168, %169, %cst_57 {dimension_numbers = #tpu.dot_dimension_numbers<[1], [0], [0], [1], [0, 0, 1, 1], [], []>} : vector<1x32xf32>, vector<32x128xf32>, vector<1x128xf32> -> vector<1x128xf32>
    %171 = arith.index_cast %c5_i32 : i32 to index
    %c0_58 = arith.constant 0 : index
    %172 = vector.load %arg11[%171, %c0_58] : memref<8x128xf32, #tpu.memory_space<vmem>>, vector<1x128xf32>
    %173 = arith.addf %170, %172 : vector<1x128xf32>
    %174 = vector.extract_strided_slice %173 {offsets = [0, 0], sizes = [1, 32], strides = [1, 1]} : vector<1x128xf32> to vector<1x32xf32>
    %175 = arith.negf %174 : vector<1x32xf32>
    %176 = math.exp %175 : vector<1x32xf32>
    %cst_59 = arith.constant 1.000000e+00 : f32
    %177 = vector.broadcast %cst_59 : f32 to vector<1x32xf32>
    %178 = arith.addf %177, %176 : vector<1x32xf32>
    %179 = arith.divf %177, %178 : vector<1x32xf32>
    %180 = vector.extract_strided_slice %173 {offsets = [0, 32], sizes = [1, 32], strides = [1, 1]} : vector<1x128xf32> to vector<1x32xf32>
    %181 = arith.negf %180 : vector<1x32xf32>
    %182 = math.exp %181 : vector<1x32xf32>
    %cst_60 = arith.constant 1.000000e+00 : f32
    %183 = vector.broadcast %cst_60 : f32 to vector<1x32xf32>
    %184 = arith.addf %183, %182 : vector<1x32xf32>
    %185 = arith.divf %183, %184 : vector<1x32xf32>
    %186 = vector.extract_strided_slice %173 {offsets = [0, 64], sizes = [1, 32], strides = [1, 1]} : vector<1x128xf32> to vector<1x32xf32>
    %187 = math.tanh %186 : vector<1x32xf32>
    %188 = vector.extract_strided_slice %173 {offsets = [0, 96], sizes = [1, 32], strides = [1, 1]} : vector<1x128xf32> to vector<1x32xf32>
    %189 = arith.negf %188 : vector<1x32xf32>
    %190 = math.exp %189 : vector<1x32xf32>
    %cst_61 = arith.constant 1.000000e+00 : f32
    %191 = vector.broadcast %cst_61 : f32 to vector<1x32xf32>
    %192 = arith.addf %191, %190 : vector<1x32xf32>
    %193 = arith.divf %191, %192 : vector<1x32xf32>
    %194 = arith.mulf %185, %166 : vector<1x32xf32>
    %195 = arith.mulf %179, %187 : vector<1x32xf32>
    %196 = arith.addf %194, %195 : vector<1x32xf32>
    %197 = math.tanh %196 : vector<1x32xf32>
    %198 = arith.mulf %193, %197 : vector<1x32xf32>
    %c6_i32 = arith.constant 6 : i32
    %c0_62 = arith.constant 0 : index
    %c0_63 = arith.constant 0 : index
    %199 = vector.load %arg8[%c0_62, %c0_63] : memref<32x128xf32, #tpu.memory_space<vmem>>, vector<32x128xf32>
    %cst_64 = arith.constant dense<0.000000e+00> : vector<1x128xf32>
    %200 = tpu.matmul %198, %199, %cst_64 {dimension_numbers = #tpu.dot_dimension_numbers<[1], [0], [0], [1], [0, 0, 1, 1], [], []>} : vector<1x32xf32>, vector<32x128xf32>, vector<1x128xf32> -> vector<1x128xf32>
    %201 = arith.index_cast %c6_i32 : i32 to index
    %c0_65 = arith.constant 0 : index
    %202 = vector.load %arg11[%201, %c0_65] : memref<8x128xf32, #tpu.memory_space<vmem>>, vector<1x128xf32>
    %203 = arith.addf %200, %202 : vector<1x128xf32>
    %204 = vector.extract_strided_slice %203 {offsets = [0, 0], sizes = [1, 32], strides = [1, 1]} : vector<1x128xf32> to vector<1x32xf32>
    %205 = arith.negf %204 : vector<1x32xf32>
    %206 = math.exp %205 : vector<1x32xf32>
    %cst_66 = arith.constant 1.000000e+00 : f32
    %207 = vector.broadcast %cst_66 : f32 to vector<1x32xf32>
    %208 = arith.addf %207, %206 : vector<1x32xf32>
    %209 = arith.divf %207, %208 : vector<1x32xf32>
    %210 = vector.extract_strided_slice %203 {offsets = [0, 32], sizes = [1, 32], strides = [1, 1]} : vector<1x128xf32> to vector<1x32xf32>
    %211 = arith.negf %210 : vector<1x32xf32>
    %212 = math.exp %211 : vector<1x32xf32>
    %cst_67 = arith.constant 1.000000e+00 : f32
    %213 = vector.broadcast %cst_67 : f32 to vector<1x32xf32>
    %214 = arith.addf %213, %212 : vector<1x32xf32>
    %215 = arith.divf %213, %214 : vector<1x32xf32>
    %216 = vector.extract_strided_slice %203 {offsets = [0, 64], sizes = [1, 32], strides = [1, 1]} : vector<1x128xf32> to vector<1x32xf32>
    %217 = math.tanh %216 : vector<1x32xf32>
    %218 = vector.extract_strided_slice %203 {offsets = [0, 96], sizes = [1, 32], strides = [1, 1]} : vector<1x128xf32> to vector<1x32xf32>
    %219 = arith.negf %218 : vector<1x32xf32>
    %220 = math.exp %219 : vector<1x32xf32>
    %cst_68 = arith.constant 1.000000e+00 : f32
    %221 = vector.broadcast %cst_68 : f32 to vector<1x32xf32>
    %222 = arith.addf %221, %220 : vector<1x32xf32>
    %223 = arith.divf %221, %222 : vector<1x32xf32>
    %224 = arith.mulf %215, %196 : vector<1x32xf32>
    %225 = arith.mulf %209, %217 : vector<1x32xf32>
    %226 = arith.addf %224, %225 : vector<1x32xf32>
    %227 = math.tanh %226 : vector<1x32xf32>
    %228 = arith.mulf %223, %227 : vector<1x32xf32>
    %c7_i32 = arith.constant 7 : i32
    %c0_69 = arith.constant 0 : index
    %c0_70 = arith.constant 0 : index
    %229 = vector.load %arg8[%c0_69, %c0_70] : memref<32x128xf32, #tpu.memory_space<vmem>>, vector<32x128xf32>
    %cst_71 = arith.constant dense<0.000000e+00> : vector<1x128xf32>
    %230 = tpu.matmul %228, %229, %cst_71 {dimension_numbers = #tpu.dot_dimension_numbers<[1], [0], [0], [1], [0, 0, 1, 1], [], []>} : vector<1x32xf32>, vector<32x128xf32>, vector<1x128xf32> -> vector<1x128xf32>
    %231 = arith.index_cast %c7_i32 : i32 to index
    %c0_72 = arith.constant 0 : index
    %232 = vector.load %arg11[%231, %c0_72] : memref<8x128xf32, #tpu.memory_space<vmem>>, vector<1x128xf32>
    %233 = arith.addf %230, %232 : vector<1x128xf32>
    %234 = vector.extract_strided_slice %233 {offsets = [0, 0], sizes = [1, 32], strides = [1, 1]} : vector<1x128xf32> to vector<1x32xf32>
    %235 = arith.negf %234 : vector<1x32xf32>
    %236 = math.exp %235 : vector<1x32xf32>
    %cst_73 = arith.constant 1.000000e+00 : f32
    %237 = vector.broadcast %cst_73 : f32 to vector<1x32xf32>
    %238 = arith.addf %237, %236 : vector<1x32xf32>
    %239 = arith.divf %237, %238 : vector<1x32xf32>
    %240 = vector.extract_strided_slice %233 {offsets = [0, 32], sizes = [1, 32], strides = [1, 1]} : vector<1x128xf32> to vector<1x32xf32>
    %241 = arith.negf %240 : vector<1x32xf32>
    %242 = math.exp %241 : vector<1x32xf32>
    %cst_74 = arith.constant 1.000000e+00 : f32
    %243 = vector.broadcast %cst_74 : f32 to vector<1x32xf32>
    %244 = arith.addf %243, %242 : vector<1x32xf32>
    %245 = arith.divf %243, %244 : vector<1x32xf32>
    %246 = vector.extract_strided_slice %233 {offsets = [0, 64], sizes = [1, 32], strides = [1, 1]} : vector<1x128xf32> to vector<1x32xf32>
    %247 = math.tanh %246 : vector<1x32xf32>
    %248 = vector.extract_strided_slice %233 {offsets = [0, 96], sizes = [1, 32], strides = [1, 1]} : vector<1x128xf32> to vector<1x32xf32>
    %249 = arith.negf %248 : vector<1x32xf32>
    %250 = math.exp %249 : vector<1x32xf32>
    %cst_75 = arith.constant 1.000000e+00 : f32
    %251 = vector.broadcast %cst_75 : f32 to vector<1x32xf32>
    %252 = arith.addf %251, %250 : vector<1x32xf32>
    %253 = arith.divf %251, %252 : vector<1x32xf32>
    %254 = arith.mulf %245, %226 : vector<1x32xf32>
    %255 = arith.mulf %239, %247 : vector<1x32xf32>
    %256 = arith.addf %254, %255 : vector<1x32xf32>
    %257 = math.tanh %256 : vector<1x32xf32>
    %258 = arith.mulf %253, %257 : vector<1x32xf32>
    %c8_i32 = arith.constant 8 : i32
    %c0_76 = arith.constant 0 : index
    %c0_77 = arith.constant 0 : index
    %259 = vector.load %arg10[%c0_76, %c0_77] : memref<1x32xf32, #tpu.memory_space<vmem>>, vector<1x32xf32>
    tpu.vector_store %arg10[%c0_76, %c0_77], %258 {strides = array<i32>} : memref<1x32xf32, #tpu.memory_space<vmem>>, vector<1x32xf32>,
    return
  }
  func.func @transform_0(%arg0: i32) -> (i32, i32) {
    %c0_i32 = arith.constant 0 : i32
    %c0_i32_0 = arith.constant 0 : i32
    %c0_i32_1 = arith.constant 0 : i32
    return %c0_i32, %c0_i32_0 : i32, i32
  }
  func.func @transform_1(%arg0: i32) -> (i32, i32) {
    %c0_i32 = arith.constant 0 : i32
    %c0_i32_0 = arith.constant 0 : i32
    %c0_i32_1 = arith.constant 0 : i32
    return %c0_i32, %c0_i32_0 : i32, i32
  }
  func.func @transform_2(%arg0: i32) -> (i32, i32) {
    %c0_i32 = arith.constant 0 : i32
    %c0_i32_0 = arith.constant 0 : i32
    %c0_i32_1 = arith.constant 0 : i32
    return %c0_i32, %c0_i32_0 : i32, i32
  }
  func.func @transform_3(%arg0: i32) -> (i32, i32) {
    %c0_i32 = arith.constant 0 : i32
    %c0_i32_0 = arith.constant 0 : i32
    %c0_i32_1 = arith.constant 0 : i32
    return %c0_i32, %c0_i32_0 : i32, i32
  }
  func.func @transform_4(%arg0: i32) -> (i32, i32) {
    %c0_i32 = arith.constant 0 : i32
    %c0_i32_0 = arith.constant 0 : i32
    %c0_i32_1 = arith.constant 0 : i32
    return %c0_i32, %c0_i32_0 : i32, i32
  }
  func.func @transform_5(%arg0: i32) -> (i32, i32) {
    %c0_i32 = arith.constant 0 : i32
    %c0_i32_0 = arith.constant 0 : i32
    %c0_i32_1 = arith.constant 0 : i32
    return %c0_i32, %c0_i32_0 : i32, i32
  }
  func.func @transform_6(%arg0: i32) -> (i32, i32) {
    %c0_i32 = arith.constant 0 : i32
    %c0_i32_0 = arith.constant 0 : i32
    %c0_i32_1 = arith.constant 0 : i32
    return %c0_i32, %c0_i32_0 : i32, i32
  }
  func.func @transform_7(%arg0: i32) -> (i32, i32) {
    %c0_i32 = arith.constant 0 : i32
    %c0_i32_0 = arith.constant 0 : i32
    %c0_i32_1 = arith.constant 0 : i32
    return %c0_i32, %c0_i32_0 : i32, i32
  }
  func.func @transform_8(%arg0: i32) -> (i32, i32) {
    %c0_i32 = arith.constant 0 : i32
    %c0_i32_0 = arith.constant 0 : i32
    %c0_i32_1 = arith.constant 0 : i32
    return %c0_i32, %c0_i32_0 : i32, i32
  }
  func.func @transform_9(%arg0: i32) -> (i32, i32) {
    %c0_i32 = arith.constant 0 : i32
    %c0_i32_0 = arith.constant 0 : i32
    %c0_i32_1 = arith.constant 0 : i32
    return %c0_i32, %c0_i32_0 : i32, i32
  }
}

</mosaic_0001>

<llo_original>
// kernel: tpu_custom_call.1
$region0: #{tpu_custom_call.1}
  #allocation0 [shape = 'u32[]', space=smem, size = 0x4, offset = 0x4, fixed_abs, tag = 'smem constant byte address 0x4 - core index']
  #allocation1 [shape = 'u32[144,128]{1,0:T(1,128)}', space=vmem, size = 0x12000, scoped, tag = 'internal scratch']
  #allocation2 [shape = 'f32[8,128]{1,0:T(8,128)}', space=vmem, size = 0x1000, scoped, tag = 'scratch operand']
  %s0 = inlined_call_operand.hbm [shape: bf16[2048,128], index: 0, kind: input, shape index: {}]
  %s1 = inlined_call_operand.hbm [shape: f32[8,2048], index: 1, kind: input, shape index: {}]
  %s2 = inlined_call_operand.vmem [shape: bf16[128,64], index: 2, kind: input, shape index: {}]
  %s3 = inlined_call_operand.vmem [shape: f32[1,64], index: 3, kind: input, shape index: {}]
  %s4 = inlined_call_operand.vmem [shape: f32[1,32], index: 4, kind: input, shape index: {}]
  %s5 = inlined_call_operand.vmem [shape: f32[1,32], index: 5, kind: input, shape index: {}]
  %s6 = inlined_call_operand.vmem [shape: bf16[64,128], index: 6, kind: input, shape index: {}]
  %s7 = inlined_call_operand.vmem [shape: f32[32,128], index: 7, kind: input, shape index: {}]
  %s8 = inlined_call_operand.vmem [shape: f32[1,128], index: 8, kind: input, shape index: {}]
  %s9 = inlined_call_operand.hbm [shape: f32[1,32], index: 9, kind: output, shape index: {}]
  %s10 = sld [smem:[#allocation0]]
  $region54: #{tpu_custom_call.1} parent=0
    _
  %s12 = ssub.s32 1, %s10
  %s13 = scalar_select 0, %s12, %s10
  $region1: #{tpu_custom_call.1} parent=0
    #allocation3 [shape = 'u8[524288]{0}', space=vmem, size = 0x80000, scoped, tag = 'input window, operand 0, single buffered']
    #allocation4 [shape = 's32[1]{0}', space=sflag, size = 0x4, scoped, tag = 'scoped memory for tpu_custom_call.1']
    #allocation5 [shape = 's32[1]{0}', space=sflag, size = 0x4, scoped, tag = 'scoped memory for tpu_custom_call.1']
    #allocation6 [shape = 'u8[65536]{0}', space=vmem, size = 0x10000, scoped, tag = 'input window, operand 1, single buffered']
    #allocation7 [shape = 's32[1]{0}', space=sflag, size = 0x4, scoped, tag = 'scoped memory for tpu_custom_call.1']
    #allocation8 [shape = 'u8[512]{0}', space=vmem, size = 0x400, scoped, tag = 'output window, operand 0, single buffered']
    %14 = vsyncpa [#allocation4], 0
    %15 = vsyncpa [#allocation7], 0
    %16 = vsyncpa [#allocation5], 0
    // Predicated region
    $region2: #{tpu_custom_call.1} parent=1 // pred_check
      _
    $region3: #{tpu_custom_call.1} parent=1 // pred_check_branch
      %18 = sbr.rel (0) target = $region5
    $region4: #{tpu_custom_call.1} parent=1 // pred_region
      %s20 = ssub.s32 16384, 16384
      %21 = vsyncadd [#allocation4], %s20
      %s22 = sshll.u32 [#allocation3], 4
      %s23 = int_to_ptr.vmem [resolvable:$true] %s22
      %28 = dma.hbm_to_vmem [thread:$0]  %s0, 16384, %s23, [#allocation4], 64, 64, 4
    $region5: #{tpu_custom_call.1} parent=1 // pred_fallthru
      _
    // Predicated region
    $region6: #{tpu_custom_call.1} parent=1 // pred_check
      _
    $region7: #{tpu_custom_call.1} parent=1 // pred_check_branch
      %30 = sbr.rel (0) target = $region9
    $region8: #{tpu_custom_call.1} parent=1 // pred_region
      %s32 = ssub.s32 2048, 2048
      %33 = vsyncadd [#allocation7], %s32
      %s35 = sshll.u32 [#allocation6], 4
      %s36 = int_to_ptr.vmem [resolvable:$true] %s35
      %38 = dma.hbm_to_vmem [thread:$0]  %s1, 2048, %s36, [#allocation7]
    $region9: #{tpu_custom_call.1} parent=1 // pred_fallthru
      _
    // Predicated region
    $region10: #{tpu_custom_call.1} parent=1 // pred_check
      _
    $region11: #{tpu_custom_call.1} parent=1 // pred_check_branch
      %40 = sbr.rel (0) target = $region13
    $region12: #{tpu_custom_call.1} parent=1 // pred_region
      _
    $region13: #{tpu_custom_call.1} parent=1 // pred_fallthru
      _
    // Predicated region
    $region14: #{tpu_custom_call.1} parent=1 // pred_check
      _
    $region15: #{tpu_custom_call.1} parent=1 // pred_check_branch
      %42 = sbr.rel (0) target = $region17
    $region16: #{tpu_custom_call.1} parent=1 // pred_region
      _
    $region17: #{tpu_custom_call.1} parent=1 // pred_fallthru
      _
    // Predicated region
    $region18: #{tpu_custom_call.1} parent=1 // pred_check
      _
    $region19: #{tpu_custom_call.1} parent=1 // pred_check_branch
      %44 = sbr.rel (0) target = $region21
    $region20: #{tpu_custom_call.1} parent=1 // pred_region
      _
    $region21: #{tpu_custom_call.1} parent=1 // pred_fallthru
      _
    // Predicated region
    $region22: #{tpu_custom_call.1} parent=1 // pred_check
      _
    $region23: #{tpu_custom_call.1} parent=1 // pred_check_branch
      %46 = sbr.rel (0) target = $region25
    $region24: #{tpu_custom_call.1} parent=1 // pred_region
      _
    $region25: #{tpu_custom_call.1} parent=1 // pred_fallthru
      _
    // Predicated region
    $region26: #{tpu_custom_call.1} parent=1 // pred_check
      _
    $region27: #{tpu_custom_call.1} parent=1 // pred_check_branch
      %48 = sbr.rel (0) target = $region29
    $region28: #{tpu_custom_call.1} parent=1 // pred_region
      _
    $region29: #{tpu_custom_call.1} parent=1 // pred_fallthru
      _
    // Predicated region
    $region30: #{tpu_custom_call.1} parent=1 // pred_check
      _
    $region31: #{tpu_custom_call.1} parent=1 // pred_check_branch
      %50 = sbr.rel (0) target = $region33
    $region32: #{tpu_custom_call.1} parent=1 // pred_region
      _
    $region33: #{tpu_custom_call.1} parent=1 // pred_fallthru
      _
    // Predicated region
    $region34: #{tpu_custom_call.1} parent=1 // pred_check
      _
    $region35: #{tpu_custom_call.1} parent=1 // pred_check_branch
      %52 = sbr.rel (0) target = $region37
    $region36: #{tpu_custom_call.1} parent=1 // pred_region
      _
    $region37: #{tpu_custom_call.1} parent=1 // pred_fallthru
      _
    // Predicated region
    $region38: #{tpu_custom_call.1} parent=1 // pred_check
      _
    $region39: #{tpu_custom_call.1} parent=1 // pred_check_branch
      %54 = sbr.rel (0) target = $region41
    $region40: #{tpu_custom_call.1} parent=1 // pred_region
      %55 = dma.done [#allocation4], 16384
    $region41: #{tpu_custom_call.1} parent=1 // pred_fallthru
      _
    // Predicated region
    $region42: #{tpu_custom_call.1} parent=1 // pred_check
      _
    $region43: #{tpu_custom_call.1} parent=1 // pred_check_branch
      %57 = sbr.rel (0) target = $region45
    $region44: #{tpu_custom_call.1} parent=1 // pred_region
      %58 = dma.done [#allocation7], 2048
    $region45: #{tpu_custom_call.1} parent=1 // pred_fallthru
      _
    %v60 = vld [vmem:[#allocation3] sm:$0xf]
    %v61 = vld [vmem:[#allocation3 + $0x4] sm:$0xf]
    %v62 = vld [vmem:[#allocation3 + $0x8] sm:$0xf]
    %v63 = vld [vmem:[#allocation3 + $0xc] sm:$0xf]
    %v64 = vld [vmem:[#allocation3 + $0x10] sm:$0xf]
    %v65 = vld [vmem:[#allocation3 + $0x14] sm:$0xf]
    %v66 = vld [vmem:[#allocation3 + $0x18] sm:$0xf]
    %v67 = vld [vmem:[#allocation3 + $0x1c] sm:$0xf]
    %v68 = vld [vmem:[#allocation3 + $0x20] sm:$0xf]
    %v69 = vld [vmem:[#allocation3 + $0x24] sm:$0xf]
    %v70 = vld [vmem:[#allocation3 + $0x28] sm:$0xf]
    %v71 = vld [vmem:[#allocation3 + $0x2c] sm:$0xf]
    %v72 = vld [vmem:[#allocation3 + $0x30] sm:$0xf]
    %v73 = vld [vmem:[#allocation3 + $0x34] sm:$0xf]
    %v74 = vld [vmem:[#allocation3 + $0x38] sm:$0xf]
    %v75 = vld [vmem:[#allocation3 + $0x3c] sm:$0xf]
    %v76 = vld [vmem:[#allocation3 + $0x40] sm:$0xf]
    %v77 = vld [vmem:[#allocation3 + $0x44] sm:$0xf]
    %v78 = vld [vmem:[#allocation3 + $0x48] sm:$0xf]
    %v79 = vld [vmem:[#allocation3 + $0x4c] sm:$0xf]
    %v80 = vld [vmem:[#allocation3 + $0x50] sm:$0xf]
    %v81 = vld [vmem:[#allocation3 + $0x54] sm:$0xf]
    %v82 = vld [vmem:[#allocation3 + $0x58] sm:$0xf]
    %v83 = vld [vmem:[#allocation3 + $0x5c] sm:$0xf]
    %v84 = vld [vmem:[#allocation3 + $0x60] sm:$0xf]
    %v85 = vld [vmem:[#allocation3 + $0x64] sm:$0xf]
    %v86 = vld [vmem:[#allocation3 + $0x68] sm:$0xf]
    %v87 = vld [vmem:[#allocation3 + $0x6c] sm:$0xf]
    %v88 = vld [vmem:[#allocation3 + $0x70] sm:$0xf]
    %v89 = vld [vmem:[#allocation3 + $0x74] sm:$0xf]
    %v90 = vld [vmem:[#allocation3 + $0x78] sm:$0xf]
    %v91 = vld [vmem:[#allocation3 + $0x7c] sm:$0xf]
    %v92 = vld [vmem:[#allocation3 + $0x80] sm:$0xf]
    %v93 = vld [vmem:[#allocation3 + $0x84] sm:$0xf]
    %v94 = vld [vmem:[#allocation3 + $0x88] sm:$0xf]
    %v95 = vld [vmem:[#allocation3 + $0x8c] sm:$0xf]
    %v96 = vld [vmem:[#allocation3 + $0x90] sm:$0xf]
    %v97 = vld [vmem:[#allocation3 + $0x94] sm:$0xf]
    %v98 = vld [vmem:[#allocation3 + $0x98] sm:$0xf]
    %v99 = vld [vmem:[#allocation3 + $0x9c] sm:$0xf]
    %v100 = vld [vmem:[#allocation3 + $0xa0] sm:$0xf]
    %v101 = vld [vmem:[#allocation3 + $0xa4] sm:$0xf]
    %v102 = vld [vmem:[#allocation3 + $0xa8] sm:$0xf]
    %v103 = vld [vmem:[#allocation3 + $0xac] sm:$0xf]
    %v104 = vld [vmem:[#allocation3 + $0xb0] sm:$0xf]
    %v105 = vld [vmem:[#allocation3 + $0xb4] sm:$0xf]
    %v106 = vld [vmem:[#allocation3 + $0xb8] sm:$0xf]
    %v107 = vld [vmem:[#allocation3 + $0xbc] sm:$0xf]
    %v108 = vld [vmem:[#allocation3 + $0xc0] sm:$0xf]
    %v109 = vld [vmem:[#allocation3 + $0xc4] sm:$0xf]
    %v110 = vld [vmem:[#allocation3 + $0xc8] sm:$0xf]
    %v111 = vld [vmem:[#allocation3 + $0xcc] sm:$0xf]
    %v112 = vld [vmem:[#allocation3 + $0xd0] sm:$0xf]
    %v113 = vld [vmem:[#allocation3 + $0xd4] sm:$0xf]
    %v114 = vld [vmem:[#allocation3 + $0xd8] sm:$0xf]
    %v115 = vld [vmem:[#allocation3 + $0xdc] sm:$0xf]
    %v116 = vld [vmem:[#allocation3 + $0xe0] sm:$0xf]
    %v117 = vld [vmem:[#allocation3 + $0xe4] sm:$0xf]
    %v118 = vld [vmem:[#allocation3 + $0xe8] sm:$0xf]
    %v119 = vld [vmem:[#allocation3 + $0xec] sm:$0xf]
    %v120 = vld [vmem:[#allocation3 + $0xf0] sm:$0xf]
    %v121 = vld [vmem:[#allocation3 + $0xf4] sm:$0xf]
    %v122 = vld [vmem:[#allocation3 + $0xf8] sm:$0xf]
    %v123 = vld [vmem:[#allocation3 + $0xfc] sm:$0xf]
    %v124 = vld [vmem:[#allocation3 + $0x100] sm:$0xf]
    %v125 = vld [vmem:[#allocation3 + $0x104] sm:$0xf]
    %v126 = vld [vmem:[#allocation3 + $0x108] sm:$0xf]
    %v127 = vld [vmem:[#allocation3 + $0x10c] sm:$0xf]
    %v128 = vld [vmem:[#allocation3 + $0x110] sm:$0xf]
    %v129 = vld [vmem:[#allocation3 + $0x114] sm:$0xf]
    %v130 = vld [vmem:[#allocation3 + $0x118] sm:$0xf]
    %v131 = vld [vmem:[#allocation3 + $0x11c] sm:$0xf]
    %v132 = vld [vmem:[#allocation3 + $0x120] sm:$0xf]
    %v133 = vld [vmem:[#allocation3 + $0x124] sm:$0xf]
    %v134 = vld [vmem:[#allocation3 + $0x128] sm:$0xf]
    %v135 = vld [vmem:[#allocation3 + $0x12c] sm:$0xf]
    %v136 = vld [vmem:[#allocation3 + $0x130] sm:$0xf]
    %v137 = vld [vmem:[#allocation3 + $0x134] sm:$0xf]
    %v138 = vld [vmem:[#allocation3 + $0x138] sm:$0xf]
    %v139 = vld [vmem:[#allocation3 + $0x13c] sm:$0xf]
    %v140 = vld [vmem:[#allocation3 + $0x140] sm:$0xf]
    %v141 = vld [vmem:[#allocation3 + $0x144] sm:$0xf]
    %v142 = vld [vmem:[#allocation3 + $0x148] sm:$0xf]
    %v143 = vld [vmem:[#allocation3 + $0x14c] sm:$0xf]
    %v144 = vld [vmem:[#allocation3 + $0x150] sm:$0xf]
    %v145 = vld [vmem:[#allocation3 + $0x154] sm:$0xf]
    %v146 = vld [vmem:[#allocation3 + $0x158] sm:$0xf]
    %v147 = vld [vmem:[#allocation3 + $0x15c] sm:$0xf]
    %v148 = vld [vmem:[#allocation3 + $0x160] sm:$0xf]
    %v149 = vld [vmem:[#allocation3 + $0x164] sm:$0xf]
    %v150 = vld [vmem:[#allocation3 + $0x168] sm:$0xf]
    %v151 = vld [vmem:[#allocation3 + $0x16c] sm:$0xf]
    %v152 = vld [vmem:[#allocation3 + $0x170] sm:$0xf]
    %v153 = vld [vmem:[#allocation3 + $0x174] sm:$0xf]
    %v154 = vld [vmem:[#allocation3 + $0x178] sm:$0xf]
    %v155 = vld [vmem:[#allocation3 + $0x17c] sm:$0xf]
    %v156 = vld [vmem:[#allocation3 + $0x180] sm:$0xf]
    %v157 = vld [vmem:[#allocation3 + $0x184] sm:$0xf]
    %v158 = vld [vmem:[#allocation3 + $0x188] sm:$0xf]
    %v159 = vld [vmem:[#allocation3 + $0x18c] sm:$0xf]
    %v160 = vld [vmem:[#allocation3 + $0x190] sm:$0xf]
    %v161 = vld [vmem:[#allocation3 + $0x194] sm:$0xf]
    %v162 = vld [vmem:[#allocation3 + $0x198] sm:$0xf]
    %v163 = vld [vmem:[#allocation3 + $0x19c] sm:$0xf]
    %v164 = vld [vmem:[#allocation3 + $0x1a0] sm:$0xf]
    %v165 = vld [vmem:[#allocation3 + $0x1a4] sm:$0xf]
    %v166 = vld [vmem:[#allocation3 + $0x1a8] sm:$0xf]
    %v167 = vld [vmem:[#allocation3 + $0x1ac] sm:$0xf]
    %v168 = vld [vmem:[#allocation3 + $0x1b0] sm:$0xf]
    %v169 = vld [vmem:[#allocation3 + $0x1b4] sm:$0xf]
    %v170 = vld [vmem:[#allocation3 + $0x1b8] sm:$0xf]
    %v171 = vld [vmem:[#allocation3 + $0x1bc] sm:$0xf]
    %v172 = vld [vmem:[#allocation3 + $0x1c0] sm:$0xf]
    %v173 = vld [vmem:[#allocation3 + $0x1c4] sm:$0xf]
    %v174 = vld [vmem:[#allocation3 + $0x1c8] sm:$0xf]
    %v175 = vld [vmem:[#allocation3 + $0x1cc] sm:$0xf]
    %v176 = vld [vmem:[#allocation3 + $0x1d0] sm:$0xf]
    %v177 = vld [vmem:[#allocation3 + $0x1d4] sm:$0xf]
    %v178 = vld [vmem:[#allocation3 + $0x1d8] sm:$0xf]
    %v179 = vld [vmem:[#allocation3 + $0x1dc] sm:$0xf]
    %v180 = vld [vmem:[#allocation3 + $0x1e0] sm:$0xf]
    %v181 = vld [vmem:[#allocation3 + $0x1e4] sm:$0xf]
    %v182 = vld [vmem:[#allocation3 + $0x1e8] sm:$0xf]
    %v183 = vld [vmem:[#allocation3 + $0x1ec] sm:$0xf]
    %v184 = vld [vmem:[#allocation3 + $0x1f0] sm:$0xf]
    %v185 = vld [vmem:[#allocation3 + $0x1f4] sm:$0xf]
    %v186 = vld [vmem:[#allocation3 + $0x1f8] sm:$0xf]
    %v187 = vld [vmem:[#allocation3 + $0x1fc] sm:$0xf]
    %v188 = vld [vmem:[#allocation3 + $0x200] sm:$0xf]
    %v189 = vld [vmem:[#allocation3 + $0x204] sm:$0xf]
    %v190 = vld [vmem:[#allocation3 + $0x208] sm:$0xf]
    %v191 = vld [vmem:[#allocation3 + $0x20c] sm:$0xf]
    %v192 = vld [vmem:[#allocation3 + $0x210] sm:$0xf]
    %v193 = vld [vmem:[#allocation3 + $0x214] sm:$0xf]
    %v194 = vld [vmem:[#allocation3 + $0x218] sm:$0xf]
    %v195 = vld [vmem:[#allocation3 + $0x21c] sm:$0xf]
    %v196 = vld [vmem:[#allocation3 + $0x220] sm:$0xf]
    %v197 = vld [vmem:[#allocation3 + $0x224] sm:$0xf]
    %v198 = vld [vmem:[#allocation3 + $0x228] sm:$0xf]
    %v199 = vld [vmem:[#allocation3 + $0x22c] sm:$0xf]
    %v200 = vld [vmem:[#allocation3 + $0x230] sm:$0xf]
    %v201 = vld [vmem:[#allocation3 + $0x234] sm:$0xf]
    %v202 = vld [vmem:[#allocation3 + $0x238] sm:$0xf]
    %v203 = vld [vmem:[#allocation3 + $0x23c] sm:$0xf]
    %v204 = vld [vmem:[#allocation3 + $0x240] sm:$0xf]
    %v205 = vld [vmem:[#allocation3 + $0x244] sm:$0xf]
    %v206 = vld [vmem:[#allocation3 + $0x248] sm:$0xf]
    %v207 = vld [vmem:[#allocation3 + $0x24c] sm:$0xf]
    %v208 = vld [vmem:[#allocation3 + $0x250] sm:$0xf]
    %v209 = vld [vmem:[#allocation3 + $0x254] sm:$0xf]
    %v210 = vld [vmem:[#allocation3 + $0x258] sm:$0xf]
    %v211 = vld [vmem:[#allocation3 + $0x25c] sm:$0xf]
    %v212 = vld [vmem:[#allocation3 + $0x260] sm:$0xf]
    %v213 = vld [vmem:[#allocation3 + $0x264] sm:$0xf]
    %v214 = vld [vmem:[#allocation3 + $0x268] sm:$0xf]
    %v215 = vld [vmem:[#allocation3 + $0x26c] sm:$0xf]
    %v216 = vld [vmem:[#allocation3 + $0x270] sm:$0xf]
    %v217 = vld [vmem:[#allocation3 + $0x274] sm:$0xf]
    %v218 = vld [vmem:[#allocation3 + $0x278] sm:$0xf]
    %v219 = vld [vmem:[#allocation3 + $0x27c] sm:$0xf]
    %v220 = vld [vmem:[#allocation3 + $0x280] sm:$0xf]
    %v221 = vld [vmem:[#allocation3 + $0x284] sm:$0xf]
    %v222 = vld [vmem:[#allocation3 + $0x288] sm:$0xf]
    %v223 = vld [vmem:[#allocation3 + $0x28c] sm:$0xf]
    %v224 = vld [vmem:[#allocation3 + $0x290] sm:$0xf]
    %v225 = vld [vmem:[#allocation3 + $0x294] sm:$0xf]
    %v226 = vld [vmem:[#allocation3 + $0x298] sm:$0xf]
    %v227 = vld [vmem:[#allocation3 + $0x29c] sm:$0xf]
    %v228 = vld [vmem:[#allocation3 + $0x2a0] sm:$0xf]
    %v229 = vld [vmem:[#allocation3 + $0x2a4] sm:$0xf]
    %v230 = vld [vmem:[#allocation3 + $0x2a8] sm:$0xf]
    %v231 = vld [vmem:[#allocation3 + $0x2ac] sm:$0xf]
    %v232 = vld [vmem:[#allocation3 + $0x2b0] sm:$0xf]
    %v233 = vld [vmem:[#allocation3 + $0x2b4] sm:$0xf]
    %v234 = vld [vmem:[#allocation3 + $0x2b8] sm:$0xf]
    %v235 = vld [vmem:[#allocation3 + $0x2bc] sm:$0xf]
    %v236 = vld [vmem:[#allocation3 + $0x2c0] sm:$0xf]
    %v237 = vld [vmem:[#allocation3 + $0x2c4] sm:$0xf]
    %v238 = vld [vmem:[#allocation3 + $0x2c8] sm:$0xf]
    %v239 = vld [vmem:[#allocation3 + $0x2cc] sm:$0xf]
    %v240 = vld [vmem:[#allocation3 + $0x2d0] sm:$0xf]
    %v241 = vld [vmem:[#allocation3 + $0x2d4] sm:$0xf]
    %v242 = vld [vmem:[#allocation3 + $0x2d8] sm:$0xf]
    %v243 = vld [vmem:[#allocation3 + $0x2dc] sm:$0xf]
    %v244 = vld [vmem:[#allocation3 + $0x2e0] sm:$0xf]
    %v245 = vld [vmem:[#allocation3 + $0x2e4] sm:$0xf]
    %v246 = vld [vmem:[#allocation3 + $0x2e8] sm:$0xf]
    %v247 = vld [vmem:[#allocation3 + $0x2ec] sm:$0xf]
    %v248 = vld [vmem:[#allocation3 + $0x2f0] sm:$0xf]
    %v249 = vld [vmem:[#allocation3 + $0x2f4] sm:$0xf]
    %v250 = vld [vmem:[#allocation3 + $0x2f8] sm:$0xf]
    %v251 = vld [vmem:[#allocation3 + $0x2fc] sm:$0xf]
    %v252 = vld [vmem:[#allocation3 + $0x300] sm:$0xf]
    %v253 = vld [vmem:[#allocation3 + $0x304] sm:$0xf]
    %v254 = vld [vmem:[#allocation3 + $0x308] sm:$0xf]
    %v255 = vld [vmem:[#allocation3 + $0x30c] sm:$0xf]
    %v256 = vld [vmem:[#allocation3 + $0x310] sm:$0xf]
    %v257 = vld [vmem:[#allocation3 + $0x314] sm:$0xf]
    %v258 = vld [vmem:[#allocation3 + $0x318] sm:$0xf]
    %v259 = vld [vmem:[#allocation3 + $0x31c] sm:$0xf]
    %v260 = vld [vmem:[#allocation3 + $0x320] sm:$0xf]
    %v261 = vld [vmem:[#allocation3 + $0x324] sm:$0xf]
    %v262 = vld [vmem:[#allocation3 + $0x328] sm:$0xf]
    %v263 = vld [vmem:[#allocation3 + $0x32c] sm:$0xf]
    %v264 = vld [vmem:[#allocation3 + $0x330] sm:$0xf]
    %v265 = vld [vmem:[#allocation3 + $0x334] sm:$0xf]
    %v266 = vld [vmem:[#allocation3 + $0x338] sm:$0xf]
    %v267 = vld [vmem:[#allocation3 + $0x33c] sm:$0xf]
    %v268 = vld [vmem:[#allocation3 + $0x340] sm:$0xf]
    %v269 = vld [vmem:[#allocation3 + $0x344] sm:$0xf]
    %v270 = vld [vmem:[#allocation3 + $0x348] sm:$0xf]
    %v271 = vld [vmem:[#allocation3 + $0x34c] sm:$0xf]
    %v272 = vld [vmem:[#allocation3 + $0x350] sm:$0xf]
    %v273 = vld [vmem:[#allocation3 + $0x354] sm:$0xf]
    %v274 = vld [vmem:[#allocation3 + $0x358] sm:$0xf]
    %v275 = vld [vmem:[#allocation3 + $0x35c] sm:$0xf]
    %v276 = vld [vmem:[#allocation3 + $0x360] sm:$0xf]
    %v277 = vld [vmem:[#allocation3 + $0x364] sm:$0xf]
    %v278 = vld [vmem:[#allocation3 + $0x368] sm:$0xf]
    %v279 = vld [vmem:[#allocation3 + $0x36c] sm:$0xf]
    %v280 = vld [vmem:[#allocation3 + $0x370] sm:$0xf]
    %v281 = vld [vmem:[#allocation3 + $0x374] sm:$0xf]
    %v282 = vld [vmem:[#allocation3 + $0x378] sm:$0xf]
    %v283 = vld [vmem:[#allocation3 + $0x37c] sm:$0xf]
    %v284 = vld [vmem:[#allocation3 + $0x380] sm:$0xf]
    %v285 = vld [vmem:[#allocation3 + $0x384] sm:$0xf]
    %v286 = vld [vmem:[#allocation3 + $0x388] sm:$0xf]
    %v287 = vld [vmem:[#allocation3 + $0x38c] sm:$0xf]
    %v288 = vld [vmem:[#allocation3 + $0x390] sm:$0xf]
    %v289 = vld [vmem:[#allocation3 + $0x394] sm:$0xf]
    %v290 = vld [vmem:[#allocation3 + $0x398] sm:$0xf]
    %v291 = vld [vmem:[#allocation3 + $0x39c] sm:$0xf]
    %v292 = vld [vmem:[#allocation3 + $0x3a0] sm:$0xf]
    %v293 = vld [vmem:[#allocation3 + $0x3a4] sm:$0xf]
    %v294 = vld [vmem:[#allocation3 + $0x3a8] sm:$0xf]
    %v295 = vld [vmem:[#allocation3 + $0x3ac] sm:$0xf]
    %v296 = vld [vmem:[#allocation3 + $0x3b0] sm:$0xf]
    %v297 = vld [vmem:[#allocation3 + $0x3b4] sm:$0xf]
    %v298 = vld [vmem:[#allocation3 + $0x3b8] sm:$0xf]
    %v299 = vld [vmem:[#allocation3 + $0x3bc] sm:$0xf]
    %v300 = vld [vmem:[#allocation3 + $0x3c0] sm:$0xf]
    %v301 = vld [vmem:[#allocation3 + $0x3c4] sm:$0xf]
    %v302 = vld [vmem:[#allocation3 + $0x3c8] sm:$0xf]
    %v303 = vld [vmem:[#allocation3 + $0x3cc] sm:$0xf]
    %v304 = vld [vmem:[#allocation3 + $0x3d0] sm:$0xf]
    %v305 = vld [vmem:[#allocation3 + $0x3d4] sm:$0xf]
    %v306 = vld [vmem:[#allocation3 + $0x3d8] sm:$0xf]
    %v307 = vld [vmem:[#allocation3 + $0x3dc] sm:$0xf]
    %v308 = vld [vmem:[#allocation3 + $0x3e0] sm:$0xf]
    %v309 = vld [vmem:[#allocation3 + $0x3e4] sm:$0xf]
    %v310 = vld [vmem:[#allocation3 + $0x3e8] sm:$0xf]
    %v311 = vld [vmem:[#allocation3 + $0x3ec] sm:$0xf]
    %v312 = vld [vmem:[#allocation3 + $0x3f0] sm:$0xf]
    %v313 = vld [vmem:[#allocation3 + $0x3f4] sm:$0xf]
    %v314 = vld [vmem:[#allocation3 + $0x3f8] sm:$0xf]
    %v315 = vld [vmem:[#allocation3 + $0x3fc] sm:$0xf]
    %v316 = vld [vmem:[%s2] sm:$0xf]
    %v317 = vld [vmem:[%s2 + $0x4] sm:$0xf]
    %v318 = vld [vmem:[%s2 + $0x8] sm:$0xf]
    %v319 = vld [vmem:[%s2 + $0xc] sm:$0xf]
    %v320 = vld [vmem:[%s2 + $0x10] sm:$0xf]
    %v321 = vld [vmem:[%s2 + $0x14] sm:$0xf]
    %v322 = vld [vmem:[%s2 + $0x18] sm:$0xf]
    %v323 = vld [vmem:[%s2 + $0x1c] sm:$0xf]
    %v324 = vld [vmem:[%s2 + $0x20] sm:$0xf]
    %v325 = vld [vmem:[%s2 + $0x24] sm:$0xf]
    %v326 = vld [vmem:[%s2 + $0x28] sm:$0xf]
    %v327 = vld [vmem:[%s2 + $0x2c] sm:$0xf]
    %v328 = vld [vmem:[%s2 + $0x30] sm:$0xf]
    %v329 = vld [vmem:[%s2 + $0x34] sm:$0xf]
    %v330 = vld [vmem:[%s2 + $0x38] sm:$0xf]
    %v331 = vld [vmem:[%s2 + $0x3c] sm:$0xf]
    %v332 = vld [vmem:[%s3] sm:$0x1]
    %v334 = vlaneseq
    %v335 = vshrl.u32 %v334, 7
    %v336 = vsub.s32 0, %v335
    %v337 = vrot.slane %v332, %v336
    %v595 = vunpack.c.l.b16 %v60
    %v596 = vunpack.c.l.b16 %v61
    %v597 = vunpack.c.l.b16 %v62
    %v598 = vunpack.c.l.b16 %v63
    %v599 = vunpack.c.l.b16 %v64
    %v600 = vunpack.c.l.b16 %v65
    %v601 = vunpack.c.l.b16 %v66
    %v602 = vunpack.c.l.b16 %v67
    %v603 = vunpack.c.l.b16 %v68
    %v604 = vunpack.c.l.b16 %v69
    %v605 = vunpack.c.l.b16 %v70
    %v606 = vunpack.c.l.b16 %v71
    %v607 = vunpack.c.l.b16 %v72
    %v608 = vunpack.c.l.b16 %v73
    %v609 = vunpack.c.l.b16 %v74
    %v610 = vunpack.c.l.b16 %v75
    %v611 = vunpack.c.l.b16 %v76
    %v612 = vunpack.c.l.b16 %v77
    %v613 = vunpack.c.l.b16 %v78
    %v614 = vunpack.c.l.b16 %v79
    %v615 = vunpack.c.l.b16 %v80
    %v616 = vunpack.c.l.b16 %v81
    %v617 = vunpack.c.l.b16 %v82
    %v618 = vunpack.c.l.b16 %v83
    %v619 = vunpack.c.l.b16 %v84
    %v620 = vunpack.c.l.b16 %v85
    %v621 = vunpack.c.l.b16 %v86
    %v622 = vunpack.c.l.b16 %v87
    %v623 = vunpack.c.l.b16 %v88
    %v624 = vunpack.c.l.b16 %v89
    %v625 = vunpack.c.l.b16 %v90
    %v626 = vunpack.c.l.b16 %v91
    %v627 = vunpack.c.l.b16 %v92
    %v628 = vunpack.c.l.b16 %v93
    %v629 = vunpack.c.l.b16 %v94
    %v630 = vunpack.c.l.b16 %v95
    %v631 = vunpack.c.l.b16 %v96
    %v632 = vunpack.c.l.b16 %v97
    %v633 = vunpack.c.l.b16 %v98
    %v634 = vunpack.c.l.b16 %v99
    %v635 = vunpack.c.l.b16 %v100
    %v636 = vunpack.c.l.b16 %v101
    %v637 = vunpack.c.l.b16 %v102
    %v638 = vunpack.c.l.b16 %v103
    %v639 = vunpack.c.l.b16 %v104
    %v640 = vunpack.c.l.b16 %v105
    %v641 = vunpack.c.l.b16 %v106
    %v642 = vunpack.c.l.b16 %v107
    %v643 = vunpack.c.l.b16 %v108
    %v644 = vunpack.c.l.b16 %v109
    %v645 = vunpack.c.l.b16 %v110
    %v646 = vunpack.c.l.b16 %v111
    %v647 = vunpack.c.l.b16 %v112
    %v648 = vunpack.c.l.b16 %v113
    %v649 = vunpack.c.l.b16 %v114
    %v650 = vunpack.c.l.b16 %v115
    %v651 = vunpack.c.l.b16 %v116
    %v652 = vunpack.c.l.b16 %v117
    %v653 = vunpack.c.l.b16 %v118
    %v654 = vunpack.c.l.b16 %v119
    %v655 = vunpack.c.l.b16 %v120
    %v656 = vunpack.c.l.b16 %v121
    %v657 = vunpack.c.l.b16 %v122
    %v658 = vunpack.c.l.b16 %v123
    %v659 = vunpack.c.l.b16 %v124
    %v660 = vunpack.c.l.b16 %v125
    %v661 = vunpack.c.l.b16 %v126
    %v662 = vunpack.c.l.b16 %v127
    %v663 = vunpack.c.l.b16 %v128
    %v664 = vunpack.c.l.b16 %v129
    %v665 = vunpack.c.l.b16 %v130
    %v666 = vunpack.c.l.b16 %v131
    %v667 = vunpack.c.l.b16 %v132
    %v668 = vunpack.c.l.b16 %v133
    %v669 = vunpack.c.l.b16 %v134
    %v670 = vunpack.c.l.b16 %v135
    %v671 = vunpack.c.l.b16 %v136
    %v672 = vunpack.c.l.b16 %v137
    %v673 = vunpack.c.l.b16 %v138
    %v674 = vunpack.c.l.b16 %v139
    %v675 = vunpack.c.l.b16 %v140
    %v676 = vunpack.c.l.b16 %v141
    %v677 = vunpack.c.l.b16 %v142
    %v678 = vunpack.c.l.b16 %v143
    %v679 = vunpack.c.l.b16 %v144
    %v680 = vunpack.c.l.b16 %v145
    %v681 = vunpack.c.l.b16 %v146
    %v682 = vunpack.c.l.b16 %v147
    %v683 = vunpack.c.l.b16 %v148
    %v684 = vunpack.c.l.b16 %v149
    %v685 = vunpack.c.l.b16 %v150
    %v686 = vunpack.c.l.b16 %v151
    %v687 = vunpack.c.l.b16 %v152
    %v688 = vunpack.c.l.b16 %v153
    %v689 = vunpack.c.l.b16 %v154
    %v690 = vunpack.c.l.b16 %v155
    %v691 = vunpack.c.l.b16 %v156
    %v692 = vunpack.c.l.b16 %v157
    %v693 = vunpack.c.l.b16 %v158
    %v694 = vunpack.c.l.b16 %v159
    %v695 = vunpack.c.l.b16 %v160
    %v696 = vunpack.c.l.b16 %v161
    %v697 = vunpack.c.l.b16 %v162
    %v698 = vunpack.c.l.b16 %v163
    %v699 = vunpack.c.l.b16 %v164
    %v700 = vunpack.c.l.b16 %v165
    %v701 = vunpack.c.l.b16 %v166
    %v702 = vunpack.c.l.b16 %v167
    %v703 = vunpack.c.l.b16 %v168
    %v704 = vunpack.c.l.b16 %v169
    %v705 = vunpack.c.l.b16 %v170
    %v706 = vunpack.c.l.b16 %v171
    %v707 = vunpack.c.l.b16 %v172
    %v708 = vunpack.c.l.b16 %v173
    %v709 = vunpack.c.l.b16 %v174
    %v710 = vunpack.c.l.b16 %v175
    %v711 = vunpack.c.l.b16 %v176
    %v712 = vunpack.c.l.b16 %v177
    %v713 = vunpack.c.l.b16 %v178
    %v714 = vunpack.c.l.b16 %v179
    %v715 = vunpack.c.l.b16 %v180
    %v716 = vunpack.c.l.b16 %v181
    %v717 = vunpack.c.l.b16 %v182
    %v718 = vunpack.c.l.b16 %v183
    %v719 = vunpack.c.l.b16 %v184
    %v720 = vunpack.c.l.b16 %v185
    %v721 = vunpack.c.l.b16 %v186
    %v722 = vunpack.c.l.b16 %v187
    %v723 = vunpack.c.l.b16 %v188
    %v724 = vunpack.c.l.b16 %v189
    %v725 = vunpack.c.l.b16 %v190
    %v726 = vunpack.c.l.b16 %v191
    %v727 = vunpack.c.l.b16 %v192
    %v728 = vunpack.c.l.b16 %v193
    %v729 = vunpack.c.l.b16 %v194
    %v730 = vunpack.c.l.b16 %v195
    %v731 = vunpack.c.l.b16 %v196
    %v732 = vunpack.c.l.b16 %v197
    %v733 = vunpack.c.l.b16 %v198
    %v734 = vunpack.c.l.b16 %v199
    %v735 = vunpack.c.l.b16 %v200
    %v736 = vunpack.c.l.b16 %v201
    %v737 = vunpack.c.l.b16 %v202
    %v738 = vunpack.c.l.b16 %v203
    %v739 = vunpack.c.l.b16 %v204
    %v740 = vunpack.c.l.b16 %v205
    %v741 = vunpack.c.l.b16 %v206
    %v742 = vunpack.c.l.b16 %v207
    %v743 = vunpack.c.l.b16 %v208
    %v744 = vunpack.c.l.b16 %v209
    %v745 = vunpack.c.l.b16 %v210
    %v746 = vunpack.c.l.b16 %v211
    %v747 = vunpack.c.l.b16 %v212
    %v748 = vunpack.c.l.b16 %v213
    %v749 = vunpack.c.l.b16 %v214
    %v750 = vunpack.c.l.b16 %v215
    %v751 = vunpack.c.l.b16 %v216
    %v752 = vunpack.c.l.b16 %v217
    %v753 = vunpack.c.l.b16 %v218
    %v754 = vunpack.c.l.b16 %v219
    %v755 = vunpack.c.l.b16 %v220
    %v756 = vunpack.c.l.b16 %v221
    %v757 = vunpack.c.l.b16 %v222
    %v758 = vunpack.c.l.b16 %v223
    %v759 = vunpack.c.l.b16 %v224
    %v760 = vunpack.c.l.b16 %v225
    %v761 = vunpack.c.l.b16 %v226
    %v762 = vunpack.c.l.b16 %v227
    %v763 = vunpack.c.l.b16 %v228
    %v764 = vunpack.c.l.b16 %v229
    %v765 = vunpack.c.l.b16 %v230
    %v766 = vunpack.c.l.b16 %v231
    %v767 = vunpack.c.l.b16 %v232
    %v768 = vunpack.c.l.b16 %v233
    %v769 = vunpack.c.l.b16 %v234
    %v770 = vunpack.c.l.b16 %v235
    %v771 = vunpack.c.l.b16 %v236
    %v772 = vunpack.c.l.b16 %v237
    %v773 = vunpack.c.l.b16 %v238
    %v774 = vunpack.c.l.b16 %v239
    %v775 = vunpack.c.l.b16 %v240
    %v776 = vunpack.c.l.b16 %v241
    %v777 = vunpack.c.l.b16 %v242
    %v778 = vunpack.c.l.b16 %v243
    %v779 = vunpack.c.l.b16 %v244
    %v780 = vunpack.c.l.b16 %v245
    %v781 = vunpack.c.l.b16 %v246
    %v782 = vunpack.c.l.b16 %v247
    %v783 = vunpack.c.l.b16 %v248
    %v784 = vunpack.c.l.b16 %v249
    %v785 = vunpack.c.l.b16 %v250
    %v786 = vunpack.c.l.b16 %v251
    %v787 = vunpack.c.l.b16 %v252
    %v788 = vunpack.c.l.b16 %v253
    %v789 = vunpack.c.l.b16 %v254
    %v790 = vunpack.c.l.b16 %v255
    %v791 = vunpack.c.l.b16 %v256
    %v792 = vunpack.c.l.b16 %v257
    %v793 = vunpack.c.l.b16 %v258
    %v794 = vunpack.c.l.b16 %v259
    %v795 = vunpack.c.l.b16 %v260
    %v796 = vunpack.c.l.b16 %v261
    %v797 = vunpack.c.l.b16 %v262
    %v798 = vunpack.c.l.b16 %v263
    %v799 = vunpack.c.l.b16 %v264
    %v800 = vunpack.c.l.b16 %v265
    %v801 = vunpack.c.l.b16 %v266
    %v802 = vunpack.c.l.b16 %v267
    %v803 = vunpack.c.l.b16 %v268
    %v804 = vunpack.c.l.b16 %v269
    %v805 = vunpack.c.l.b16 %v270
    %v806 = vunpack.c.l.b16 %v271
    %v807 = vunpack.c.l.b16 %v272
    %v808 = vunpack.c.l.b16 %v273
    %v809 = vunpack.c.l.b16 %v274
    %v810 = vunpack.c.l.b16 %v275
    %v811 = vunpack.c.l.b16 %v276
    %v812 = vunpack.c.l.b16 %v277
    %v813 = vunpack.c.l.b16 %v278
    %v814 = vunpack.c.l.b16 %v279
    %v815 = vunpack.c.l.b16 %v280
    %v816 = vunpack.c.l.b16 %v281
    %v817 = vunpack.c.l.b16 %v282
    %v818 = vunpack.c.l.b16 %v283
    %v819 = vunpack.c.l.b16 %v284
    %v820 = vunpack.c.l.b16 %v285
    %v821 = vunpack.c.l.b16 %v286
    %v822 = vunpack.c.l.b16 %v287
    %v823 = vunpack.c.l.b16 %v288
    %v824 = vunpack.c.l.b16 %v289
    %v825 = vunpack.c.l.b16 %v290
    %v826 = vunpack.c.l.b16 %v291
    %v827 = vunpack.c.l.b16 %v292
    %v828 = vunpack.c.l.b16 %v293
    %v829 = vunpack.c.l.b16 %v294
    %v830 = vunpack.c.l.b16 %v295
    %v831 = vunpack.c.l.b16 %v296
    %v832 = vunpack.c.l.b16 %v297
    %v833 = vunpack.c.l.b16 %v298
    %v834 = vunpack.c.l.b16 %v299
    %v835 = vunpack.c.l.b16 %v300
    %v836 = vunpack.c.l.b16 %v301
    %v837 = vunpack.c.l.b16 %v302
    %v838 = vunpack.c.l.b16 %v303
    %v839 = vunpack.c.l.b16 %v304
    %v840 = vunpack.c.l.b16 %v305
    %v841 = vunpack.c.l.b16 %v306
    %v842 = vunpack.c.l.b16 %v307
    %v843 = vunpack.c.l.b16 %v308
    %v844 = vunpack.c.l.b16 %v309
    %v845 = vunpack.c.l.b16 %v310
    %v846 = vunpack.c.l.b16 %v311
    %v847 = vunpack.c.l.b16 %v312
    %v848 = vunpack.c.l.b16 %v313
    %v849 = vunpack.c.l.b16 %v314
    %v850 = vunpack.c.l.b16 %v315
    %v851 = vpack.c.b16 %v596, %v595
    %v852 = vpack.c.b16 %v598, %v597
    %v853 = vpack.c.b16 %v600, %v599
    %v854 = vpack.c.b16 %v602, %v601
    %v855 = vpack.c.b16 %v604, %v603
    %v856 = vpack.c.b16 %v606, %v605
    %v857 = vpack.c.b16 %v608, %v607
    %v858 = vpack.c.b16 %v610, %v609
    %v859 = vpack.c.b16 %v612, %v611
    %v860 = vpack.c.b16 %v614, %v613
    %v861 = vpack.c.b16 %v616, %v615
    %v862 = vpack.c.b16 %v618, %v617
    %v863 = vpack.c.b16 %v620, %v619
    %v864 = vpack.c.b16 %v622, %v621
    %v865 = vpack.c.b16 %v624, %v623
    %v866 = vpack.c.b16 %v626, %v625
    %v867 = vpack.c.b16 %v628, %v627
    %v868 = vpack.c.b16 %v630, %v629
    %v869 = vpack.c.b16 %v632, %v631
    %v870 = vpack.c.b16 %v634, %v633
    %v871 = vpack.c.b16 %v636, %v635
    %v872 = vpack.c.b16 %v638, %v637
    %v873 = vpack.c.b16 %v640, %v639
    %v874 = vpack.c.b16 %v642, %v641
    %v875 = vpack.c.b16 %v644, %v643
    %v876 = vpack.c.b16 %v646, %v645
    %v877 = vpack.c.b16 %v648, %v647
    %v878 = vpack.c.b16 %v650, %v649
    %v879 = vpack.c.b16 %v652, %v651
    %v880 = vpack.c.b16 %v654, %v653
    %v881 = vpack.c.b16 %v656, %v655
    %v882 = vpack.c.b16 %v658, %v657
    %v883 = vpack.c.b16 %v660, %v659
    %v884 = vpack.c.b16 %v662, %v661
    %v885 = vpack.c.b16 %v664, %v663
    %v886 = vpack.c.b16 %v666, %v665
    %v887 = vpack.c.b16 %v668, %v667
    %v888 = vpack.c.b16 %v670, %v669
    %v889 = vpack.c.b16 %v672, %v671
    %v890 = vpack.c.b16 %v674, %v673
    %v891 = vpack.c.b16 %v676, %v675
    %v892 = vpack.c.b16 %v678, %v677
    %v893 = vpack.c.b16 %v680, %v679
    %v894 = vpack.c.b16 %v682, %v681
    %v895 = vpack.c.b16 %v684, %v683
    %v896 = vpack.c.b16 %v686, %v685
    %v897 = vpack.c.b16 %v688, %v687
    %v898 = vpack.c.b16 %v690, %v689
    %v899 = vpack.c.b16 %v692, %v691
    %v900 = vpack.c.b16 %v694, %v693
    %v901 = vpack.c.b16 %v696, %v695
    %v902 = vpack.c.b16 %v698, %v697
    %v903 = vpack.c.b16 %v700, %v699
    %v904 = vpack.c.b16 %v702, %v701
    %v905 = vpack.c.b16 %v704, %v703
    %v906 = vpack.c.b16 %v706, %v705
    %v907 = vpack.c.b16 %v708, %v707
    %v908 = vpack.c.b16 %v710, %v709
    %v909 = vpack.c.b16 %v712, %v711
    %v910 = vpack.c.b16 %v714, %v713
    %v911 = vpack.c.b16 %v716, %v715
    %v912 = vpack.c.b16 %v718, %v717
    %v913 = vpack.c.b16 %v720, %v719
    %v914 = vpack.c.b16 %v722, %v721
    %v915 = vpack.c.b16 %v724, %v723
    %v916 = vpack.c.b16 %v726, %v725
    %v917 = vpack.c.b16 %v728, %v727
    %v918 = vpack.c.b16 %v730, %v729
    %v919 = vpack.c.b16 %v732, %v731
    %v920 = vpack.c.b16 %v734, %v733
    %v921 = vpack.c.b16 %v736, %v735
    %v922 = vpack.c.b16 %v738, %v737
    %v923 = vpack.c.b16 %v740, %v739
    %v924 = vpack.c.b16 %v742, %v741
    %v925 = vpack.c.b16 %v744, %v743
    %v926 = vpack.c.b16 %v746, %v745
    %v927 = vpack.c.b16 %v748, %v747
    %v928 = vpack.c.b16 %v750, %v749
    %v929 = vpack.c.b16 %v752, %v751
    %v930 = vpack.c.b16 %v754, %v753
    %v931 = vpack.c.b16 %v756, %v755
    %v932 = vpack.c.b16 %v758, %v757
    %v933 = vpack.c.b16 %v760, %v759
    %v934 = vpack.c.b16 %v762, %v761
    %v935 = vpack.c.b16 %v764, %v763
    %v936 = vpack.c.b16 %v766, %v765
    %v937 = vpack.c.b16 %v768, %v767
    %v938 = vpack.c.b16 %v770, %v769
    %v939 = vpack.c.b16 %v772, %v771
    %v940 = vpack.c.b16 %v774, %v773
    %v941 = vpack.c.b16 %v776, %v775
    %v942 = vpack.c.b16 %v778, %v777
    %v943 = vpack.c.b16 %v780, %v779
    %v944 = vpack.c.b16 %v782, %v781
    %v945 = vpack.c.b16 %v784, %v783
    %v946 = vpack.c.b16 %v786, %v785
    %v947 = vpack.c.b16 %v788, %v787
    %v948 = vpack.c.b16 %v790, %v789
    %v949 = vpack.c.b16 %v792, %v791
    %v950 = vpack.c.b16 %v794, %v793
    %v951 = vpack.c.b16 %v796, %v795
    %v952 = vpack.c.b16 %v798, %v797
    %v953 = vpack.c.b16 %v800, %v799
    %v954 = vpack.c.b16 %v802, %v801
    %v955 = vpack.c.b16 %v804, %v803
    %v956 = vpack.c.b16 %v806, %v805
    %v957 = vpack.c.b16 %v808, %v807
    %v958 = vpack.c.b16 %v810, %v809
    %v959 = vpack.c.b16 %v812, %v811
    %v960 = vpack.c.b16 %v814, %v813
    %v961 = vpack.c.b16 %v816, %v815
    %v962 = vpack.c.b16 %v818, %v817
    %v963 = vpack.c.b16 %v820, %v819
    %v964 = vpack.c.b16 %v822, %v821
    %v965 = vpack.c.b16 %v824, %v823
    %v966 = vpack.c.b16 %v826, %v825
    %v967 = vpack.c.b16 %v828, %v827
    %v968 = vpack.c.b16 %v830, %v829
    %v969 = vpack.c.b16 %v832, %v831
    %v970 = vpack.c.b16 %v834, %v833
    %v971 = vpack.c.b16 %v836, %v835
    %v972 = vpack.c.b16 %v838, %v837
    %v973 = vpack.c.b16 %v840, %v839
    %v974 = vpack.c.b16 %v842, %v841
    %v975 = vpack.c.b16 %v844, %v843
    %v976 = vpack.c.b16 %v846, %v845
    %v977 = vpack.c.b16 %v848, %v847
    %v978 = vpack.c.b16 %v850, %v849
    %v1123 = vunpack.c.l.b16 %v316
    %v1124 = vunpack.c.l.b16 %v317
    %v1125 = vunpack.c.l.b16 %v318
    %v1126 = vunpack.c.l.b16 %v319
    %v1127 = vunpack.c.l.b16 %v320
    %v1128 = vunpack.c.l.b16 %v321
    %v1129 = vunpack.c.l.b16 %v322
    %v1130 = vunpack.c.l.b16 %v323
    %v1131 = vunpack.c.l.b16 %v324
    %v1132 = vunpack.c.l.b16 %v325
    %v1133 = vunpack.c.l.b16 %v326
    %v1134 = vunpack.c.l.b16 %v327
    %v1135 = vunpack.c.l.b16 %v328
    %v1136 = vunpack.c.l.b16 %v329
    %v1137 = vunpack.c.l.b16 %v330
    %v1138 = vunpack.c.l.b16 %v331
    %v1139 = vpack.c.b16 %v1124, %v1123
    %v1140 = vpack.c.b16 %v1126, %v1125
    %v1141 = vpack.c.b16 %v1128, %v1127
    %v1142 = vpack.c.b16 %v1130, %v1129
    %v1143 = vpack.c.b16 %v1132, %v1131
    %v1144 = vpack.c.b16 %v1134, %v1133
    %v1145 = vpack.c.b16 %v1136, %v1135
    %v1146 = vpack.c.b16 %v1138, %v1137
    %1155 = vmatprep.subr.bf16.mxu0 0
    %1156 = vmatpush1.bf16.msra.mxu0 %v1146
    %1157 = vmatprep.subr.bf16.mxu0 0
    %1158 = vmatpush1.bf16.msra.mxu0 %v1145
    %1159 = vmatprep.subr.bf16.mxu0 0
    %1160 = vmatpush1.bf16.msra.mxu0 %v1144
    %1161 = vmatprep.subr.bf16.mxu0 0
    %1162 = vmatpush1.bf16.msra.mxu0 %v1143
    %1163 = vmatprep.subr.bf16.mxu0 0
    %1164 = vmatpush1.bf16.msra.mxu0 %v1142
    %1165 = vmatprep.subr.bf16.mxu0 0
    %1166 = vmatpush1.bf16.msra.mxu0 %v1141
    %1167 = vmatprep.subr.bf16.mxu0 0
    %1168 = vmatpush1.bf16.msra.mxu0 %v1140
    %1169 = vmatprep.subr.bf16.mxu0 0
    %1170 = vmatpush1.bf16.msra.mxu0 %v1139
    %1171 = vmatprep.subr.bf16.mxu0 0
    %1172 = vmatpush2.bf16.msra.mxu0 0
    %1173 = vmatprep.subr.bf16.mxu0 0
    %1174 = vmatpush2.bf16.msra.mxu0 0
    %1175 = vmatprep.subr.bf16.mxu0 0
    %1176 = vmatpush2.bf16.msra.mxu0 0
    %1177 = vmatprep.subr.bf16.mxu0 0
    %1178 = vmatpush2.bf16.msra.mxu0 0
    %1179 = vmatprep.subr.bf16.mxu0 0
    %1180 = vmatpush2.bf16.msra.mxu0 0
    %1181 = vmatprep.subr.bf16.mxu0 0
    %1182 = vmatpush2.bf16.msra.mxu0 0
    %1183 = vmatprep.subr.bf16.mxu0 0
    %1184 = vmatpush2.bf16.msra.mxu0 0
    %1185 = vmatprep.subr.bf16.mxu0 0
    %1186 = vmatpush2.bf16.msra.mxu0 0
    %1187 = vmatprep.mubr.bf16.mxu0 0
    %1188 = vmatmul.mubr.bf16.gmra.mxu0 %v851
    %v1189 = vpop.f32.mrf.mxu0
    %v1190 = vadd.f32 %v337, %v1189
    %v1191 = vpop.f32.mrf.mxu0
    %v1192 = vpop.f32.mrf.mxu0
    %v1193 = vadd.f32 %v337, %v1192
    %v1194 = vpop.f32.mrf.mxu0
    %1195 = vmatprep.mubr.bf16.mxu0 0
    %1196 = vmatmul.mubr.bf16.gmra.mxu0 %v852
    %v1197 = vpop.f32.mrf.mxu0
    %v1198 = vadd.f32 %v337, %v1197
    %v1199 = vpop.f32.mrf.mxu0
    %v1200 = vpop.f32.mrf.mxu0
    %v1201 = vadd.f32 %v337, %v1200
    %v1202 = vpop.f32.mrf.mxu0
    %1203 = vmatprep.mubr.bf16.mxu0 0
    %1204 = vmatmul.mubr.bf16.gmra.mxu0 %v853
    %v1205 = vpop.f32.mrf.mxu0
    %v1206 = vadd.f32 %v337, %v1205
    %v1207 = vpop.f32.mrf.mxu0
    %v1208 = vpop.f32.mrf.mxu0
    %v1209 = vadd.f32 %v337, %v1208
    %v1210 = vpop.f32.mrf.mxu0
    %1211 = vmatprep.mubr.bf16.mxu0 0
    %1212 = vmatmul.mubr.bf16.gmra.mxu0 %v854
    %v1213 = vpop.f32.mrf.mxu0
    %v1214 = vadd.f32 %v337, %v1213
    %v1215 = vpop.f32.mrf.mxu0
    %v1216 = vpop.f32.mrf.mxu0
    %v1217 = vadd.f32 %v337, %v1216
    %v1218 = vpop.f32.mrf.mxu0
    %1219 = vmatprep.mubr.bf16.mxu0 0
    %1220 = vmatmul.mubr.bf16.gmra.mxu0 %v855
    %v1221 = vpop.f32.mrf.mxu0
    %v1222 = vadd.f32 %v337, %v1221
    %v1223 = vpop.f32.mrf.mxu0
    %v1224 = vpop.f32.mrf.mxu0
    %v1225 = vadd.f32 %v337, %v1224
    %v1226 = vpop.f32.mrf.mxu0
    %1227 = vmatprep.mubr.bf16.mxu0 0
    %1228 = vmatmul.mubr.bf16.gmra.mxu0 %v856
    %v1229 = vpop.f32.mrf.mxu0
    %v1230 = vadd.f32 %v337, %v1229
    %v1231 = vpop.f32.mrf.mxu0
    %v1232 = vpop.f32.mrf.mxu0
    %v1233 = vadd.f32 %v337, %v1232
    %v1234 = vpop.f32.mrf.mxu0
    %1235 = vmatprep.mubr.bf16.mxu0 0
    %1236 = vmatmul.mubr.bf16.gmra.mxu0 %v857
    %v1237 = vpop.f32.mrf.mxu0
    %v1238 = vadd.f32 %v337, %v1237
    %v1239 = vpop.f32.mrf.mxu0
    %v1240 = vpop.f32.mrf.mxu0
    %v1241 = vadd.f32 %v337, %v1240
    %v1242 = vpop.f32.mrf.mxu0
    %1243 = vmatprep.mubr.bf16.mxu0 0
    %1244 = vmatmul.mubr.bf16.gmra.mxu0 %v858
    %v1245 = vpop.f32.mrf.mxu0
    %v1246 = vadd.f32 %v337, %v1245
    %v1247 = vpop.f32.mrf.mxu0
    %v1248 = vpop.f32.mrf.mxu0
    %v1249 = vadd.f32 %v337, %v1248
    %v1250 = vpop.f32.mrf.mxu0
    %1251 = vmatprep.mubr.bf16.mxu0 0
    %1252 = vmatmul.mubr.bf16.gmra.mxu0 %v859
    %v1253 = vpop.f32.mrf.mxu0
    %v1254 = vadd.f32 %v337, %v1253
    %v1255 = vpop.f32.mrf.mxu0
    %v1256 = vpop.f32.mrf.mxu0
    %v1257 = vadd.f32 %v337, %v1256
    %v1258 = vpop.f32.mrf.mxu0
    %1259 = vmatprep.mubr.bf16.mxu0 0
    %1260 = vmatmul.mubr.bf16.gmra.mxu0 %v860
    %v1261 = vpop.f32.mrf.mxu0
    %v1262 = vadd.f32 %v337, %v1261
    %v1263 = vpop.f32.mrf.mxu0
    %v1264 = vpop.f32.mrf.mxu0
    %v1265 = vadd.f32 %v337, %v1264
    %v1266 = vpop.f32.mrf.mxu0
    %1267 = vmatprep.mubr.bf16.mxu0 0
    %1268 = vmatmul.mubr.bf16.gmra.mxu0 %v861
    %v1269 = vpop.f32.mrf.mxu0
    %v1270 = vadd.f32 %v337, %v1269
    %v1271 = vpop.f32.mrf.mxu0
    %v1272 = vpop.f32.mrf.mxu0
    %v1273 = vadd.f32 %v337, %v1272
    %v1274 = vpop.f32.mrf.mxu0
    %1275 = vmatprep.mubr.bf16.mxu0 0
    %1276 = vmatmul.mubr.bf16.gmra.mxu0 %v862
    %v1277 = vpop.f32.mrf.mxu0
    %v1278 = vadd.f32 %v337, %v1277
    %v1279 = vpop.f32.mrf.mxu0
    %v1280 = vpop.f32.mrf.mxu0
    %v1281 = vadd.f32 %v337, %v1280
    %v1282 = vpop.f32.mrf.mxu0
    %1283 = vmatprep.mubr.bf16.mxu0 0
    %1284 = vmatmul.mubr.bf16.gmra.mxu0 %v863
    %v1285 = vpop.f32.mrf.mxu0
    %v1286 = vadd.f32 %v337, %v1285
    %v1287 = vpop.f32.mrf.mxu0
    %v1288 = vpop.f32.mrf.mxu0
    %v1289 = vadd.f32 %v337, %v1288
    %v1290 = vpop.f32.mrf.mxu0
    %1291 = vmatprep.mubr.bf16.mxu0 0
    %1292 = vmatmul.mubr.bf16.gmra.mxu0 %v864
    %v1293 = vpop.f32.mrf.mxu0
    %v1294 = vadd.f32 %v337, %v1293
    %v1295 = vpop.f32.mrf.mxu0
    %v1296 = vpop.f32.mrf.mxu0
    %v1297 = vadd.f32 %v337, %v1296
    %v1298 = vpop.f32.mrf.mxu0
    %1299 = vmatprep.mubr.bf16.mxu0 0
    %1300 = vmatmul.mubr.bf16.gmra.mxu0 %v865
    %v1301 = vpop.f32.mrf.mxu0
    %v1302 = vadd.f32 %v337, %v1301
    %v1303 = vpop.f32.mrf.mxu0
    %v1304 = vpop.f32.mrf.mxu0
    %v1305 = vadd.f32 %v337, %v1304
    %v1306 = vpop.f32.mrf.mxu0
    %1307 = vmatprep.mubr.bf16.mxu0 0
    %1308 = vmatmul.mubr.bf16.gmra.mxu0 %v866
    %v1309 = vpop.f32.mrf.mxu0
    %v1310 = vadd.f32 %v337, %v1309
    %v1311 = vpop.f32.mrf.mxu0
    %v1312 = vpop.f32.mrf.mxu0
    %v1313 = vadd.f32 %v337, %v1312
    %v1314 = vpop.f32.mrf.mxu0
    %1315 = vmatprep.mubr.bf16.mxu0 0
    %1316 = vmatmul.mubr.bf16.gmra.mxu0 %v867
    %v1317 = vpop.f32.mrf.mxu0
    %v1318 = vadd.f32 %v337, %v1317
    %v1319 = vpop.f32.mrf.mxu0
    %v1320 = vpop.f32.mrf.mxu0
    %v1321 = vadd.f32 %v337, %v1320
    %v1322 = vpop.f32.mrf.mxu0
    %1323 = vmatprep.mubr.bf16.mxu0 0
    %1324 = vmatmul.mubr.bf16.gmra.mxu0 %v868
    %v1325 = vpop.f32.mrf.mxu0
    %v1326 = vadd.f32 %v337, %v1325
    %v1327 = vpop.f32.mrf.mxu0
    %v1328 = vpop.f32.mrf.mxu0
    %v1329 = vadd.f32 %v337, %v1328
    %v1330 = vpop.f32.mrf.mxu0
    %1331 = vmatprep.mubr.bf16.mxu0 0
    %1332 = vmatmul.mubr.bf16.gmra.mxu0 %v869
    %v1333 = vpop.f32.mrf.mxu0
    %v1334 = vadd.f32 %v337, %v1333
    %v1335 = vpop.f32.mrf.mxu0
    %v1336 = vpop.f32.mrf.mxu0
    %v1337 = vadd.f32 %v337, %v1336
    %v1338 = vpop.f32.mrf.mxu0
    %1339 = vmatprep.mubr.bf16.mxu0 0
    %1340 = vmatmul.mubr.bf16.gmra.mxu0 %v870
    %v1341 = vpop.f32.mrf.mxu0
    %v1342 = vadd.f32 %v337, %v1341
    %v1343 = vpop.f32.mrf.mxu0
    %v1344 = vpop.f32.mrf.mxu0
    %v1345 = vadd.f32 %v337, %v1344
    %v1346 = vpop.f32.mrf.mxu0
    %1347 = vmatprep.mubr.bf16.mxu0 0
    %1348 = vmatmul.mubr.bf16.gmra.mxu0 %v871
    %v1349 = vpop.f32.mrf.mxu0
    %v1350 = vadd.f32 %v337, %v1349
    %v1351 = vpop.f32.mrf.mxu0
    %v1352 = vpop.f32.mrf.mxu0
    %v1353 = vadd.f32 %v337, %v1352
    %v1354 = vpop.f32.mrf.mxu0
    %1355 = vmatprep.mubr.bf16.mxu0 0
    %1356 = vmatmul.mubr.bf16.gmra.mxu0 %v872
    %v1357 = vpop.f32.mrf.mxu0
    %v1358 = vadd.f32 %v337, %v1357
    %v1359 = vpop.f32.mrf.mxu0
    %v1360 = vpop.f32.mrf.mxu0
    %v1361 = vadd.f32 %v337, %v1360
    %v1362 = vpop.f32.mrf.mxu0
    %1363 = vmatprep.mubr.bf16.mxu0 0
    %1364 = vmatmul.mubr.bf16.gmra.mxu0 %v873
    %v1365 = vpop.f32.mrf.mxu0
    %v1366 = vadd.f32 %v337, %v1365
    %v1367 = vpop.f32.mrf.mxu0
    %v1368 = vpop.f32.mrf.mxu0
    %v1369 = vadd.f32 %v337, %v1368
    %v1370 = vpop.f32.mrf.mxu0
    %1371 = vmatprep.mubr.bf16.mxu0 0
    %1372 = vmatmul.mubr.bf16.gmra.mxu0 %v874
    %v1373 = vpop.f32.mrf.mxu0
    %v1374 = vadd.f32 %v337, %v1373
    %v1375 = vpop.f32.mrf.mxu0
    %v1376 = vpop.f32.mrf.mxu0
    %v1377 = vadd.f32 %v337, %v1376
    %v1378 = vpop.f32.mrf.mxu0
    %1379 = vmatprep.mubr.bf16.mxu0 0
    %1380 = vmatmul.mubr.bf16.gmra.mxu0 %v875
    %v1381 = vpop.f32.mrf.mxu0
    %v1382 = vadd.f32 %v337, %v1381
    %v1383 = vpop.f32.mrf.mxu0
    %v1384 = vpop.f32.mrf.mxu0
    %v1385 = vadd.f32 %v337, %v1384
    %v1386 = vpop.f32.mrf.mxu0
    %1387 = vmatprep.mubr.bf16.mxu0 0
    %1388 = vmatmul.mubr.bf16.gmra.mxu0 %v876
    %v1389 = vpop.f32.mrf.mxu0
    %v1390 = vadd.f32 %v337, %v1389
    %v1391 = vpop.f32.mrf.mxu0
    %v1392 = vpop.f32.mrf.mxu0
    %v1393 = vadd.f32 %v337, %v1392
    %v1394 = vpop.f32.mrf.mxu0
    %1395 = vmatprep.mubr.bf16.mxu0 0
    %1396 = vmatmul.mubr.bf16.gmra.mxu0 %v877
    %v1397 = vpop.f32.mrf.mxu0
    %v1398 = vadd.f32 %v337, %v1397
    %v1399 = vpop.f32.mrf.mxu0
    %v1400 = vpop.f32.mrf.mxu0
    %v1401 = vadd.f32 %v337, %v1400
    %v1402 = vpop.f32.mrf.mxu0
    %1403 = vmatprep.mubr.bf16.mxu0 0
    %1404 = vmatmul.mubr.bf16.gmra.mxu0 %v878
    %v1405 = vpop.f32.mrf.mxu0
    %v1406 = vadd.f32 %v337, %v1405
    %v1407 = vpop.f32.mrf.mxu0
    %v1408 = vpop.f32.mrf.mxu0
    %v1409 = vadd.f32 %v337, %v1408
    %v1410 = vpop.f32.mrf.mxu0
    %1411 = vmatprep.mubr.bf16.mxu0 0
    %1412 = vmatmul.mubr.bf16.gmra.mxu0 %v879
    %v1413 = vpop.f32.mrf.mxu0
    %v1414 = vadd.f32 %v337, %v1413
    %v1415 = vpop.f32.mrf.mxu0
    %v1416 = vpop.f32.mrf.mxu0
    %v1417 = vadd.f32 %v337, %v1416
    %v1418 = vpop.f32.mrf.mxu0
    %1419 = vmatprep.mubr.bf16.mxu0 0
    %1420 = vmatmul.mubr.bf16.gmra.mxu0 %v880
    %v1421 = vpop.f32.mrf.mxu0
    %v1422 = vadd.f32 %v337, %v1421
    %v1423 = vpop.f32.mrf.mxu0
    %v1424 = vpop.f32.mrf.mxu0
    %v1425 = vadd.f32 %v337, %v1424
    %v1426 = vpop.f32.mrf.mxu0
    %1427 = vmatprep.mubr.bf16.mxu0 0
    %1428 = vmatmul.mubr.bf16.gmra.mxu0 %v881
    %v1429 = vpop.f32.mrf.mxu0
    %v1430 = vadd.f32 %v337, %v1429
    %v1431 = vpop.f32.mrf.mxu0
    %v1432 = vpop.f32.mrf.mxu0
    %v1433 = vadd.f32 %v337, %v1432
    %v1434 = vpop.f32.mrf.mxu0
    %1435 = vmatprep.mubr.bf16.mxu0 0
    %1436 = vmatmul.mubr.bf16.gmra.mxu0 %v882
    %v1437 = vpop.f32.mrf.mxu0
    %v1438 = vadd.f32 %v337, %v1437
    %v1439 = vpop.f32.mrf.mxu0
    %v1440 = vpop.f32.mrf.mxu0
    %v1441 = vadd.f32 %v337, %v1440
    %v1442 = vpop.f32.mrf.mxu0
    %1443 = vmatprep.mubr.bf16.mxu0 0
    %1444 = vmatmul.mubr.bf16.gmra.mxu0 %v883
    %v1445 = vpop.f32.mrf.mxu0
    %v1446 = vadd.f32 %v337, %v1445
    %v1447 = vpop.f32.mrf.mxu0
    %v1448 = vpop.f32.mrf.mxu0
    %v1449 = vadd.f32 %v337, %v1448
    %v1450 = vpop.f32.mrf.mxu0
    %1451 = vmatprep.mubr.bf16.mxu0 0
    %1452 = vmatmul.mubr.bf16.gmra.mxu0 %v884
    %v1453 = vpop.f32.mrf.mxu0
    %v1454 = vadd.f32 %v337, %v1453
    %v1455 = vpop.f32.mrf.mxu0
    %v1456 = vpop.f32.mrf.mxu0
    %v1457 = vadd.f32 %v337, %v1456
    %v1458 = vpop.f32.mrf.mxu0
    %1459 = vmatprep.mubr.bf16.mxu0 0
    %1460 = vmatmul.mubr.bf16.gmra.mxu0 %v885
    %v1461 = vpop.f32.mrf.mxu0
    %v1462 = vadd.f32 %v337, %v1461
    %v1463 = vpop.f32.mrf.mxu0
    %v1464 = vpop.f32.mrf.mxu0
    %v1465 = vadd.f32 %v337, %v1464
    %v1466 = vpop.f32.mrf.mxu0
    %1467 = vmatprep.mubr.bf16.mxu0 0
    %1468 = vmatmul.mubr.bf16.gmra.mxu0 %v886
    %v1469 = vpop.f32.mrf.mxu0
    %v1470 = vadd.f32 %v337, %v1469
    %v1471 = vpop.f32.mrf.mxu0
    %v1472 = vpop.f32.mrf.mxu0
    %v1473 = vadd.f32 %v337, %v1472
    %v1474 = vpop.f32.mrf.mxu0
    %1475 = vmatprep.mubr.bf16.mxu0 0
    %1476 = vmatmul.mubr.bf16.gmra.mxu0 %v887
    %v1477 = vpop.f32.mrf.mxu0
    %v1478 = vadd.f32 %v337, %v1477
    %v1479 = vpop.f32.mrf.mxu0
    %v1480 = vpop.f32.mrf.mxu0
    %v1481 = vadd.f32 %v337, %v1480
    %v1482 = vpop.f32.mrf.mxu0
    %1483 = vmatprep.mubr.bf16.mxu0 0
    %1484 = vmatmul.mubr.bf16.gmra.mxu0 %v888
    %v1485 = vpop.f32.mrf.mxu0
    %v1486 = vadd.f32 %v337, %v1485
    %v1487 = vpop.f32.mrf.mxu0
    %v1488 = vpop.f32.mrf.mxu0
    %v1489 = vadd.f32 %v337, %v1488
    %v1490 = vpop.f32.mrf.mxu0
    %1491 = vmatprep.mubr.bf16.mxu0 0
    %1492 = vmatmul.mubr.bf16.gmra.mxu0 %v889
    %v1493 = vpop.f32.mrf.mxu0
    %v1494 = vadd.f32 %v337, %v1493
    %v1495 = vpop.f32.mrf.mxu0
    %v1496 = vpop.f32.mrf.mxu0
    %v1497 = vadd.f32 %v337, %v1496
    %v1498 = vpop.f32.mrf.mxu0
    %1499 = vmatprep.mubr.bf16.mxu0 0
    %1500 = vmatmul.mubr.bf16.gmra.mxu0 %v890
    %v1501 = vpop.f32.mrf.mxu0
    %v1502 = vadd.f32 %v337, %v1501
    %v1503 = vpop.f32.mrf.mxu0
    %v1504 = vpop.f32.mrf.mxu0
    %v1505 = vadd.f32 %v337, %v1504
    %v1506 = vpop.f32.mrf.mxu0
    %1507 = vmatprep.mubr.bf16.mxu0 0
    %1508 = vmatmul.mubr.bf16.gmra.mxu0 %v891
    %v1509 = vpop.f32.mrf.mxu0
    %v1510 = vadd.f32 %v337, %v1509
    %v1511 = vpop.f32.mrf.mxu0
    %v1512 = vpop.f32.mrf.mxu0
    %v1513 = vadd.f32 %v337, %v1512
    %v1514 = vpop.f32.mrf.mxu0
    %1515 = vmatprep.mubr.bf16.mxu0 0
    %1516 = vmatmul.mubr.bf16.gmra.mxu0 %v892
    %v1517 = vpop.f32.mrf.mxu0
    %v1518 = vadd.f32 %v337, %v1517
    %v1519 = vpop.f32.mrf.mxu0
    %v1520 = vpop.f32.mrf.mxu0
    %v1521 = vadd.f32 %v337, %v1520
    %v1522 = vpop.f32.mrf.mxu0
    %1523 = vmatprep.mubr.bf16.mxu0 0
    %1524 = vmatmul.mubr.bf16.gmra.mxu0 %v893
    %v1525 = vpop.f32.mrf.mxu0
    %v1526 = vadd.f32 %v337, %v1525
    %v1527 = vpop.f32.mrf.mxu0
    %v1528 = vpop.f32.mrf.mxu0
    %v1529 = vadd.f32 %v337, %v1528
    %v1530 = vpop.f32.mrf.mxu0
    %1531 = vmatprep.mubr.bf16.mxu0 0
    %1532 = vmatmul.mubr.bf16.gmra.mxu0 %v894
    %v1533 = vpop.f32.mrf.mxu0
    %v1534 = vadd.f32 %v337, %v1533
    %v1535 = vpop.f32.mrf.mxu0
    %v1536 = vpop.f32.mrf.mxu0
    %v1537 = vadd.f32 %v337, %v1536
    %v1538 = vpop.f32.mrf.mxu0
    %1539 = vmatprep.mubr.bf16.mxu0 0
    %1540 = vmatmul.mubr.bf16.gmra.mxu0 %v895
    %v1541 = vpop.f32.mrf.mxu0
    %v1542 = vadd.f32 %v337, %v1541
    %v1543 = vpop.f32.mrf.mxu0
    %v1544 = vpop.f32.mrf.mxu0
    %v1545 = vadd.f32 %v337, %v1544
    %v1546 = vpop.f32.mrf.mxu0
    %1547 = vmatprep.mubr.bf16.mxu0 0
    %1548 = vmatmul.mubr.bf16.gmra.mxu0 %v896
    %v1549 = vpop.f32.mrf.mxu0
    %v1550 = vadd.f32 %v337, %v1549
    %v1551 = vpop.f32.mrf.mxu0
    %v1552 = vpop.f32.mrf.mxu0
    %v1553 = vadd.f32 %v337, %v1552
    %v1554 = vpop.f32.mrf.mxu0
    %1555 = vmatprep.mubr.bf16.mxu0 0
    %1556 = vmatmul.mubr.bf16.gmra.mxu0 %v897
    %v1557 = vpop.f32.mrf.mxu0
    %v1558 = vadd.f32 %v337, %v1557
    %v1559 = vpop.f32.mrf.mxu0
    %v1560 = vpop.f32.mrf.mxu0
    %v1561 = vadd.f32 %v337, %v1560
    %v1562 = vpop.f32.mrf.mxu0
    %1563 = vmatprep.mubr.bf16.mxu0 0
    %1564 = vmatmul.mubr.bf16.gmra.mxu0 %v898
    %v1565 = vpop.f32.mrf.mxu0
    %v1566 = vadd.f32 %v337, %v1565
    %v1567 = vpop.f32.mrf.mxu0
    %v1568 = vpop.f32.mrf.mxu0
    %v1569 = vadd.f32 %v337, %v1568
    %v1570 = vpop.f32.mrf.mxu0
    %1571 = vmatprep.mubr.bf16.mxu0 0
    %1572 = vmatmul.mubr.bf16.gmra.mxu0 %v899
    %v1573 = vpop.f32.mrf.mxu0
    %v1574 = vadd.f32 %v337, %v1573
    %v1575 = vpop.f32.mrf.mxu0
    %v1576 = vpop.f32.mrf.mxu0
    %v1577 = vadd.f32 %v337, %v1576
    %v1578 = vpop.f32.mrf.mxu0
    %1579 = vmatprep.mubr.bf16.mxu0 0
    %1580 = vmatmul.mubr.bf16.gmra.mxu0 %v900
    %v1581 = vpop.f32.mrf.mxu0
    %v1582 = vadd.f32 %v337, %v1581
    %v1583 = vpop.f32.mrf.mxu0
    %v1584 = vpop.f32.mrf.mxu0
    %v1585 = vadd.f32 %v337, %v1584
    %v1586 = vpop.f32.mrf.mxu0
    %1587 = vmatprep.mubr.bf16.mxu0 0
    %1588 = vmatmul.mubr.bf16.gmra.mxu0 %v901
    %v1589 = vpop.f32.mrf.mxu0
    %v1590 = vadd.f32 %v337, %v1589
    %v1591 = vpop.f32.mrf.mxu0
    %v1592 = vpop.f32.mrf.mxu0
    %v1593 = vadd.f32 %v337, %v1592
    %v1594 = vpop.f32.mrf.mxu0
    %1595 = vmatprep.mubr.bf16.mxu0 0
    %1596 = vmatmul.mubr.bf16.gmra.mxu0 %v902
    %v1597 = vpop.f32.mrf.mxu0
    %v1598 = vadd.f32 %v337, %v1597
    %v1599 = vpop.f32.mrf.mxu0
    %v1600 = vpop.f32.mrf.mxu0
    %v1601 = vadd.f32 %v337, %v1600
    %v1602 = vpop.f32.mrf.mxu0
    %1603 = vmatprep.mubr.bf16.mxu0 0
    %1604 = vmatmul.mubr.bf16.gmra.mxu0 %v903
    %v1605 = vpop.f32.mrf.mxu0
    %v1606 = vadd.f32 %v337, %v1605
    %v1607 = vpop.f32.mrf.mxu0
    %v1608 = vpop.f32.mrf.mxu0
    %v1609 = vadd.f32 %v337, %v1608
    %v1610 = vpop.f32.mrf.mxu0
    %1611 = vmatprep.mubr.bf16.mxu0 0
    %1612 = vmatmul.mubr.bf16.gmra.mxu0 %v904
    %v1613 = vpop.f32.mrf.mxu0
    %v1614 = vadd.f32 %v337, %v1613
    %v1615 = vpop.f32.mrf.mxu0
    %v1616 = vpop.f32.mrf.mxu0
    %v1617 = vadd.f32 %v337, %v1616
    %v1618 = vpop.f32.mrf.mxu0
    %1619 = vmatprep.mubr.bf16.mxu0 0
    %1620 = vmatmul.mubr.bf16.gmra.mxu0 %v905
    %v1621 = vpop.f32.mrf.mxu0
    %v1622 = vadd.f32 %v337, %v1621
    %v1623 = vpop.f32.mrf.mxu0
    %v1624 = vpop.f32.mrf.mxu0
    %v1625 = vadd.f32 %v337, %v1624
    %v1626 = vpop.f32.mrf.mxu0
    %1627 = vmatprep.mubr.bf16.mxu0 0
    %1628 = vmatmul.mubr.bf16.gmra.mxu0 %v906
    %v1629 = vpop.f32.mrf.mxu0
    %v1630 = vadd.f32 %v337, %v1629
    %v1631 = vpop.f32.mrf.mxu0
    %v1632 = vpop.f32.mrf.mxu0
    %v1633 = vadd.f32 %v337, %v1632
    %v1634 = vpop.f32.mrf.mxu0
    %1635 = vmatprep.mubr.bf16.mxu0 0
    %1636 = vmatmul.mubr.bf16.gmra.mxu0 %v907
    %v1637 = vpop.f32.mrf.mxu0
    %v1638 = vadd.f32 %v337, %v1637
    %v1639 = vpop.f32.mrf.mxu0
    %v1640 = vpop.f32.mrf.mxu0
    %v1641 = vadd.f32 %v337, %v1640
    %v1642 = vpop.f32.mrf.mxu0
    %1643 = vmatprep.mubr.bf16.mxu0 0
    %1644 = vmatmul.mubr.bf16.gmra.mxu0 %v908
    %v1645 = vpop.f32.mrf.mxu0
    %v1646 = vadd.f32 %v337, %v1645
    %v1647 = vpop.f32.mrf.mxu0
    %v1648 = vpop.f32.mrf.mxu0
    %v1649 = vadd.f32 %v337, %v1648
    %v1650 = vpop.f32.mrf.mxu0
    %1651 = vmatprep.mubr.bf16.mxu0 0
    %1652 = vmatmul.mubr.bf16.gmra.mxu0 %v909
    %v1653 = vpop.f32.mrf.mxu0
    %v1654 = vadd.f32 %v337, %v1653
    %v1655 = vpop.f32.mrf.mxu0
    %v1656 = vpop.f32.mrf.mxu0
    %v1657 = vadd.f32 %v337, %v1656
    %v1658 = vpop.f32.mrf.mxu0
    %1659 = vmatprep.mubr.bf16.mxu0 0
    %1660 = vmatmul.mubr.bf16.gmra.mxu0 %v910
    %v1661 = vpop.f32.mrf.mxu0
    %v1662 = vadd.f32 %v337, %v1661
    %v1663 = vpop.f32.mrf.mxu0
    %v1664 = vpop.f32.mrf.mxu0
    %v1665 = vadd.f32 %v337, %v1664
    %v1666 = vpop.f32.mrf.mxu0
    %1667 = vmatprep.mubr.bf16.mxu0 0
    %1668 = vmatmul.mubr.bf16.gmra.mxu0 %v911
    %v1669 = vpop.f32.mrf.mxu0
    %v1670 = vadd.f32 %v337, %v1669
    %v1671 = vpop.f32.mrf.mxu0
    %v1672 = vpop.f32.mrf.mxu0
    %v1673 = vadd.f32 %v337, %v1672
    %v1674 = vpop.f32.mrf.mxu0
    %1675 = vmatprep.mubr.bf16.mxu0 0
    %1676 = vmatmul.mubr.bf16.gmra.mxu0 %v912
    %v1677 = vpop.f32.mrf.mxu0
    %v1678 = vadd.f32 %v337, %v1677
    %v1679 = vpop.f32.mrf.mxu0
    %v1680 = vpop.f32.mrf.mxu0
    %v1681 = vadd.f32 %v337, %v1680
    %v1682 = vpop.f32.mrf.mxu0
    %1683 = vmatprep.mubr.bf16.mxu0 0
    %1684 = vmatmul.mubr.bf16.gmra.mxu0 %v913
    %v1685 = vpop.f32.mrf.mxu0
    %v1686 = vadd.f32 %v337, %v1685
    %v1687 = vpop.f32.mrf.mxu0
    %v1688 = vpop.f32.mrf.mxu0
    %v1689 = vadd.f32 %v337, %v1688
    %v1690 = vpop.f32.mrf.mxu0
    %1691 = vmatprep.mubr.bf16.mxu0 0
    %1692 = vmatmul.mubr.bf16.gmra.mxu0 %v914
    %v1693 = vpop.f32.mrf.mxu0
    %v1694 = vadd.f32 %v337, %v1693
    %v1695 = vpop.f32.mrf.mxu0
    %v1696 = vpop.f32.mrf.mxu0
    %v1697 = vadd.f32 %v337, %v1696
    %v1698 = vpop.f32.mrf.mxu0
    %1699 = vmatprep.mubr.bf16.mxu0 0
    %1700 = vmatmul.mubr.bf16.gmra.mxu0 %v915
    %v1701 = vpop.f32.mrf.mxu0
    %v1702 = vadd.f32 %v337, %v1701
    %v1703 = vpop.f32.mrf.mxu0
    %v1704 = vpop.f32.mrf.mxu0
    %v1705 = vadd.f32 %v337, %v1704
    %v1706 = vpop.f32.mrf.mxu0
    %1707 = vmatprep.mubr.bf16.mxu0 0
    %1708 = vmatmul.mubr.bf16.gmra.mxu0 %v916
    %v1709 = vpop.f32.mrf.mxu0
    %v1710 = vadd.f32 %v337, %v1709
    %v1711 = vpop.f32.mrf.mxu0
    %v1712 = vpop.f32.mrf.mxu0
    %v1713 = vadd.f32 %v337, %v1712
    %v1714 = vpop.f32.mrf.mxu0
    %1715 = vmatprep.mubr.bf16.mxu0 0
    %1716 = vmatmul.mubr.bf16.gmra.mxu0 %v917
    %v1717 = vpop.f32.mrf.mxu0
    %v1718 = vadd.f32 %v337, %v1717
    %v1719 = vpop.f32.mrf.mxu0
    %v1720 = vpop.f32.mrf.mxu0
    %v1721 = vadd.f32 %v337, %v1720
    %v1722 = vpop.f32.mrf.mxu0
    %1723 = vmatprep.mubr.bf16.mxu0 0
    %1724 = vmatmul.mubr.bf16.gmra.mxu0 %v918
    %v1725 = vpop.f32.mrf.mxu0
    %v1726 = vadd.f32 %v337, %v1725
    %v1727 = vpop.f32.mrf.mxu0
    %v1728 = vpop.f32.mrf.mxu0
    %v1729 = vadd.f32 %v337, %v1728
    %v1730 = vpop.f32.mrf.mxu0
    %1731 = vmatprep.mubr.bf16.mxu0 0
    %1732 = vmatmul.mubr.bf16.gmra.mxu0 %v919
    %v1733 = vpop.f32.mrf.mxu0
    %v1734 = vadd.f32 %v337, %v1733
    %v1735 = vpop.f32.mrf.mxu0
    %v1736 = vpop.f32.mrf.mxu0
    %v1737 = vadd.f32 %v337, %v1736
    %v1738 = vpop.f32.mrf.mxu0
    %1739 = vmatprep.mubr.bf16.mxu0 0
    %1740 = vmatmul.mubr.bf16.gmra.mxu0 %v920
    %v1741 = vpop.f32.mrf.mxu0
    %v1742 = vadd.f32 %v337, %v1741
    %v1743 = vpop.f32.mrf.mxu0
    %v1744 = vpop.f32.mrf.mxu0
    %v1745 = vadd.f32 %v337, %v1744
    %v1746 = vpop.f32.mrf.mxu0
    %1747 = vmatprep.mubr.bf16.mxu0 0
    %1748 = vmatmul.mubr.bf16.gmra.mxu0 %v921
    %v1749 = vpop.f32.mrf.mxu0
    %v1750 = vadd.f32 %v337, %v1749
    %v1751 = vpop.f32.mrf.mxu0
    %v1752 = vpop.f32.mrf.mxu0
    %v1753 = vadd.f32 %v337, %v1752
    %v1754 = vpop.f32.mrf.mxu0
    %1755 = vmatprep.mubr.bf16.mxu0 0
    %1756 = vmatmul.mubr.bf16.gmra.mxu0 %v922
    %v1757 = vpop.f32.mrf.mxu0
    %v1758 = vadd.f32 %v337, %v1757
    %v1759 = vpop.f32.mrf.mxu0
    %v1760 = vpop.f32.mrf.mxu0
    %v1761 = vadd.f32 %v337, %v1760
    %v1762 = vpop.f32.mrf.mxu0
    %1763 = vmatprep.mubr.bf16.mxu0 0
    %1764 = vmatmul.mubr.bf16.gmra.mxu0 %v923
    %v1765 = vpop.f32.mrf.mxu0
    %v1766 = vadd.f32 %v337, %v1765
    %v1767 = vpop.f32.mrf.mxu0
    %v1768 = vpop.f32.mrf.mxu0
    %v1769 = vadd.f32 %v337, %v1768
    %v1770 = vpop.f32.mrf.mxu0
    %1771 = vmatprep.mubr.bf16.mxu0 0
    %1772 = vmatmul.mubr.bf16.gmra.mxu0 %v924
    %v1773 = vpop.f32.mrf.mxu0
    %v1774 = vadd.f32 %v337, %v1773
    %v1775 = vpop.f32.mrf.mxu0
    %v1776 = vpop.f32.mrf.mxu0
    %v1777 = vadd.f32 %v337, %v1776
    %v1778 = vpop.f32.mrf.mxu0
    %1779 = vmatprep.mubr.bf16.mxu0 0
    %1780 = vmatmul.mubr.bf16.gmra.mxu0 %v925
    %v1781 = vpop.f32.mrf.mxu0
    %v1782 = vadd.f32 %v337, %v1781
    %v1783 = vpop.f32.mrf.mxu0
    %v1784 = vpop.f32.mrf.mxu0
    %v1785 = vadd.f32 %v337, %v1784
    %v1786 = vpop.f32.mrf.mxu0
    %1787 = vmatprep.mubr.bf16.mxu0 0
    %1788 = vmatmul.mubr.bf16.gmra.mxu0 %v926
    %v1789 = vpop.f32.mrf.mxu0
    %v1790 = vadd.f32 %v337, %v1789
    %v1791 = vpop.f32.mrf.mxu0
    %v1792 = vpop.f32.mrf.mxu0
    %v1793 = vadd.f32 %v337, %v1792
    %v1794 = vpop.f32.mrf.mxu0
    %1795 = vmatprep.mubr.bf16.mxu0 0
    %1796 = vmatmul.mubr.bf16.gmra.mxu0 %v927
    %v1797 = vpop.f32.mrf.mxu0
    %v1798 = vadd.f32 %v337, %v1797
    %v1799 = vpop.f32.mrf.mxu0
    %v1800 = vpop.f32.mrf.mxu0
    %v1801 = vadd.f32 %v337, %v1800
    %v1802 = vpop.f32.mrf.mxu0
    %1803 = vmatprep.mubr.bf16.mxu0 0
    %1804 = vmatmul.mubr.bf16.gmra.mxu0 %v928
    %v1805 = vpop.f32.mrf.mxu0
    %v1806 = vadd.f32 %v337, %v1805
    %v1807 = vpop.f32.mrf.mxu0
    %v1808 = vpop.f32.mrf.mxu0
    %v1809 = vadd.f32 %v337, %v1808
    %v1810 = vpop.f32.mrf.mxu0
    %1811 = vmatprep.mubr.bf16.mxu0 0
    %1812 = vmatmul.mubr.bf16.gmra.mxu0 %v929
    %v1813 = vpop.f32.mrf.mxu0
    %v1814 = vadd.f32 %v337, %v1813
    %v1815 = vpop.f32.mrf.mxu0
    %v1816 = vpop.f32.mrf.mxu0
    %v1817 = vadd.f32 %v337, %v1816
    %v1818 = vpop.f32.mrf.mxu0
    %1819 = vmatprep.mubr.bf16.mxu0 0
    %1820 = vmatmul.mubr.bf16.gmra.mxu0 %v930
    %v1821 = vpop.f32.mrf.mxu0
    %v1822 = vadd.f32 %v337, %v1821
    %v1823 = vpop.f32.mrf.mxu0
    %v1824 = vpop.f32.mrf.mxu0
    %v1825 = vadd.f32 %v337, %v1824
    %v1826 = vpop.f32.mrf.mxu0
    %1827 = vmatprep.mubr.bf16.mxu0 0
    %1828 = vmatmul.mubr.bf16.gmra.mxu0 %v931
    %v1829 = vpop.f32.mrf.mxu0
    %v1830 = vadd.f32 %v337, %v1829
    %v1831 = vpop.f32.mrf.mxu0
    %v1832 = vpop.f32.mrf.mxu0
    %v1833 = vadd.f32 %v337, %v1832
    %v1834 = vpop.f32.mrf.mxu0
    %1835 = vmatprep.mubr.bf16.mxu0 0
    %1836 = vmatmul.mubr.bf16.gmra.mxu0 %v932
    %v1837 = vpop.f32.mrf.mxu0
    %v1838 = vadd.f32 %v337, %v1837
    %v1839 = vpop.f32.mrf.mxu0
    %v1840 = vpop.f32.mrf.mxu0
    %v1841 = vadd.f32 %v337, %v1840
    %v1842 = vpop.f32.mrf.mxu0
    %1843 = vmatprep.mubr.bf16.mxu0 0
    %1844 = vmatmul.mubr.bf16.gmra.mxu0 %v933
    %v1845 = vpop.f32.mrf.mxu0
    %v1846 = vadd.f32 %v337, %v1845
    %v1847 = vpop.f32.mrf.mxu0
    %v1848 = vpop.f32.mrf.mxu0
    %v1849 = vadd.f32 %v337, %v1848
    %v1850 = vpop.f32.mrf.mxu0
    %1851 = vmatprep.mubr.bf16.mxu0 0
    %1852 = vmatmul.mubr.bf16.gmra.mxu0 %v934
    %v1853 = vpop.f32.mrf.mxu0
    %v1854 = vadd.f32 %v337, %v1853
    %v1855 = vpop.f32.mrf.mxu0
    %v1856 = vpop.f32.mrf.mxu0
    %v1857 = vadd.f32 %v337, %v1856
    %v1858 = vpop.f32.mrf.mxu0
    %1859 = vmatprep.mubr.bf16.mxu0 0
    %1860 = vmatmul.mubr.bf16.gmra.mxu0 %v935
    %v1861 = vpop.f32.mrf.mxu0
    %v1862 = vadd.f32 %v337, %v1861
    %v1863 = vpop.f32.mrf.mxu0
    %v1864 = vpop.f32.mrf.mxu0
    %v1865 = vadd.f32 %v337, %v1864
    %v1866 = vpop.f32.mrf.mxu0
    %1867 = vmatprep.mubr.bf16.mxu0 0
    %1868 = vmatmul.mubr.bf16.gmra.mxu0 %v936
    %v1869 = vpop.f32.mrf.mxu0
    %v1870 = vadd.f32 %v337, %v1869
    %v1871 = vpop.f32.mrf.mxu0
    %v1872 = vpop.f32.mrf.mxu0
    %v1873 = vadd.f32 %v337, %v1872
    %v1874 = vpop.f32.mrf.mxu0
    %1875 = vmatprep.mubr.bf16.mxu0 0
    %1876 = vmatmul.mubr.bf16.gmra.mxu0 %v937
    %v1877 = vpop.f32.mrf.mxu0
    %v1878 = vadd.f32 %v337, %v1877
    %v1879 = vpop.f32.mrf.mxu0
    %v1880 = vpop.f32.mrf.mxu0
    %v1881 = vadd.f32 %v337, %v1880
    %v1882 = vpop.f32.mrf.mxu0
    %1883 = vmatprep.mubr.bf16.mxu0 0
    %1884 = vmatmul.mubr.bf16.gmra.mxu0 %v938
    %v1885 = vpop.f32.mrf.mxu0
    %v1886 = vadd.f32 %v337, %v1885
    %v1887 = vpop.f32.mrf.mxu0
    %v1888 = vpop.f32.mrf.mxu0
    %v1889 = vadd.f32 %v337, %v1888
    %v1890 = vpop.f32.mrf.mxu0
    %1891 = vmatprep.mubr.bf16.mxu0 0
    %1892 = vmatmul.mubr.bf16.gmra.mxu0 %v939
    %v1893 = vpop.f32.mrf.mxu0
    %v1894 = vadd.f32 %v337, %v1893
    %v1895 = vpop.f32.mrf.mxu0
    %v1896 = vpop.f32.mrf.mxu0
    %v1897 = vadd.f32 %v337, %v1896
    %v1898 = vpop.f32.mrf.mxu0
    %1899 = vmatprep.mubr.bf16.mxu0 0
    %1900 = vmatmul.mubr.bf16.gmra.mxu0 %v940
    %v1901 = vpop.f32.mrf.mxu0
    %v1902 = vadd.f32 %v337, %v1901
    %v1903 = vpop.f32.mrf.mxu0
    %v1904 = vpop.f32.mrf.mxu0
    %v1905 = vadd.f32 %v337, %v1904
    %v1906 = vpop.f32.mrf.mxu0
    %1907 = vmatprep.mubr.bf16.mxu0 0
    %1908 = vmatmul.mubr.bf16.gmra.mxu0 %v941
    %v1909 = vpop.f32.mrf.mxu0
    %v1910 = vadd.f32 %v337, %v1909
    %v1911 = vpop.f32.mrf.mxu0
    %v1912 = vpop.f32.mrf.mxu0
    %v1913 = vadd.f32 %v337, %v1912
    %v1914 = vpop.f32.mrf.mxu0
    %1915 = vmatprep.mubr.bf16.mxu0 0
    %1916 = vmatmul.mubr.bf16.gmra.mxu0 %v942
    %v1917 = vpop.f32.mrf.mxu0
    %v1918 = vadd.f32 %v337, %v1917
    %v1919 = vpop.f32.mrf.mxu0
    %v1920 = vpop.f32.mrf.mxu0
    %v1921 = vadd.f32 %v337, %v1920
    %v1922 = vpop.f32.mrf.mxu0
    %1923 = vmatprep.mubr.bf16.mxu0 0
    %1924 = vmatmul.mubr.bf16.gmra.mxu0 %v943
    %v1925 = vpop.f32.mrf.mxu0
    %v1926 = vadd.f32 %v337, %v1925
    %v1927 = vpop.f32.mrf.mxu0
    %v1928 = vpop.f32.mrf.mxu0
    %v1929 = vadd.f32 %v337, %v1928
    %v1930 = vpop.f32.mrf.mxu0
    %1931 = vmatprep.mubr.bf16.mxu0 0
    %1932 = vmatmul.mubr.bf16.gmra.mxu0 %v944
    %v1933 = vpop.f32.mrf.mxu0
    %v1934 = vadd.f32 %v337, %v1933
    %v1935 = vpop.f32.mrf.mxu0
    %v1936 = vpop.f32.mrf.mxu0
    %v1937 = vadd.f32 %v337, %v1936
    %v1938 = vpop.f32.mrf.mxu0
    %1939 = vmatprep.mubr.bf16.mxu0 0
    %1940 = vmatmul.mubr.bf16.gmra.mxu0 %v945
    %v1941 = vpop.f32.mrf.mxu0
    %v1942 = vadd.f32 %v337, %v1941
    %v1943 = vpop.f32.mrf.mxu0
    %v1944 = vpop.f32.mrf.mxu0
    %v1945 = vadd.f32 %v337, %v1944
    %v1946 = vpop.f32.mrf.mxu0
    %1947 = vmatprep.mubr.bf16.mxu0 0
    %1948 = vmatmul.mubr.bf16.gmra.mxu0 %v946
    %v1949 = vpop.f32.mrf.mxu0
    %v1950 = vadd.f32 %v337, %v1949
    %v1951 = vpop.f32.mrf.mxu0
    %v1952 = vpop.f32.mrf.mxu0
    %v1953 = vadd.f32 %v337, %v1952
    %v1954 = vpop.f32.mrf.mxu0
    %1955 = vmatprep.mubr.bf16.mxu0 0
    %1956 = vmatmul.mubr.bf16.gmra.mxu0 %v947
    %v1957 = vpop.f32.mrf.mxu0
    %v1958 = vadd.f32 %v337, %v1957
    %v1959 = vpop.f32.mrf.mxu0
    %v1960 = vpop.f32.mrf.mxu0
    %v1961 = vadd.f32 %v337, %v1960
    %v1962 = vpop.f32.mrf.mxu0
    %1963 = vmatprep.mubr.bf16.mxu0 0
    %1964 = vmatmul.mubr.bf16.gmra.mxu0 %v948
    %v1965 = vpop.f32.mrf.mxu0
    %v1966 = vadd.f32 %v337, %v1965
    %v1967 = vpop.f32.mrf.mxu0
    %v1968 = vpop.f32.mrf.mxu0
    %v1969 = vadd.f32 %v337, %v1968
    %v1970 = vpop.f32.mrf.mxu0
    %1971 = vmatprep.mubr.bf16.mxu0 0
    %1972 = vmatmul.mubr.bf16.gmra.mxu0 %v949
    %v1973 = vpop.f32.mrf.mxu0
    %v1974 = vadd.f32 %v337, %v1973
    %v1975 = vpop.f32.mrf.mxu0
    %v1976 = vpop.f32.mrf.mxu0
    %v1977 = vadd.f32 %v337, %v1976
    %v1978 = vpop.f32.mrf.mxu0
    %1979 = vmatprep.mubr.bf16.mxu0 0
    %1980 = vmatmul.mubr.bf16.gmra.mxu0 %v950
    %v1981 = vpop.f32.mrf.mxu0
    %v1982 = vadd.f32 %v337, %v1981
    %v1983 = vpop.f32.mrf.mxu0
    %v1984 = vpop.f32.mrf.mxu0
    %v1985 = vadd.f32 %v337, %v1984
    %v1986 = vpop.f32.mrf.mxu0
    %1987 = vmatprep.mubr.bf16.mxu0 0
    %1988 = vmatmul.mubr.bf16.gmra.mxu0 %v951
    %v1989 = vpop.f32.mrf.mxu0
    %v1990 = vadd.f32 %v337, %v1989
    %v1991 = vpop.f32.mrf.mxu0
    %v1992 = vpop.f32.mrf.mxu0
    %v1993 = vadd.f32 %v337, %v1992
    %v1994 = vpop.f32.mrf.mxu0
    %1995 = vmatprep.mubr.bf16.mxu0 0
    %1996 = vmatmul.mubr.bf16.gmra.mxu0 %v952
    %v1997 = vpop.f32.mrf.mxu0
    %v1998 = vadd.f32 %v337, %v1997
    %v1999 = vpop.f32.mrf.mxu0
    %v2000 = vpop.f32.mrf.mxu0
    %v2001 = vadd.f32 %v337, %v2000
    %v2002 = vpop.f32.mrf.mxu0
    %2003 = vmatprep.mubr.bf16.mxu0 0
    %2004 = vmatmul.mubr.bf16.gmra.mxu0 %v953
    %v2005 = vpop.f32.mrf.mxu0
    %v2006 = vadd.f32 %v337, %v2005
    %v2007 = vpop.f32.mrf.mxu0
    %v2008 = vpop.f32.mrf.mxu0
    %v2009 = vadd.f32 %v337, %v2008
    %v2010 = vpop.f32.mrf.mxu0
    %2011 = vmatprep.mubr.bf16.mxu0 0
    %2012 = vmatmul.mubr.bf16.gmra.mxu0 %v954
    %v2013 = vpop.f32.mrf.mxu0
    %v2014 = vadd.f32 %v337, %v2013
    %v2015 = vpop.f32.mrf.mxu0
    %v2016 = vpop.f32.mrf.mxu0
    %v2017 = vadd.f32 %v337, %v2016
    %v2018 = vpop.f32.mrf.mxu0
    %2019 = vmatprep.mubr.bf16.mxu0 0
    %2020 = vmatmul.mubr.bf16.gmra.mxu0 %v955
    %v2021 = vpop.f32.mrf.mxu0
    %v2022 = vadd.f32 %v337, %v2021
    %v2023 = vpop.f32.mrf.mxu0
    %v2024 = vpop.f32.mrf.mxu0
    %v2025 = vadd.f32 %v337, %v2024
    %v2026 = vpop.f32.mrf.mxu0
    %2027 = vmatprep.mubr.bf16.mxu0 0
    %2028 = vmatmul.mubr.bf16.gmra.mxu0 %v956
    %v2029 = vpop.f32.mrf.mxu0
    %v2030 = vadd.f32 %v337, %v2029
    %v2031 = vpop.f32.mrf.mxu0
    %v2032 = vpop.f32.mrf.mxu0
    %v2033 = vadd.f32 %v337, %v2032
    %v2034 = vpop.f32.mrf.mxu0
    %2035 = vmatprep.mubr.bf16.mxu0 0
    %2036 = vmatmul.mubr.bf16.gmra.mxu0 %v957
    %v2037 = vpop.f32.mrf.mxu0
    %v2038 = vadd.f32 %v337, %v2037
    %v2039 = vpop.f32.mrf.mxu0
    %v2040 = vpop.f32.mrf.mxu0
    %v2041 = vadd.f32 %v337, %v2040
    %v2042 = vpop.f32.mrf.mxu0
    %2043 = vmatprep.mubr.bf16.mxu0 0
    %2044 = vmatmul.mubr.bf16.gmra.mxu0 %v958
    %v2045 = vpop.f32.mrf.mxu0
    %v2046 = vadd.f32 %v337, %v2045
    %v2047 = vpop.f32.mrf.mxu0
    %v2048 = vpop.f32.mrf.mxu0
    %v2049 = vadd.f32 %v337, %v2048
    %v2050 = vpop.f32.mrf.mxu0
    %2051 = vmatprep.mubr.bf16.mxu0 0
    %2052 = vmatmul.mubr.bf16.gmra.mxu0 %v959
    %v2053 = vpop.f32.mrf.mxu0
    %v2054 = vadd.f32 %v337, %v2053
    %v2055 = vpop.f32.mrf.mxu0
    %v2056 = vpop.f32.mrf.mxu0
    %v2057 = vadd.f32 %v337, %v2056
    %v2058 = vpop.f32.mrf.mxu0
    %2059 = vmatprep.mubr.bf16.mxu0 0
    %2060 = vmatmul.mubr.bf16.gmra.mxu0 %v960
    %v2061 = vpop.f32.mrf.mxu0
    %v2062 = vadd.f32 %v337, %v2061
    %v2063 = vpop.f32.mrf.mxu0
    %v2064 = vpop.f32.mrf.mxu0
    %v2065 = vadd.f32 %v337, %v2064
    %v2066 = vpop.f32.mrf.mxu0
    %2067 = vmatprep.mubr.bf16.mxu0 0
    %2068 = vmatmul.mubr.bf16.gmra.mxu0 %v961
    %v2069 = vpop.f32.mrf.mxu0
    %v2070 = vadd.f32 %v337, %v2069
    %v2071 = vpop.f32.mrf.mxu0
    %v2072 = vpop.f32.mrf.mxu0
    %v2073 = vadd.f32 %v337, %v2072
    %v2074 = vpop.f32.mrf.mxu0
    %2075 = vmatprep.mubr.bf16.mxu0 0
    %2076 = vmatmul.mubr.bf16.gmra.mxu0 %v962
    %v2077 = vpop.f32.mrf.mxu0
    %v2078 = vadd.f32 %v337, %v2077
    %v2079 = vpop.f32.mrf.mxu0
    %v2080 = vpop.f32.mrf.mxu0
    %v2081 = vadd.f32 %v337, %v2080
    %v2082 = vpop.f32.mrf.mxu0
    %2083 = vmatprep.mubr.bf16.mxu0 0
    %2084 = vmatmul.mubr.bf16.gmra.mxu0 %v963
    %v2085 = vpop.f32.mrf.mxu0
    %v2086 = vadd.f32 %v337, %v2085
    %v2087 = vpop.f32.mrf.mxu0
    %v2088 = vpop.f32.mrf.mxu0
    %v2089 = vadd.f32 %v337, %v2088
    %v2090 = vpop.f32.mrf.mxu0
    %2091 = vmatprep.mubr.bf16.mxu0 0
    %2092 = vmatmul.mubr.bf16.gmra.mxu0 %v964
    %v2093 = vpop.f32.mrf.mxu0
    %v2094 = vadd.f32 %v337, %v2093
    %v2095 = vpop.f32.mrf.mxu0
    %v2096 = vpop.f32.mrf.mxu0
    %v2097 = vadd.f32 %v337, %v2096
    %v2098 = vpop.f32.mrf.mxu0
    %2099 = vmatprep.mubr.bf16.mxu0 0
    %2100 = vmatmul.mubr.bf16.gmra.mxu0 %v965
    %v2101 = vpop.f32.mrf.mxu0
    %v2102 = vadd.f32 %v337, %v2101
    %v2103 = vpop.f32.mrf.mxu0
    %v2104 = vpop.f32.mrf.mxu0
    %v2105 = vadd.f32 %v337, %v2104
    %v2106 = vpop.f32.mrf.mxu0
    %2107 = vmatprep.mubr.bf16.mxu0 0
    %2108 = vmatmul.mubr.bf16.gmra.mxu0 %v966
    %v2109 = vpop.f32.mrf.mxu0
    %v2110 = vadd.f32 %v337, %v2109
    %v2111 = vpop.f32.mrf.mxu0
    %v2112 = vpop.f32.mrf.mxu0
    %v2113 = vadd.f32 %v337, %v2112
    %v2114 = vpop.f32.mrf.mxu0
    %2115 = vmatprep.mubr.bf16.mxu0 0
    %2116 = vmatmul.mubr.bf16.gmra.mxu0 %v967
    %v2117 = vpop.f32.mrf.mxu0
    %v2118 = vadd.f32 %v337, %v2117
    %v2119 = vpop.f32.mrf.mxu0
    %v2120 = vpop.f32.mrf.mxu0
    %v2121 = vadd.f32 %v337, %v2120
    %v2122 = vpop.f32.mrf.mxu0
    %2123 = vmatprep.mubr.bf16.mxu0 0
    %2124 = vmatmul.mubr.bf16.gmra.mxu0 %v968
    %v2125 = vpop.f32.mrf.mxu0
    %v2126 = vadd.f32 %v337, %v2125
    %v2127 = vpop.f32.mrf.mxu0
    %v2128 = vpop.f32.mrf.mxu0
    %v2129 = vadd.f32 %v337, %v2128
    %v2130 = vpop.f32.mrf.mxu0
    %2131 = vmatprep.mubr.bf16.mxu0 0
    %2132 = vmatmul.mubr.bf16.gmra.mxu0 %v969
    %v2133 = vpop.f32.mrf.mxu0
    %v2134 = vadd.f32 %v337, %v2133
    %v2135 = vpop.f32.mrf.mxu0
    %v2136 = vpop.f32.mrf.mxu0
    %v2137 = vadd.f32 %v337, %v2136
    %v2138 = vpop.f32.mrf.mxu0
    %2139 = vmatprep.mubr.bf16.mxu0 0
    %2140 = vmatmul.mubr.bf16.gmra.mxu0 %v970
    %v2141 = vpop.f32.mrf.mxu0
    %v2142 = vadd.f32 %v337, %v2141
    %v2143 = vpop.f32.mrf.mxu0
    %v2144 = vpop.f32.mrf.mxu0
    %v2145 = vadd.f32 %v337, %v2144
    %v2146 = vpop.f32.mrf.mxu0
    %2147 = vmatprep.mubr.bf16.mxu0 0
    %2148 = vmatmul.mubr.bf16.gmra.mxu0 %v971
    %v2149 = vpop.f32.mrf.mxu0
    %v2150 = vadd.f32 %v337, %v2149
    %v2151 = vpop.f32.mrf.mxu0
    %v2152 = vpop.f32.mrf.mxu0
    %v2153 = vadd.f32 %v337, %v2152
    %v2154 = vpop.f32.mrf.mxu0
    %2155 = vmatprep.mubr.bf16.mxu0 0
    %2156 = vmatmul.mubr.bf16.gmra.mxu0 %v972
    %v2157 = vpop.f32.mrf.mxu0
    %v2158 = vadd.f32 %v337, %v2157
    %v2159 = vpop.f32.mrf.mxu0
    %v2160 = vpop.f32.mrf.mxu0
    %v2161 = vadd.f32 %v337, %v2160
    %v2162 = vpop.f32.mrf.mxu0
    %2163 = vmatprep.mubr.bf16.mxu0 0
    %2164 = vmatmul.mubr.bf16.gmra.mxu0 %v973
    %v2165 = vpop.f32.mrf.mxu0
    %v2166 = vadd.f32 %v337, %v2165
    %v2167 = vpop.f32.mrf.mxu0
    %v2168 = vpop.f32.mrf.mxu0
    %v2169 = vadd.f32 %v337, %v2168
    %v2170 = vpop.f32.mrf.mxu0
    %2171 = vmatprep.mubr.bf16.mxu0 0
    %2172 = vmatmul.mubr.bf16.gmra.mxu0 %v974
    %v2173 = vpop.f32.mrf.mxu0
    %v2174 = vadd.f32 %v337, %v2173
    %v2175 = vpop.f32.mrf.mxu0
    %v2176 = vpop.f32.mrf.mxu0
    %v2177 = vadd.f32 %v337, %v2176
    %v2178 = vpop.f32.mrf.mxu0
    %2179 = vmatprep.mubr.bf16.mxu0 0
    %2180 = vmatmul.mubr.bf16.gmra.mxu0 %v975
    %v2181 = vpop.f32.mrf.mxu0
    %v2182 = vadd.f32 %v337, %v2181
    %v2183 = vpop.f32.mrf.mxu0
    %v2184 = vpop.f32.mrf.mxu0
    %v2185 = vadd.f32 %v337, %v2184
    %v2186 = vpop.f32.mrf.mxu0
    %2187 = vmatprep.mubr.bf16.mxu0 0
    %2188 = vmatmul.mubr.bf16.gmra.mxu0 %v976
    %v2189 = vpop.f32.mrf.mxu0
    %v2190 = vadd.f32 %v337, %v2189
    %v2191 = vpop.f32.mrf.mxu0
    %v2192 = vpop.f32.mrf.mxu0
    %v2193 = vadd.f32 %v337, %v2192
    %v2194 = vpop.f32.mrf.mxu0
    %2195 = vmatprep.mubr.bf16.mxu0 0
    %2196 = vmatmul.mubr.bf16.gmra.mxu0 %v977
    %v2197 = vpop.f32.mrf.mxu0
    %v2198 = vadd.f32 %v337, %v2197
    %v2199 = vpop.f32.mrf.mxu0
    %v2200 = vpop.f32.mrf.mxu0
    %v2201 = vadd.f32 %v337, %v2200
    %v2202 = vpop.f32.mrf.mxu0
    %2203 = vmatprep.mubr.bf16.mxu0 0
    %2204 = vmatmul.mubr.bf16.gmra.mxu0 %v978
    %v2205 = vpop.f32.mrf.mxu0
    %v2206 = vadd.f32 %v337, %v2205
    %v2207 = vpop.f32.mrf.mxu0
    %v2208 = vpop.f32.mrf.mxu0
    %v2209 = vadd.f32 %v337, %v2208
    %v2210 = vpop.f32.mrf.mxu0
    %2211 = vdwg.mxu0
    %v2212 = vmax.f32 %v1190, 0.0
    %v2213 = vmax.f32 %v1193, 0.0
    %v2214 = vmax.f32 %v1198, 0.0
    %v2215 = vmax.f32 %v1201, 0.0
    %v2216 = vmax.f32 %v1206, 0.0
    %v2217 = vmax.f32 %v1209, 0.0
    %v2218 = vmax.f32 %v1214, 0.0
    %v2219 = vmax.f32 %v1217, 0.0
    %v2220 = vmax.f32 %v1222, 0.0
    %v2221 = vmax.f32 %v1225, 0.0
    %v2222 = vmax.f32 %v1230, 0.0
    %v2223 = vmax.f32 %v1233, 0.0
    %v2224 = vmax.f32 %v1238, 0.0
    %v2225 = vmax.f32 %v1241, 0.0
    %v2226 = vmax.f32 %v1246, 0.0
    %v2227 = vmax.f32 %v1249, 0.0
    %v2228 = vmax.f32 %v1254, 0.0
    %v2229 = vmax.f32 %v1257, 0.0
    %v2230 = vmax.f32 %v1262, 0.0
    %v2231 = vmax.f32 %v1265, 0.0
    %v2232 = vmax.f32 %v1270, 0.0
    %v2233 = vmax.f32 %v1273, 0.0
    %v2234 = vmax.f32 %v1278, 0.0
    %v2235 = vmax.f32 %v1281, 0.0
    %v2236 = vmax.f32 %v1286, 0.0
    %v2237 = vmax.f32 %v1289, 0.0
    %v2238 = vmax.f32 %v1294, 0.0
    %v2239 = vmax.f32 %v1297, 0.0
    %v2240 = vmax.f32 %v1302, 0.0
    %v2241 = vmax.f32 %v1305, 0.0
    %v2242 = vmax.f32 %v1310, 0.0
    %v2243 = vmax.f32 %v1313, 0.0
    %v2244 = vmax.f32 %v1318, 0.0
    %v2245 = vmax.f32 %v1321, 0.0
    %v2246 = vmax.f32 %v1326, 0.0
    %v2247 = vmax.f32 %v1329, 0.0
    %v2248 = vmax.f32 %v1334, 0.0
    %v2249 = vmax.f32 %v1337, 0.0
    %v2250 = vmax.f32 %v1342, 0.0
    %v2251 = vmax.f32 %v1345, 0.0
    %v2252 = vmax.f32 %v1350, 0.0
    %v2253 = vmax.f32 %v1353, 0.0
    %v2254 = vmax.f32 %v1358, 0.0
    %v2255 = vmax.f32 %v1361, 0.0
    %v2256 = vmax.f32 %v1366, 0.0
    %v2257 = vmax.f32 %v1369, 0.0
    %v2258 = vmax.f32 %v1374, 0.0
    %v2259 = vmax.f32 %v1377, 0.0
    %v2260 = vmax.f32 %v1382, 0.0
    %v2261 = vmax.f32 %v1385, 0.0
    %v2262 = vmax.f32 %v1390, 0.0
    %v2263 = vmax.f32 %v1393, 0.0
    %v2264 = vmax.f32 %v1398, 0.0
    %v2265 = vmax.f32 %v1401, 0.0
    %v2266 = vmax.f32 %v1406, 0.0
    %v2267 = vmax.f32 %v1409, 0.0
    %v2268 = vmax.f32 %v1414, 0.0
    %v2269 = vmax.f32 %v1417, 0.0
    %v2270 = vmax.f32 %v1422, 0.0
    %v2271 = vmax.f32 %v1425, 0.0
    %v2272 = vmax.f32 %v1430, 0.0
    %v2273 = vmax.f32 %v1433, 0.0
    %v2274 = vmax.f32 %v1438, 0.0
    %v2275 = vmax.f32 %v1441, 0.0
    %v2276 = vmax.f32 %v1446, 0.0
    %v2277 = vmax.f32 %v1449, 0.0
    %v2278 = vmax.f32 %v1454, 0.0
    %v2279 = vmax.f32 %v1457, 0.0
    %v2280 = vmax.f32 %v1462, 0.0
    %v2281 = vmax.f32 %v1465, 0.0
    %v2282 = vmax.f32 %v1470, 0.0
    %v2283 = vmax.f32 %v1473, 0.0
    %v2284 = vmax.f32 %v1478, 0.0
    %v2285 = vmax.f32 %v1481, 0.0
    %v2286 = vmax.f32 %v1486, 0.0
    %v2287 = vmax.f32 %v1489, 0.0
    %v2288 = vmax.f32 %v1494, 0.0
    %v2289 = vmax.f32 %v1497, 0.0
    %v2290 = vmax.f32 %v1502, 0.0
    %v2291 = vmax.f32 %v1505, 0.0
    %v2292 = vmax.f32 %v1510, 0.0
    %v2293 = vmax.f32 %v1513, 0.0
    %v2294 = vmax.f32 %v1518, 0.0
    %v2295 = vmax.f32 %v1521, 0.0
    %v2296 = vmax.f32 %v1526, 0.0
    %v2297 = vmax.f32 %v1529, 0.0
    %v2298 = vmax.f32 %v1534, 0.0
    %v2299 = vmax.f32 %v1537, 0.0
    %v2300 = vmax.f32 %v1542, 0.0
    %v2301 = vmax.f32 %v1545, 0.0
    %v2302 = vmax.f32 %v1550, 0.0
    %v2303 = vmax.f32 %v1553, 0.0
    %v2304 = vmax.f32 %v1558, 0.0
    %v2305 = vmax.f32 %v1561, 0.0
    %v2306 = vmax.f32 %v1566, 0.0
    %v2307 = vmax.f32 %v1569, 0.0
    %v2308 = vmax.f32 %v1574, 0.0
    %v2309 = vmax.f32 %v1577, 0.0
    %v2310 = vmax.f32 %v1582, 0.0
    %v2311 = vmax.f32 %v1585, 0.0
    %v2312 = vmax.f32 %v1590, 0.0
    %v2313 = vmax.f32 %v1593, 0.0
    %v2314 = vmax.f32 %v1598, 0.0
    %v2315 = vmax.f32 %v1601, 0.0
    %v2316 = vmax.f32 %v1606, 0.0
    %v2317 = vmax.f32 %v1609, 0.0
    %v2318 = vmax.f32 %v1614, 0.0
    %v2319 = vmax.f32 %v1617, 0.0
    %v2320 = vmax.f32 %v1622, 0.0
    %v2321 = vmax.f32 %v1625, 0.0
    %v2322 = vmax.f32 %v1630, 0.0
    %v2323 = vmax.f32 %v1633, 0.0
    %v2324 = vmax.f32 %v1638, 0.0
    %v2325 = vmax.f32 %v1641, 0.0
    %v2326 = vmax.f32 %v1646, 0.0
    %v2327 = vmax.f32 %v1649, 0.0
    %v2328 = vmax.f32 %v1654, 0.0
    %v2329 = vmax.f32 %v1657, 0.0
    %v2330 = vmax.f32 %v1662, 0.0
    %v2331 = vmax.f32 %v1665, 0.0
    %v2332 = vmax.f32 %v1670, 0.0
    %v2333 = vmax.f32 %v1673, 0.0
    %v2334 = vmax.f32 %v1678, 0.0
    %v2335 = vmax.f32 %v1681, 0.0
    %v2336 = vmax.f32 %v1686, 0.0
    %v2337 = vmax.f32 %v1689, 0.0
    %v2338 = vmax.f32 %v1694, 0.0
    %v2339 = vmax.f32 %v1697, 0.0
    %v2340 = vmax.f32 %v1702, 0.0
    %v2341 = vmax.f32 %v1705, 0.0
    %v2342 = vmax.f32 %v1710, 0.0
    %v2343 = vmax.f32 %v1713, 0.0
    %v2344 = vmax.f32 %v1718, 0.0
    %v2345 = vmax.f32 %v1721, 0.0
    %v2346 = vmax.f32 %v1726, 0.0
    %v2347 = vmax.f32 %v1729, 0.0
    %v2348 = vmax.f32 %v1734, 0.0
    %v2349 = vmax.f32 %v1737, 0.0
    %v2350 = vmax.f32 %v1742, 0.0
    %v2351 = vmax.f32 %v1745, 0.0
    %v2352 = vmax.f32 %v1750, 0.0
    %v2353 = vmax.f32 %v1753, 0.0
    %v2354 = vmax.f32 %v1758, 0.0
    %v2355 = vmax.f32 %v1761, 0.0
    %v2356 = vmax.f32 %v1766, 0.0
    %v2357 = vmax.f32 %v1769, 0.0
    %v2358 = vmax.f32 %v1774, 0.0
    %v2359 = vmax.f32 %v1777, 0.0
    %v2360 = vmax.f32 %v1782, 0.0
    %v2361 = vmax.f32 %v1785, 0.0
    %v2362 = vmax.f32 %v1790, 0.0
    %v2363 = vmax.f32 %v1793, 0.0
    %v2364 = vmax.f32 %v1798, 0.0
    %v2365 = vmax.f32 %v1801, 0.0
    %v2366 = vmax.f32 %v1806, 0.0
    %v2367 = vmax.f32 %v1809, 0.0
    %v2368 = vmax.f32 %v1814, 0.0
    %v2369 = vmax.f32 %v1817, 0.0
    %v2370 = vmax.f32 %v1822, 0.0
    %v2371 = vmax.f32 %v1825, 0.0
    %v2372 = vmax.f32 %v1830, 0.0
    %v2373 = vmax.f32 %v1833, 0.0
    %v2374 = vmax.f32 %v1838, 0.0
    %v2375 = vmax.f32 %v1841, 0.0
    %v2376 = vmax.f32 %v1846, 0.0
    %v2377 = vmax.f32 %v1849, 0.0
    %v2378 = vmax.f32 %v1854, 0.0
    %v2379 = vmax.f32 %v1857, 0.0
    %v2380 = vmax.f32 %v1862, 0.0
    %v2381 = vmax.f32 %v1865, 0.0
    %v2382 = vmax.f32 %v1870, 0.0
    %v2383 = vmax.f32 %v1873, 0.0
    %v2384 = vmax.f32 %v1878, 0.0
    %v2385 = vmax.f32 %v1881, 0.0
    %v2386 = vmax.f32 %v1886, 0.0
    %v2387 = vmax.f32 %v1889, 0.0
    %v2388 = vmax.f32 %v1894, 0.0
    %v2389 = vmax.f32 %v1897, 0.0
    %v2390 = vmax.f32 %v1902, 0.0
    %v2391 = vmax.f32 %v1905, 0.0
    %v2392 = vmax.f32 %v1910, 0.0
    %v2393 = vmax.f32 %v1913, 0.0
    %v2394 = vmax.f32 %v1918, 0.0
    %v2395 = vmax.f32 %v1921, 0.0
    %v2396 = vmax.f32 %v1926, 0.0
    %v2397 = vmax.f32 %v1929, 0.0
    %v2398 = vmax.f32 %v1934, 0.0
    %v2399 = vmax.f32 %v1937, 0.0
    %v2400 = vmax.f32 %v1942, 0.0
    %v2401 = vmax.f32 %v1945, 0.0
    %v2402 = vmax.f32 %v1950, 0.0
    %v2403 = vmax.f32 %v1953, 0.0
    %v2404 = vmax.f32 %v1958, 0.0
    %v2405 = vmax.f32 %v1961, 0.0
    %v2406 = vmax.f32 %v1966, 0.0
    %v2407 = vmax.f32 %v1969, 0.0
    %v2408 = vmax.f32 %v1974, 0.0
    %v2409 = vmax.f32 %v1977, 0.0
    %v2410 = vmax.f32 %v1982, 0.0
    %v2411 = vmax.f32 %v1985, 0.0
    %v2412 = vmax.f32 %v1990, 0.0
    %v2413 = vmax.f32 %v1993, 0.0
    %v2414 = vmax.f32 %v1998, 0.0
    %v2415 = vmax.f32 %v2001, 0.0
    %v2416 = vmax.f32 %v2006, 0.0
    %v2417 = vmax.f32 %v2009, 0.0
    %v2418 = vmax.f32 %v2014, 0.0
    %v2419 = vmax.f32 %v2017, 0.0
    %v2420 = vmax.f32 %v2022, 0.0
    %v2421 = vmax.f32 %v2025, 0.0
    %v2422 = vmax.f32 %v2030, 0.0
    %v2423 = vmax.f32 %v2033, 0.0
    %v2424 = vmax.f32 %v2038, 0.0
    %v2425 = vmax.f32 %v2041, 0.0
    %v2426 = vmax.f32 %v2046, 0.0
    %v2427 = vmax.f32 %v2049, 0.0
    %v2428 = vmax.f32 %v2054, 0.0
    %v2429 = vmax.f32 %v2057, 0.0
    %v2430 = vmax.f32 %v2062, 0.0
    %v2431 = vmax.f32 %v2065, 0.0
    %v2432 = vmax.f32 %v2070, 0.0
    %v2433 = vmax.f32 %v2073, 0.0
    %v2434 = vmax.f32 %v2078, 0.0
    %v2435 = vmax.f32 %v2081, 0.0
    %v2436 = vmax.f32 %v2086, 0.0
    %v2437 = vmax.f32 %v2089, 0.0
    %v2438 = vmax.f32 %v2094, 0.0
    %v2439 = vmax.f32 %v2097, 0.0
    %v2440 = vmax.f32 %v2102, 0.0
    %v2441 = vmax.f32 %v2105, 0.0
    %v2442 = vmax.f32 %v2110, 0.0
    %v2443 = vmax.f32 %v2113, 0.0
    %v2444 = vmax.f32 %v2118, 0.0
    %v2445 = vmax.f32 %v2121, 0.0
    %v2446 = vmax.f32 %v2126, 0.0
    %v2447 = vmax.f32 %v2129, 0.0
    %v2448 = vmax.f32 %v2134, 0.0
    %v2449 = vmax.f32 %v2137, 0.0
    %v2450 = vmax.f32 %v2142, 0.0
    %v2451 = vmax.f32 %v2145, 0.0
    %v2452 = vmax.f32 %v2150, 0.0
    %v2453 = vmax.f32 %v2153, 0.0
    %v2454 = vmax.f32 %v2158, 0.0
    %v2455 = vmax.f32 %v2161, 0.0
    %v2456 = vmax.f32 %v2166, 0.0
    %v2457 = vmax.f32 %v2169, 0.0
    %v2458 = vmax.f32 %v2174, 0.0
    %v2459 = vmax.f32 %v2177, 0.0
    %v2460 = vmax.f32 %v2182, 0.0
    %v2461 = vmax.f32 %v2185, 0.0
    %v2462 = vmax.f32 %v2190, 0.0
    %v2463 = vmax.f32 %v2193, 0.0
    %v2464 = vmax.f32 %v2198, 0.0
    %v2465 = vmax.f32 %v2201, 0.0
    %v2466 = vmax.f32 %v2206, 0.0
    %v2467 = vmax.f32 %v2209, 0.0
    %v2468 = vld [vmem:[#allocation6] sm:$0xff]
    %v2469 = vld [vmem:[#allocation6 + $0x8] sm:$0xff]
    %v2470 = vld [vmem:[#allocation6 + $0x10] sm:$0xff]
    %v2471 = vld [vmem:[#allocation6 + $0x18] sm:$0xff]
    %v2472 = vld [vmem:[#allocation6 + $0x20] sm:$0xff]
    %v2473 = vld [vmem:[#allocation6 + $0x28] sm:$0xff]
    %v2474 = vld [vmem:[#allocation6 + $0x30] sm:$0xff]
    %v2475 = vld [vmem:[#allocation6 + $0x38] sm:$0xff]
    %v2476 = vld [vmem:[#allocation6 + $0x40] sm:$0xff]
    %v2477 = vld [vmem:[#allocation6 + $0x48] sm:$0xff]
    %v2478 = vld [vmem:[#allocation6 + $0x50] sm:$0xff]
    %v2479 = vld [vmem:[#allocation6 + $0x58] sm:$0xff]
    %v2480 = vld [vmem:[#allocation6 + $0x60] sm:$0xff]
    %v2481 = vld [vmem:[#allocation6 + $0x68] sm:$0xff]
    %v2482 = vld [vmem:[#allocation6 + $0x70] sm:$0xff]
    %v2483 = vld [vmem:[#allocation6 + $0x78] sm:$0xff]
    %2484 = vmatprep.subr.mxu0 0.0
    %2485 = vmatpush1.msra.mxu0 %v2227
    %2486 = vmatprep.subr.mxu0 0.0
    %2487 = vmatpush1.msra.mxu0 %v2226
    %2488 = vmatprep.subr.mxu0 0.0
    %2489 = vmatpush1.msra.mxu0 %v2225
    %2490 = vmatprep.subr.mxu0 0.0
    %2491 = vmatpush1.msra.mxu0 %v2224
    %2492 = vmatprep.subr.mxu0 0.0
    %2493 = vmatpush1.msra.mxu0 %v2223
    %2494 = vmatprep.subr.mxu0 0.0
    %2495 = vmatpush1.msra.mxu0 %v2222
    %2496 = vmatprep.subr.mxu0 0.0
    %2497 = vmatpush1.msra.mxu0 %v2221
    %2498 = vmatprep.subr.mxu0 0.0
    %2499 = vmatpush1.msra.mxu0 %v2220
    %2500 = vmatprep.subr.mxu0 0.0
    %2501 = vmatpush1.msra.mxu0 %v2219
    %2502 = vmatprep.subr.mxu0 0.0
    %2503 = vmatpush1.msra.mxu0 %v2218
    %2504 = vmatprep.subr.mxu0 0.0
    %2505 = vmatpush1.msra.mxu0 %v2217
    %2506 = vmatprep.subr.mxu0 0.0
    %2507 = vmatpush1.msra.mxu0 %v2216
    %2508 = vmatprep.subr.mxu0 0.0
    %2509 = vmatpush1.msra.mxu0 %v2215
    %2510 = vmatprep.subr.mxu0 0.0
    %2511 = vmatpush1.msra.mxu0 %v2214
    %2512 = vmatprep.subr.mxu0 0.0
    %2513 = vmatpush1.msra.mxu0 %v2213
    %2514 = vmatprep.subr.mxu0 0.0
    %2515 = vmatpush1.msra.mxu0 %v2212
    %2516 = vmatprep.subr.mxu0 0.0
    %2517 = vmatpush2.msra.mxu0 %v2243
    %2518 = vmatprep.subr.mxu0 0.0
    %2519 = vmatpush2.msra.mxu0 %v2242
    %2520 = vmatprep.subr.mxu0 0.0
    %2521 = vmatpush2.msra.mxu0 %v2241
    %2522 = vmatprep.subr.mxu0 0.0
    %2523 = vmatpush2.msra.mxu0 %v2240
    %2524 = vmatprep.subr.mxu0 0.0
    %2525 = vmatpush2.msra.mxu0 %v2239
    %2526 = vmatprep.subr.mxu0 0.0
    %2527 = vmatpush2.msra.mxu0 %v2238
    %2528 = vmatprep.subr.mxu0 0.0
    %2529 = vmatpush2.msra.mxu0 %v2237
    %2530 = vmatprep.subr.mxu0 0.0
    %2531 = vmatpush2.msra.mxu0 %v2236
    %2532 = vmatprep.subr.mxu0 0.0
    %2533 = vmatpush2.msra.mxu0 %v2235
    %2534 = vmatprep.subr.mxu0 0.0
    %2535 = vmatpush2.msra.mxu0 %v2234
    %2536 = vmatprep.subr.mxu0 0.0
    %2537 = vmatpush2.msra.mxu0 %v2233
    %2538 = vmatprep.subr.mxu0 0.0
    %2539 = vmatpush2.msra.mxu0 %v2232
    %2540 = vmatprep.subr.mxu0 0.0
    %2541 = vmatpush2.msra.mxu0 %v2231
    %2542 = vmatprep.subr.mxu0 0.0
    %2543 = vmatpush2.msra.mxu0 %v2230
    %2544 = vmatprep.subr.mxu0 0.0
    %2545 = vmatpush2.msra.mxu0 %v2229
    %2546 = vmatprep.subr.mxu0 0.0
    %2547 = vmatpush2.msra.mxu0 %v2228
    %2548 = vmatprep.mubr.f32.mxu0 %v2469
    %2549 = vmatmul.mubr.f32.gmra.mxu0 %v2468
    %v2550 = vpop.f32.mrf.mxu0
    %v2551 = vadd.f32 0.0, %v2550
    %v2552 = vpop.f32.mrf.mxu0
    %2553 = vdwg.mxu0
    %2554 = vmatprep.subr.mxu0 0.0
    %2555 = vmatpush1.msra.mxu0 %v2259
    %2556 = vmatprep.subr.mxu0 0.0
    %2557 = vmatpush1.msra.mxu0 %v2258
    %2558 = vmatprep.subr.mxu0 0.0
    %2559 = vmatpush1.msra.mxu0 %v2257
    %2560 = vmatprep.subr.mxu0 0.0
    %2561 = vmatpush1.msra.mxu0 %v2256
    %2562 = vmatprep.subr.mxu0 0.0
    %2563 = vmatpush1.msra.mxu0 %v2255
    %2564 = vmatprep.subr.mxu0 0.0
    %2565 = vmatpush1.msra.mxu0 %v2254
    %2566 = vmatprep.subr.mxu0 0.0
    %2567 = vmatpush1.msra.mxu0 %v2253
    %2568 = vmatprep.subr.mxu0 0.0
    %2569 = vmatpush1.msra.mxu0 %v2252
    %2570 = vmatprep.subr.mxu0 0.0
    %2571 = vmatpush1.msra.mxu0 %v2251
    %2572 = vmatprep.subr.mxu0 0.0
    %2573 = vmatpush1.msra.mxu0 %v2250
    %2574 = vmatprep.subr.mxu0 0.0
    %2575 = vmatpush1.msra.mxu0 %v2249
    %2576 = vmatprep.subr.mxu0 0.0
    %2577 = vmatpush1.msra.mxu0 %v2248
    %2578 = vmatprep.subr.mxu0 0.0
    %2579 = vmatpush1.msra.mxu0 %v2247
    %2580 = vmatprep.subr.mxu0 0.0
    %2581 = vmatpush1.msra.mxu0 %v2246
    %2582 = vmatprep.subr.mxu0 0.0
    %2583 = vmatpush1.msra.mxu0 %v2245
    %2584 = vmatprep.subr.mxu0 0.0
    %2585 = vmatpush1.msra.mxu0 %v2244
    %2586 = vmatprep.subr.mxu0 0.0
    %2587 = vmatpush2.msra.mxu0 %v2275
    %2588 = vmatprep.subr.mxu0 0.0
    %2589 = vmatpush2.msra.mxu0 %v2274
    %2590 = vmatprep.subr.mxu0 0.0
    %2591 = vmatpush2.msra.mxu0 %v2273
    %2592 = vmatprep.subr.mxu0 0.0
    %2593 = vmatpush2.msra.mxu0 %v2272
    %2594 = vmatprep.subr.mxu0 0.0
    %2595 = vmatpush2.msra.mxu0 %v2271
    %2596 = vmatprep.subr.mxu0 0.0
    %2597 = vmatpush2.msra.mxu0 %v2270
    %2598 = vmatprep.subr.mxu0 0.0
    %2599 = vmatpush2.msra.mxu0 %v2269
    %2600 = vmatprep.subr.mxu0 0.0
    %2601 = vmatpush2.msra.mxu0 %v2268
    %2602 = vmatprep.subr.mxu0 0.0
    %2603 = vmatpush2.msra.mxu0 %v2267
    %2604 = vmatprep.subr.mxu0 0.0
    %2605 = vmatpush2.msra.mxu0 %v2266
    %2606 = vmatprep.subr.mxu0 0.0
    %2607 = vmatpush2.msra.mxu0 %v2265
    %2608 = vmatprep.subr.mxu0 0.0
    %2609 = vmatpush2.msra.mxu0 %v2264
    %2610 = vmatprep.subr.mxu0 0.0
    %2611 = vmatpush2.msra.mxu0 %v2263
    %2612 = vmatprep.subr.mxu0 0.0
    %2613 = vmatpush2.msra.mxu0 %v2262
    %2614 = vmatprep.subr.mxu0 0.0
    %2615 = vmatpush2.msra.mxu0 %v2261
    %2616 = vmatprep.subr.mxu0 0.0
    %2617 = vmatpush2.msra.mxu0 %v2260
    %2618 = vmatprep.mubr.f32.mxu0 %v2471
    %2619 = vmatmul.mubr.f32.gmra.mxu0 %v2470
    %v2620 = vpop.f32.mrf.mxu0
    %v2621 = vadd.f32 %v2551, %v2620
    %v2622 = vpop.f32.mrf.mxu0
    %2623 = vdwg.mxu0
    %2624 = vmatprep.subr.mxu0 0.0
    %2625 = vmatpush1.msra.mxu0 %v2291
    %2626 = vmatprep.subr.mxu0 0.0
    %2627 = vmatpush1.msra.mxu0 %v2290
    %2628 = vmatprep.subr.mxu0 0.0
    %2629 = vmatpush1.msra.mxu0 %v2289
    %2630 = vmatprep.subr.mxu0 0.0
    %2631 = vmatpush1.msra.mxu0 %v2288
    %2632 = vmatprep.subr.mxu0 0.0
    %2633 = vmatpush1.msra.mxu0 %v2287
    %2634 = vmatprep.subr.mxu0 0.0
    %2635 = vmatpush1.msra.mxu0 %v2286
    %2636 = vmatprep.subr.mxu0 0.0
    %2637 = vmatpush1.msra.mxu0 %v2285
    %2638 = vmatprep.subr.mxu0 0.0
    %2639 = vmatpush1.msra.mxu0 %v2284
    %2640 = vmatprep.subr.mxu0 0.0
    %2641 = vmatpush1.msra.mxu0 %v2283
    %2642 = vmatprep.subr.mxu0 0.0
    %2643 = vmatpush1.msra.mxu0 %v2282
    %2644 = vmatprep.subr.mxu0 0.0
    %2645 = vmatpush1.msra.mxu0 %v2281
    %2646 = vmatprep.subr.mxu0 0.0
    %2647 = vmatpush1.msra.mxu0 %v2280
    %2648 = vmatprep.subr.mxu0 0.0
    %2649 = vmatpush1.msra.mxu0 %v2279
    %2650 = vmatprep.subr.mxu0 0.0
    %2651 = vmatpush1.msra.mxu0 %v2278
    %2652 = vmatprep.subr.mxu0 0.0
    %2653 = vmatpush1.msra.mxu0 %v2277
    %2654 = vmatprep.subr.mxu0 0.0
    %2655 = vmatpush1.msra.mxu0 %v2276
    %2656 = vmatprep.subr.mxu0 0.0
    %2657 = vmatpush2.msra.mxu0 %v2307
    %2658 = vmatprep.subr.mxu0 0.0
    %2659 = vmatpush2.msra.mxu0 %v2306
    %2660 = vmatprep.subr.mxu0 0.0
    %2661 = vmatpush2.msra.mxu0 %v2305
    %2662 = vmatprep.subr.mxu0 0.0
    %2663 = vmatpush2.msra.mxu0 %v2304
    %2664 = vmatprep.subr.mxu0 0.0
    %2665 = vmatpush2.msra.mxu0 %v2303
    %2666 = vmatprep.subr.mxu0 0.0
    %2667 = vmatpush2.msra.mxu0 %v2302
    %2668 = vmatprep.subr.mxu0 0.0
    %2669 = vmatpush2.msra.mxu0 %v2301
    %2670 = vmatprep.subr.mxu0 0.0
    %2671 = vmatpush2.msra.mxu0 %v2300
    %2672 = vmatprep.subr.mxu0 0.0
    %2673 = vmatpush2.msra.mxu0 %v2299
    %2674 = vmatprep.subr.mxu0 0.0
    %2675 = vmatpush2.msra.mxu0 %v2298
    %2676 = vmatprep.subr.mxu0 0.0
    %2677 = vmatpush2.msra.mxu0 %v2297
    %2678 = vmatprep.subr.mxu0 0.0
    %2679 = vmatpush2.msra.mxu0 %v2296
    %2680 = vmatprep.subr.mxu0 0.0
    %2681 = vmatpush2.msra.mxu0 %v2295
    %2682 = vmatprep.subr.mxu0 0.0
    %2683 = vmatpush2.msra.mxu0 %v2294
    %2684 = vmatprep.subr.mxu0 0.0
    %2685 = vmatpush2.msra.mxu0 %v2293
    %2686 = vmatprep.subr.mxu0 0.0
    %2687 = vmatpush2.msra.mxu0 %v2292
    %2688 = vmatprep.mubr.f32.mxu0 %v2473
    %2689 = vmatmul.mubr.f32.gmra.mxu0 %v2472
    %v2690 = vpop.f32.mrf.mxu0
    %v2691 = vadd.f32 %v2621, %v2690
    %v2692 = vpop.f32.mrf.mxu0
    %2693 = vdwg.mxu0
    %2694 = vmatprep.subr.mxu0 0.0
    %2695 = vmatpush1.msra.mxu0 %v2323
    %2696 = vmatprep.subr.mxu0 0.0
    %2697 = vmatpush1.msra.mxu0 %v2322
    %2698 = vmatprep.subr.mxu0 0.0
    %2699 = vmatpush1.msra.mxu0 %v2321
    %2700 = vmatprep.subr.mxu0 0.0
    %2701 = vmatpush1.msra.mxu0 %v2320
    %2702 = vmatprep.subr.mxu0 0.0
    %2703 = vmatpush1.msra.mxu0 %v2319
    %2704 = vmatprep.subr.mxu0 0.0
    %2705 = vmatpush1.msra.mxu0 %v2318
    %2706 = vmatprep.subr.mxu0 0.0
    %2707 = vmatpush1.msra.mxu0 %v2317
    %2708 = vmatprep.subr.mxu0 0.0
    %2709 = vmatpush1.msra.mxu0 %v2316
    %2710 = vmatprep.subr.mxu0 0.0
    %2711 = vmatpush1.msra.mxu0 %v2315
    %2712 = vmatprep.subr.mxu0 0.0
    %2713 = vmatpush1.msra.mxu0 %v2314
    %2714 = vmatprep.subr.mxu0 0.0
    %2715 = vmatpush1.msra.mxu0 %v2313
    %2716 = vmatprep.subr.mxu0 0.0
    %2717 = vmatpush1.msra.mxu0 %v2312
    %2718 = vmatprep.subr.mxu0 0.0
    %2719 = vmatpush1.msra.mxu0 %v2311
    %2720 = vmatprep.subr.mxu0 0.0
    %2721 = vmatpush1.msra.mxu0 %v2310
    %2722 = vmatprep.subr.mxu0 0.0
    %2723 = vmatpush1.msra.mxu0 %v2309
    %2724 = vmatprep.subr.mxu0 0.0
    %2725 = vmatpush1.msra.mxu0 %v2308
    %2726 = vmatprep.subr.mxu0 0.0
    %2727 = vmatpush2.msra.mxu0 %v2339
    %2728 = vmatprep.subr.mxu0 0.0
    %2729 = vmatpush2.msra.mxu0 %v2338
    %2730 = vmatprep.subr.mxu0 0.0
    %2731 = vmatpush2.msra.mxu0 %v2337
    %2732 = vmatprep.subr.mxu0 0.0
    %2733 = vmatpush2.msra.mxu0 %v2336
    %2734 = vmatprep.subr.mxu0 0.0
    %2735 = vmatpush2.msra.mxu0 %v2335
    %2736 = vmatprep.subr.mxu0 0.0
    %2737 = vmatpush2.msra.mxu0 %v2334
    %2738 = vmatprep.subr.mxu0 0.0
    %2739 = vmatpush2.msra.mxu0 %v2333
    %2740 = vmatprep.subr.mxu0 0.0
    %2741 = vmatpush2.msra.mxu0 %v2332
    %2742 = vmatprep.subr.mxu0 0.0
    %2743 = vmatpush2.msra.mxu0 %v2331
    %2744 = vmatprep.subr.mxu0 0.0
    %2745 = vmatpush2.msra.mxu0 %v2330
    %2746 = vmatprep.subr.mxu0 0.0
    %2747 = vmatpush2.msra.mxu0 %v2329
    %2748 = vmatprep.subr.mxu0 0.0
    %2749 = vmatpush2.msra.mxu0 %v2328
    %2750 = vmatprep.subr.mxu0 0.0
    %2751 = vmatpush2.msra.mxu0 %v2327
    %2752 = vmatprep.subr.mxu0 0.0
    %2753 = vmatpush2.msra.mxu0 %v2326
    %2754 = vmatprep.subr.mxu0 0.0
    %2755 = vmatpush2.msra.mxu0 %v2325
    %2756 = vmatprep.subr.mxu0 0.0
    %2757 = vmatpush2.msra.mxu0 %v2324
    %2758 = vmatprep.mubr.f32.mxu0 %v2475
    %2759 = vmatmul.mubr.f32.gmra.mxu0 %v2474
    %v2760 = vpop.f32.mrf.mxu0
    %v2761 = vadd.f32 %v2691, %v2760
    %v2762 = vpop.f32.mrf.mxu0
    %2763 = vdwg.mxu0
    %2764 = vmatprep.subr.mxu0 0.0
    %2765 = vmatpush1.msra.mxu0 %v2355
    %2766 = vmatprep.subr.mxu0 0.0
    %2767 = vmatpush1.msra.mxu0 %v2354
    %2768 = vmatprep.subr.mxu0 0.0
    %2769 = vmatpush1.msra.mxu0 %v2353
    %2770 = vmatprep.subr.mxu0 0.0
    %2771 = vmatpush1.msra.mxu0 %v2352
    %2772 = vmatprep.subr.mxu0 0.0
    %2773 = vmatpush1.msra.mxu0 %v2351
    %2774 = vmatprep.subr.mxu0 0.0
    %2775 = vmatpush1.msra.mxu0 %v2350
    %2776 = vmatprep.subr.mxu0 0.0
    %2777 = vmatpush1.msra.mxu0 %v2349
    %2778 = vmatprep.subr.mxu0 0.0
    %2779 = vmatpush1.msra.mxu0 %v2348
    %2780 = vmatprep.subr.mxu0 0.0
    %2781 = vmatpush1.msra.mxu0 %v2347
    %2782 = vmatprep.subr.mxu0 0.0
    %2783 = vmatpush1.msra.mxu0 %v2346
    %2784 = vmatprep.subr.mxu0 0.0
    %2785 = vmatpush1.msra.mxu0 %v2345
    %2786 = vmatprep.subr.mxu0 0.0
    %2787 = vmatpush1.msra.mxu0 %v2344
    %2788 = vmatprep.subr.mxu0 0.0
    %2789 = vmatpush1.msra.mxu0 %v2343
    %2790 = vmatprep.subr.mxu0 0.0
    %2791 = vmatpush1.msra.mxu0 %v2342
    %2792 = vmatprep.subr.mxu0 0.0
    %2793 = vmatpush1.msra.mxu0 %v2341
    %2794 = vmatprep.subr.mxu0 0.0
    %2795 = vmatpush1.msra.mxu0 %v2340
    %2796 = vmatprep.subr.mxu0 0.0
    %2797 = vmatpush2.msra.mxu0 %v2371
    %2798 = vmatprep.subr.mxu0 0.0
    %2799 = vmatpush2.msra.mxu0 %v2370
    %2800 = vmatprep.subr.mxu0 0.0
    %2801 = vmatpush2.msra.mxu0 %v2369
    %2802 = vmatprep.subr.mxu0 0.0
    %2803 = vmatpush2.msra.mxu0 %v2368
    %2804 = vmatprep.subr.mxu0 0.0
    %2805 = vmatpush2.msra.mxu0 %v2367
    %2806 = vmatprep.subr.mxu0 0.0
    %2807 = vmatpush2.msra.mxu0 %v2366
    %2808 = vmatprep.subr.mxu0 0.0
    %2809 = vmatpush2.msra.mxu0 %v2365
    %2810 = vmatprep.subr.mxu0 0.0
    %2811 = vmatpush2.msra.mxu0 %v2364
    %2812 = vmatprep.subr.mxu0 0.0
    %2813 = vmatpush2.msra.mxu0 %v2363
    %2814 = vmatprep.subr.mxu0 0.0
    %2815 = vmatpush2.msra.mxu0 %v2362
    %2816 = vmatprep.subr.mxu0 0.0
    %2817 = vmatpush2.msra.mxu0 %v2361
    %2818 = vmatprep.subr.mxu0 0.0
    %2819 = vmatpush2.msra.mxu0 %v2360
    %2820 = vmatprep.subr.mxu0 0.0
    %2821 = vmatpush2.msra.mxu0 %v2359
    %2822 = vmatprep.subr.mxu0 0.0
    %2823 = vmatpush2.msra.mxu0 %v2358
    %2824 = vmatprep.subr.mxu0 0.0
    %2825 = vmatpush2.msra.mxu0 %v2357
    %2826 = vmatprep.subr.mxu0 0.0
    %2827 = vmatpush2.msra.mxu0 %v2356
    %2828 = vmatprep.mubr.f32.mxu0 %v2477
    %2829 = vmatmul.mubr.f32.gmra.mxu0 %v2476
    %v2830 = vpop.f32.mrf.mxu0
    %v2831 = vadd.f32 %v2761, %v2830
    %v2832 = vpop.f32.mrf.mxu0
    %2833 = vdwg.mxu0
    %2834 = vmatprep.subr.mxu0 0.0
    %2835 = vmatpush1.msra.mxu0 %v2387
    %2836 = vmatprep.subr.mxu0 0.0
    %2837 = vmatpush1.msra.mxu0 %v2386
    %2838 = vmatprep.subr.mxu0 0.0
    %2839 = vmatpush1.msra.mxu0 %v2385
    %2840 = vmatprep.subr.mxu0 0.0
    %2841 = vmatpush1.msra.mxu0 %v2384
    %2842 = vmatprep.subr.mxu0 0.0
    %2843 = vmatpush1.msra.mxu0 %v2383
    %2844 = vmatprep.subr.mxu0 0.0
    %2845 = vmatpush1.msra.mxu0 %v2382
    %2846 = vmatprep.subr.mxu0 0.0
    %2847 = vmatpush1.msra.mxu0 %v2381
    %2848 = vmatprep.subr.mxu0 0.0
    %2849 = vmatpush1.msra.mxu0 %v2380
    %2850 = vmatprep.subr.mxu0 0.0
    %2851 = vmatpush1.msra.mxu0 %v2379
    %2852 = vmatprep.subr.mxu0 0.0
    %2853 = vmatpush1.msra.mxu0 %v2378
    %2854 = vmatprep.subr.mxu0 0.0
    %2855 = vmatpush1.msra.mxu0 %v2377
    %2856 = vmatprep.subr.mxu0 0.0
    %2857 = vmatpush1.msra.mxu0 %v2376
    %2858 = vmatprep.subr.mxu0 0.0
    %2859 = vmatpush1.msra.mxu0 %v2375
    %2860 = vmatprep.subr.mxu0 0.0
    %2861 = vmatpush1.msra.mxu0 %v2374
    %2862 = vmatprep.subr.mxu0 0.0
    %2863 = vmatpush1.msra.mxu0 %v2373
    %2864 = vmatprep.subr.mxu0 0.0
    %2865 = vmatpush1.msra.mxu0 %v2372
    %2866 = vmatprep.subr.mxu0 0.0
    %2867 = vmatpush2.msra.mxu0 %v2403
    %2868 = vmatprep.subr.mxu0 0.0
    %2869 = vmatpush2.msra.mxu0 %v2402
    %2870 = vmatprep.subr.mxu0 0.0
    %2871 = vmatpush2.msra.mxu0 %v2401
    %2872 = vmatprep.subr.mxu0 0.0
    %2873 = vmatpush2.msra.mxu0 %v2400
    %2874 = vmatprep.subr.mxu0 0.0
    %2875 = vmatpush2.msra.mxu0 %v2399
    %2876 = vmatprep.subr.mxu0 0.0
    %2877 = vmatpush2.msra.mxu0 %v2398
    %2878 = vmatprep.subr.mxu0 0.0
    %2879 = vmatpush2.msra.mxu0 %v2397
    %2880 = vmatprep.subr.mxu0 0.0
    %2881 = vmatpush2.msra.mxu0 %v2396
    %2882 = vmatprep.subr.mxu0 0.0
    %2883 = vmatpush2.msra.mxu0 %v2395
    %2884 = vmatprep.subr.mxu0 0.0
    %2885 = vmatpush2.msra.mxu0 %v2394
    %2886 = vmatprep.subr.mxu0 0.0
    %2887 = vmatpush2.msra.mxu0 %v2393
    %2888 = vmatprep.subr.mxu0 0.0
    %2889 = vmatpush2.msra.mxu0 %v2392
    %2890 = vmatprep.subr.mxu0 0.0
    %2891 = vmatpush2.msra.mxu0 %v2391
    %2892 = vmatprep.subr.mxu0 0.0
    %2893 = vmatpush2.msra.mxu0 %v2390
    %2894 = vmatprep.subr.mxu0 0.0
    %2895 = vmatpush2.msra.mxu0 %v2389
    %2896 = vmatprep.subr.mxu0 0.0
    %2897 = vmatpush2.msra.mxu0 %v2388
    %2898 = vmatprep.mubr.f32.mxu0 %v2479
    %2899 = vmatmul.mubr.f32.gmra.mxu0 %v2478
    %v2900 = vpop.f32.mrf.mxu0
    %v2901 = vadd.f32 %v2831, %v2900
    %v2902 = vpop.f32.mrf.mxu0
    %2903 = vdwg.mxu0
    %2904 = vmatprep.subr.mxu0 0.0
    %2905 = vmatpush1.msra.mxu0 %v2419
    %2906 = vmatprep.subr.mxu0 0.0
    %2907 = vmatpush1.msra.mxu0 %v2418
    %2908 = vmatprep.subr.mxu0 0.0
    %2909 = vmatpush1.msra.mxu0 %v2417
    %2910 = vmatprep.subr.mxu0 0.0
    %2911 = vmatpush1.msra.mxu0 %v2416
    %2912 = vmatprep.subr.mxu0 0.0
    %2913 = vmatpush1.msra.mxu0 %v2415
    %2914 = vmatprep.subr.mxu0 0.0
    %2915 = vmatpush1.msra.mxu0 %v2414
    %2916 = vmatprep.subr.mxu0 0.0
    %2917 = vmatpush1.msra.mxu0 %v2413
    %2918 = vmatprep.subr.mxu0 0.0
    %2919 = vmatpush1.msra.mxu0 %v2412
    %2920 = vmatprep.subr.mxu0 0.0
    %2921 = vmatpush1.msra.mxu0 %v2411
    %2922 = vmatprep.subr.mxu0 0.0
    %2923 = vmatpush1.msra.mxu0 %v2410
    %2924 = vmatprep.subr.mxu0 0.0
    %2925 = vmatpush1.msra.mxu0 %v2409
    %2926 = vmatprep.subr.mxu0 0.0
    %2927 = vmatpush1.msra.mxu0 %v2408
    %2928 = vmatprep.subr.mxu0 0.0
    %2929 = vmatpush1.msra.mxu0 %v2407
    %2930 = vmatprep.subr.mxu0 0.0
    %2931 = vmatpush1.msra.mxu0 %v2406
    %2932 = vmatprep.subr.mxu0 0.0
    %2933 = vmatpush1.msra.mxu0 %v2405
    %2934 = vmatprep.subr.mxu0 0.0
    %2935 = vmatpush1.msra.mxu0 %v2404
    %2936 = vmatprep.subr.mxu0 0.0
    %2937 = vmatpush2.msra.mxu0 %v2435
    %2938 = vmatprep.subr.mxu0 0.0
    %2939 = vmatpush2.msra.mxu0 %v2434
    %2940 = vmatprep.subr.mxu0 0.0
    %2941 = vmatpush2.msra.mxu0 %v2433
    %2942 = vmatprep.subr.mxu0 0.0
    %2943 = vmatpush2.msra.mxu0 %v2432
    %2944 = vmatprep.subr.mxu0 0.0
    %2945 = vmatpush2.msra.mxu0 %v2431
    %2946 = vmatprep.subr.mxu0 0.0
    %2947 = vmatpush2.msra.mxu0 %v2430
    %2948 = vmatprep.subr.mxu0 0.0
    %2949 = vmatpush2.msra.mxu0 %v2429
    %2950 = vmatprep.subr.mxu0 0.0
    %2951 = vmatpush2.msra.mxu0 %v2428
    %2952 = vmatprep.subr.mxu0 0.0
    %2953 = vmatpush2.msra.mxu0 %v2427
    %2954 = vmatprep.subr.mxu0 0.0
    %2955 = vmatpush2.msra.mxu0 %v2426
    %2956 = vmatprep.subr.mxu0 0.0
    %2957 = vmatpush2.msra.mxu0 %v2425
    %2958 = vmatprep.subr.mxu0 0.0
    %2959 = vmatpush2.msra.mxu0 %v2424
    %2960 = vmatprep.subr.mxu0 0.0
    %2961 = vmatpush2.msra.mxu0 %v2423
    %2962 = vmatprep.subr.mxu0 0.0
    %2963 = vmatpush2.msra.mxu0 %v2422
    %2964 = vmatprep.subr.mxu0 0.0
    %2965 = vmatpush2.msra.mxu0 %v2421
    %2966 = vmatprep.subr.mxu0 0.0
    %2967 = vmatpush2.msra.mxu0 %v2420
    %2968 = vmatprep.mubr.f32.mxu0 %v2481
    %2969 = vmatmul.mubr.f32.gmra.mxu0 %v2480
    %v2970 = vpop.f32.mrf.mxu0
    %v2971 = vadd.f32 %v2901, %v2970
    %v2972 = vpop.f32.mrf.mxu0
    %2973 = vdwg.mxu0
    %2974 = vmatprep.subr.mxu0 0.0
    %2975 = vmatpush1.msra.mxu0 %v2451
    %2976 = vmatprep.subr.mxu0 0.0
    %2977 = vmatpush1.msra.mxu0 %v2450
    %2978 = vmatprep.subr.mxu0 0.0
    %2979 = vmatpush1.msra.mxu0 %v2449
    %2980 = vmatprep.subr.mxu0 0.0
    %2981 = vmatpush1.msra.mxu0 %v2448
    %2982 = vmatprep.subr.mxu0 0.0
    %2983 = vmatpush1.msra.mxu0 %v2447
    %2984 = vmatprep.subr.mxu0 0.0
    %2985 = vmatpush1.msra.mxu0 %v2446
    %2986 = vmatprep.subr.mxu0 0.0
    %2987 = vmatpush1.msra.mxu0 %v2445
    %2988 = vmatprep.subr.mxu0 0.0
    %2989 = vmatpush1.msra.mxu0 %v2444
    %2990 = vmatprep.subr.mxu0 0.0
    %2991 = vmatpush1.msra.mxu0 %v2443
    %2992 = vmatprep.subr.mxu0 0.0
    %2993 = vmatpush1.msra.mxu0 %v2442
    %2994 = vmatprep.subr.mxu0 0.0
    %2995 = vmatpush1.msra.mxu0 %v2441
    %2996 = vmatprep.subr.mxu0 0.0
    %2997 = vmatpush1.msra.mxu0 %v2440
    %2998 = vmatprep.subr.mxu0 0.0
    %2999 = vmatpush1.msra.mxu0 %v2439
    %3000 = vmatprep.subr.mxu0 0.0
    %3001 = vmatpush1.msra.mxu0 %v2438
    %3002 = vmatprep.subr.mxu0 0.0
    %3003 = vmatpush1.msra.mxu0 %v2437
    %3004 = vmatprep.subr.mxu0 0.0
    %3005 = vmatpush1.msra.mxu0 %v2436
    %3006 = vmatprep.subr.mxu0 0.0
    %3007 = vmatpush2.msra.mxu0 %v2467
    %3008 = vmatprep.subr.mxu0 0.0
    %3009 = vmatpush2.msra.mxu0 %v2466
    %3010 = vmatprep.subr.mxu0 0.0
    %3011 = vmatpush2.msra.mxu0 %v2465
    %3012 = vmatprep.subr.mxu0 0.0
    %3013 = vmatpush2.msra.mxu0 %v2464
    %3014 = vmatprep.subr.mxu0 0.0
    %3015 = vmatpush2.msra.mxu0 %v2463
    %3016 = vmatprep.subr.mxu0 0.0
    %3017 = vmatpush2.msra.mxu0 %v2462
    %3018 = vmatprep.subr.mxu0 0.0
    %3019 = vmatpush2.msra.mxu0 %v2461
    %3020 = vmatprep.subr.mxu0 0.0
    %3021 = vmatpush2.msra.mxu0 %v2460
    %3022 = vmatprep.subr.mxu0 0.0
    %3023 = vmatpush2.msra.mxu0 %v2459
    %3024 = vmatprep.subr.mxu0 0.0
    %3025 = vmatpush2.msra.mxu0 %v2458
    %3026 = vmatprep.subr.mxu0 0.0
    %3027 = vmatpush2.msra.mxu0 %v2457
    %3028 = vmatprep.subr.mxu0 0.0
    %3029 = vmatpush2.msra.mxu0 %v2456
    %3030 = vmatprep.subr.mxu0 0.0
    %3031 = vmatpush2.msra.mxu0 %v2455
    %3032 = vmatprep.subr.mxu0 0.0
    %3033 = vmatpush2.msra.mxu0 %v2454
    %3034 = vmatprep.subr.mxu0 0.0
    %3035 = vmatpush2.msra.mxu0 %v2453
    %3036 = vmatprep.subr.mxu0 0.0
    %3037 = vmatpush2.msra.mxu0 %v2452
    %3038 = vmatprep.mubr.f32.mxu0 %v2483
    %3039 = vmatmul.mubr.f32.gmra.mxu0 %v2482
    %v3040 = vpop.f32.mrf.mxu0
    %v3041 = vadd.f32 %v2971, %v3040
    %v3042 = vpop.f32.mrf.mxu0
    %3043 = vdwg.mxu0
    %v3044 = vpack.c.bf16 %v3041, %v3041
    %v3045 = vld [vmem:[%s6] sm:$0xf]
    %v3046 = vld [vmem:[%s6 + $0x4] sm:$0xf]
    %v3047 = vld [vmem:[%s6 + $0x8] sm:$0xf]
    %v3048 = vld [vmem:[%s6 + $0xc] sm:$0xf]
    %v3049 = vld [vmem:[%s6 + $0x10] sm:$0xf]
    %v3050 = vld [vmem:[%s6 + $0x14] sm:$0xf]
    %v3051 = vld [vmem:[%s6 + $0x18] sm:$0xf]
    %v3052 = vld [vmem:[%s6 + $0x1c] sm:$0xf]
    %v3053 = vld [vmem:[%s8] sm:$0x1]
    %v3055 = vlaneseq
    %v3056 = vshrl.u32 %v3055, 7
    %v3057 = vsub.s32 0, %v3056
    %v3058 = vrot.slane %v3053, %v3057
    %v3068 = vunpack.c.l.b16 %v3045
    %v3069 = vunpack.c.l.b16 %v3046
    %v3070 = vunpack.c.l.b16 %v3047
    %v3071 = vunpack.c.l.b16 %v3048
    %v3072 = vunpack.c.l.b16 %v3049
    %v3073 = vunpack.c.l.b16 %v3050
    %v3074 = vunpack.c.l.b16 %v3051
    %v3075 = vunpack.c.l.b16 %v3052
    %v3076 = vpack.c.b16 %v3069, %v3068
    %v3077 = vpack.c.b16 %v3071, %v3070
    %v3078 = vpack.c.b16 %v3073, %v3072
    %v3079 = vpack.c.b16 %v3075, %v3074
    %vm3084 = vcmask 523264
    %v3086 = vsel %vm3084, %v3044, 0
    %3088 = vmatprep.subr.bf16.mxu0 0
    %3089 = vmatpush1.bf16.msra.mxu0 0
    %3090 = vmatprep.subr.bf16.mxu0 0
    %3091 = vmatpush1.bf16.msra.mxu0 0
    %3092 = vmatprep.subr.bf16.mxu0 0
    %3093 = vmatpush1.bf16.msra.mxu0 0
    %3094 = vmatprep.subr.bf16.mxu0 0
    %3095 = vmatpush1.bf16.msra.mxu0 0
    %3096 = vmatprep.subr.bf16.mxu0 0
    %3097 = vmatpush1.bf16.msra.mxu0 %v3079
    %3098 = vmatprep.subr.bf16.mxu0 0
    %3099 = vmatpush1.bf16.msra.mxu0 %v3078
    %3100 = vmatprep.subr.bf16.mxu0 0
    %3101 = vmatpush1.bf16.msra.mxu0 %v3077
    %3102 = vmatprep.subr.bf16.mxu0 0
    %3103 = vmatpush1.bf16.msra.mxu0 %v3076
    %3104 = vmatprep.subr.bf16.mxu0 0
    %3105 = vmatpush2.bf16.msra.mxu0 0
    %3106 = vmatprep.subr.bf16.mxu0 0
    %3107 = vmatpush2.bf16.msra.mxu0 0
    %3108 = vmatprep.subr.bf16.mxu0 0
    %3109 = vmatpush2.bf16.msra.mxu0 0
    %3110 = vmatprep.subr.bf16.mxu0 0
    %3111 = vmatpush2.bf16.msra.mxu0 0
    %3112 = vmatprep.subr.bf16.mxu0 0
    %3113 = vmatpush2.bf16.msra.mxu0 0
    %3114 = vmatprep.subr.bf16.mxu0 0
    %3115 = vmatpush2.bf16.msra.mxu0 0
    %3116 = vmatprep.subr.bf16.mxu0 0
    %3117 = vmatpush2.bf16.msra.mxu0 0
    %3118 = vmatprep.subr.bf16.mxu0 0
    %3119 = vmatpush2.bf16.msra.mxu0 0
    %3120 = vmatprep.mubr.bf16.mxu0 0
    %3121 = vmatmul.mubr.bf16.gmra.mxu0 %v3086
    %v3122 = vpop.f32.mrf.mxu0
    %v3123 = vadd.f32 %v3058, %v3122
    %v3124 = vpop.f32.mrf.mxu0
    %v3125 = vpop.f32.mrf.mxu0
    %v3126 = vpop.f32.mrf.mxu0
    %3127 = vdwg.mxu0
    %3128 = vst [vmem:[#allocation2] sm:$0xff] %v3123
    %v3129 = vld [vmem:[%s4] sm:$0x1]
    %v3130 = vld [vmem:[%s5] sm:$0x1]
    %v3131 = vld [vmem:[%s7] sm:$0xff]
    %v3132 = vld [vmem:[%s7 + $0x8] sm:$0xff]
    %v3133 = vld [vmem:[%s7 + $0x10] sm:$0xff]
    %v3134 = vld [vmem:[%s7 + $0x18] sm:$0xff]
    %v3135 = vld [vmem:[#allocation2] sm:$0x1]
    %vm3136 = vcmask 261120
    %v3138 = vsel %vm3136, %v3129, 0
    %3140 = vmatprep.subr.mxu0 0.0
    %3141 = vmatpush1.msra.mxu0 0.0
    %3142 = vmatprep.subr.mxu0 0.0
    %3143 = vmatpush1.msra.mxu0 0.0
    %3144 = vmatprep.subr.mxu0 0.0
    %3145 = vmatpush1.msra.mxu0 0.0
    %3146 = vmatprep.subr.mxu0 0.0
    %3147 = vmatpush1.msra.mxu0 0.0
    %3148 = vmatprep.subr.mxu0 0.0
    %3149 = vmatpush1.msra.mxu0 0.0
    %3150 = vmatprep.subr.mxu0 0.0
    %3151 = vmatpush1.msra.mxu0 0.0
    %3152 = vmatprep.subr.mxu0 0.0
    %3153 = vmatpush1.msra.mxu0 0.0
    %3154 = vmatprep.subr.mxu0 0.0
    %3155 = vmatpush1.msra.mxu0 0.0
    %3156 = vmatprep.subr.mxu0 0.0
    %3157 = vmatpush1.msra.mxu0 0.0
    %3158 = vmatprep.subr.mxu0 0.0
    %3159 = vmatpush1.msra.mxu0 0.0
    %3160 = vmatprep.subr.mxu0 0.0
    %3161 = vmatpush1.msra.mxu0 0.0
    %3162 = vmatprep.subr.mxu0 0.0
    %3163 = vmatpush1.msra.mxu0 0.0
    %3164 = vmatprep.subr.mxu0 0.0
    %3165 = vmatpush1.msra.mxu0 %v3134
    %3166 = vmatprep.subr.mxu0 0.0
    %3167 = vmatpush1.msra.mxu0 %v3133
    %3168 = vmatprep.subr.mxu0 0.0
    %3169 = vmatpush1.msra.mxu0 %v3132
    %3170 = vmatprep.subr.mxu0 0.0
    %3171 = vmatpush1.msra.mxu0 %v3131
    %3172 = vmatprep.subr.mxu0 0.0
    %3173 = vmatpush2.msra.mxu0 0.0
    %3174 = vmatprep.subr.mxu0 0.0
    %3175 = vmatpush2.msra.mxu0 0.0
    %3176 = vmatprep.subr.mxu0 0.0
    %3177 = vmatpush2.msra.mxu0 0.0
    %3178 = vmatprep.subr.mxu0 0.0
    %3179 = vmatpush2.msra.mxu0 0.0
    %3180 = vmatprep.subr.mxu0 0.0
    %3181 = vmatpush2.msra.mxu0 0.0
    %3182 = vmatprep.subr.mxu0 0.0
    %3183 = vmatpush2.msra.mxu0 0.0
    %3184 = vmatprep.subr.mxu0 0.0
    %3185 = vmatpush2.msra.mxu0 0.0
    %3186 = vmatprep.subr.mxu0 0.0
    %3187 = vmatpush2.msra.mxu0 0.0
    %3188 = vmatprep.subr.mxu0 0.0
    %3189 = vmatpush2.msra.mxu0 0.0
    %3190 = vmatprep.subr.mxu0 0.0
    %3191 = vmatpush2.msra.mxu0 0.0
    %3192 = vmatprep.subr.mxu0 0.0
    %3193 = vmatpush2.msra.mxu0 0.0
    %3194 = vmatprep.subr.mxu0 0.0
    %3195 = vmatpush2.msra.mxu0 0.0
    %3196 = vmatprep.subr.mxu0 0.0
    %3197 = vmatpush2.msra.mxu0 0.0
    %3198 = vmatprep.subr.mxu0 0.0
    %3199 = vmatpush2.msra.mxu0 0.0
    %3200 = vmatprep.subr.mxu0 0.0
    %3201 = vmatpush2.msra.mxu0 0.0
    %3202 = vmatprep.subr.mxu0 0.0
    %3203 = vmatpush2.msra.mxu0 0.0
    %3204 = vmatprep.mubr.f32.mxu0 0.0
    %3205 = vmatmul.mubr.f32.gmra.mxu0 %v3138
    %v3206 = vpop.f32.mrf.mxu0
    %v3207 = vadd.f32 %v3135, %v3206
    %v3208 = vpop.f32.mrf.mxu0
    %3209 = vdwg.mxu0
    %v3210 = vxor.u32 %v3207, 2147483648
    %v3211 = vmul.f32 %v3210, 1.442695
    %v3212 = vpow.pop %v3211
    %v3213 = vadd.f32 %v3212, 1.0
    %v3214 = vrcp.pop %v3213
    %v3215 = vmul.f32 1.0, %v3214
    %v3216 = vtanh.pop %v3207
    %v3218 = vlaneseq
    %v3219 = vshrl.u32 %v3218, 7
    %v3220 = vsub.s32 0, %v3219
    %v3221 = vrot.slane %v3130, %v3220
    %3222 = vrot.lane.b32.xlu0 %v3221, 32
    %v3223 = vpop.permute.xlu0 %3222
    %v3225 = vmul.f32 %v3215, %v3223
    %3227 = vrot.lane.b32.xlu0 %v3216, 64
    %v3228 = vpop.permute.xlu0 %3227
    %v3230 = vmul.f32 %v3215, %v3228
    %3232 = vrot.lane.b32.xlu0 %v3230, 32
    %v3233 = vpop.permute.xlu0 %3232
    %v3235 = vadd.f32 %v3225, %v3233
    %v3236 = vtanh.pop %v3235
    %3238 = vrot.lane.b32.xlu0 %v3236, 64
    %v3239 = vpop.permute.xlu0 %3238
    %v3241 = vmul.f32 %v3215, %v3239
    %v3242 = vld [vmem:[#allocation2 + $0x1] sm:$0x1]
    %3244 = vrot.lane.b32.xlu0 %v3241, 32
    %v3245 = vpop.permute.xlu0 %3244
    %v3246 = vsel %vm3136, %v3245, 0
    %3248 = vmatprep.subr.mxu0 0.0
    %3249 = vmatpush1.msra.mxu0 0.0
    %3250 = vmatprep.subr.mxu0 0.0
    %3251 = vmatpush1.msra.mxu0 0.0
    %3252 = vmatprep.subr.mxu0 0.0
    %3253 = vmatpush1.msra.mxu0 0.0
    %3254 = vmatprep.subr.mxu0 0.0
    %3255 = vmatpush1.msra.mxu0 0.0
    %3256 = vmatprep.subr.mxu0 0.0
    %3257 = vmatpush1.msra.mxu0 0.0
    %3258 = vmatprep.subr.mxu0 0.0
    %3259 = vmatpush1.msra.mxu0 0.0
    %3260 = vmatprep.subr.mxu0 0.0
    %3261 = vmatpush1.msra.mxu0 0.0
    %3262 = vmatprep.subr.mxu0 0.0
    %3263 = vmatpush1.msra.mxu0 0.0
    %3264 = vmatprep.subr.mxu0 0.0
    %3265 = vmatpush1.msra.mxu0 0.0
    %3266 = vmatprep.subr.mxu0 0.0
    %3267 = vmatpush1.msra.mxu0 0.0
    %3268 = vmatprep.subr.mxu0 0.0
    %3269 = vmatpush1.msra.mxu0 0.0
    %3270 = vmatprep.subr.mxu0 0.0
    %3271 = vmatpush1.msra.mxu0 0.0
    %3272 = vmatprep.subr.mxu0 0.0
    %3273 = vmatpush1.msra.mxu0 %v3134
    %3274 = vmatprep.subr.mxu0 0.0
    %3275 = vmatpush1.msra.mxu0 %v3133
    %3276 = vmatprep.subr.mxu0 0.0
    %3277 = vmatpush1.msra.mxu0 %v3132
    %3278 = vmatprep.subr.mxu0 0.0
    %3279 = vmatpush1.msra.mxu0 %v3131
    %3280 = vmatprep.subr.mxu0 0.0
    %3281 = vmatpush2.msra.mxu0 0.0
    %3282 = vmatprep.subr.mxu0 0.0
    %3283 = vmatpush2.msra.mxu0 0.0
    %3284 = vmatprep.subr.mxu0 0.0
    %3285 = vmatpush2.msra.mxu0 0.0
    %3286 = vmatprep.subr.mxu0 0.0
    %3287 = vmatpush2.msra.mxu0 0.0
    %3288 = vmatprep.subr.mxu0 0.0
    %3289 = vmatpush2.msra.mxu0 0.0
    %3290 = vmatprep.subr.mxu0 0.0
    %3291 = vmatpush2.msra.mxu0 0.0
    %3292 = vmatprep.subr.mxu0 0.0
    %3293 = vmatpush2.msra.mxu0 0.0
    %3294 = vmatprep.subr.mxu0 0.0
    %3295 = vmatpush2.msra.mxu0 0.0
    %3296 = vmatprep.subr.mxu0 0.0
    %3297 = vmatpush2.msra.mxu0 0.0
    %3298 = vmatprep.subr.mxu0 0.0
    %3299 = vmatpush2.msra.mxu0 0.0
    %3300 = vmatprep.subr.mxu0 0.0
    %3301 = vmatpush2.msra.mxu0 0.0
    %3302 = vmatprep.subr.mxu0 0.0
    %3303 = vmatpush2.msra.mxu0 0.0
    %3304 = vmatprep.subr.mxu0 0.0
    %3305 = vmatpush2.msra.mxu0 0.0
    %3306 = vmatprep.subr.mxu0 0.0
    %3307 = vmatpush2.msra.mxu0 0.0
    %3308 = vmatprep.subr.mxu0 0.0
    %3309 = vmatpush2.msra.mxu0 0.0
    %3310 = vmatprep.subr.mxu0 0.0
    %3311 = vmatpush2.msra.mxu0 0.0
    %3312 = vmatprep.mubr.f32.mxu0 0.0
    %3313 = vmatmul.mubr.f32.gmra.mxu0 %v3246
    %v3314 = vpop.f32.mrf.mxu0
    %v3315 = vadd.f32 %v3242, %v3314
    %v3316 = vpop.f32.mrf.mxu0
    %3317 = vdwg.mxu0
    %v3318 = vxor.u32 %v3315, 2147483648
    %v3319 = vmul.f32 %v3318, 1.442695
    %v3320 = vpow.pop %v3319
    %v3321 = vadd.f32 %v3320, 1.0
    %v3322 = vrcp.pop %v3321
    %v3323 = vmul.f32 1.0, %v3322
    %v3324 = vtanh.pop %v3315
    %v3325 = vmul.f32 %v3323, %v3235
    %3327 = vrot.lane.b32.xlu0 %v3324, 64
    %v3328 = vpop.permute.xlu0 %3327
    %v3330 = vmul.f32 %v3323, %v3328
    %3332 = vrot.lane.b32.xlu0 %v3330, 32
    %v3333 = vpop.permute.xlu0 %3332
    %v3335 = vadd.f32 %v3325, %v3333
    %v3336 = vtanh.pop %v3335
    %3338 = vrot.lane.b32.xlu0 %v3336, 64
    %v3339 = vpop.permute.xlu0 %3338
    %v3341 = vmul.f32 %v3323, %v3339
    %v3342 = vld [vmem:[#allocation2 + $0x2] sm:$0x1]
    %3344 = vrot.lane.b32.xlu0 %v3341, 32
    %v3345 = vpop.permute.xlu0 %3344
    %v3346 = vsel %vm3136, %v3345, 0
    %3348 = vmatprep.subr.mxu0 0.0
    %3349 = vmatpush1.msra.mxu0 0.0
    %3350 = vmatprep.subr.mxu0 0.0
    %3351 = vmatpush1.msra.mxu0 0.0
    %3352 = vmatprep.subr.mxu0 0.0
    %3353 = vmatpush1.msra.mxu0 0.0
    %3354 = vmatprep.subr.mxu0 0.0
    %3355 = vmatpush1.msra.mxu0 0.0
    %3356 = vmatprep.subr.mxu0 0.0
    %3357 = vmatpush1.msra.mxu0 0.0
    %3358 = vmatprep.subr.mxu0 0.0
    %3359 = vmatpush1.msra.mxu0 0.0
    %3360 = vmatprep.subr.mxu0 0.0
    %3361 = vmatpush1.msra.mxu0 0.0
    %3362 = vmatprep.subr.mxu0 0.0
    %3363 = vmatpush1.msra.mxu0 0.0
    %3364 = vmatprep.subr.mxu0 0.0
    %3365 = vmatpush1.msra.mxu0 0.0
    %3366 = vmatprep.subr.mxu0 0.0
    %3367 = vmatpush1.msra.mxu0 0.0
    %3368 = vmatprep.subr.mxu0 0.0
    %3369 = vmatpush1.msra.mxu0 0.0
    %3370 = vmatprep.subr.mxu0 0.0
    %3371 = vmatpush1.msra.mxu0 0.0
    %3372 = vmatprep.subr.mxu0 0.0
    %3373 = vmatpush1.msra.mxu0 %v3134
    %3374 = vmatprep.subr.mxu0 0.0
    %3375 = vmatpush1.msra.mxu0 %v3133
    %3376 = vmatprep.subr.mxu0 0.0
    %3377 = vmatpush1.msra.mxu0 %v3132
    %3378 = vmatprep.subr.mxu0 0.0
    %3379 = vmatpush1.msra.mxu0 %v3131
    %3380 = vmatprep.subr.mxu0 0.0
    %3381 = vmatpush2.msra.mxu0 0.0
    %3382 = vmatprep.subr.mxu0 0.0
    %3383 = vmatpush2.msra.mxu0 0.0
    %3384 = vmatprep.subr.mxu0 0.0
    %3385 = vmatpush2.msra.mxu0 0.0
    %3386 = vmatprep.subr.mxu0 0.0
    %3387 = vmatpush2.msra.mxu0 0.0
    %3388 = vmatprep.subr.mxu0 0.0
    %3389 = vmatpush2.msra.mxu0 0.0
    %3390 = vmatprep.subr.mxu0 0.0
    %3391 = vmatpush2.msra.mxu0 0.0
    %3392 = vmatprep.subr.mxu0 0.0
    %3393 = vmatpush2.msra.mxu0 0.0
    %3394 = vmatprep.subr.mxu0 0.0
    %3395 = vmatpush2.msra.mxu0 0.0
    %3396 = vmatprep.subr.mxu0 0.0
    %3397 = vmatpush2.msra.mxu0 0.0
    %3398 = vmatprep.subr.mxu0 0.0
    %3399 = vmatpush2.msra.mxu0 0.0
    %3400 = vmatprep.subr.mxu0 0.0
    %3401 = vmatpush2.msra.mxu0 0.0
    %3402 = vmatprep.subr.mxu0 0.0
    %3403 = vmatpush2.msra.mxu0 0.0
    %3404 = vmatprep.subr.mxu0 0.0
    %3405 = vmatpush2.msra.mxu0 0.0
    %3406 = vmatprep.subr.mxu0 0.0
    %3407 = vmatpush2.msra.mxu0 0.0
    %3408 = vmatprep.subr.mxu0 0.0
    %3409 = vmatpush2.msra.mxu0 0.0
    %3410 = vmatprep.subr.mxu0 0.0
    %3411 = vmatpush2.msra.mxu0 0.0
    %3412 = vmatprep.mubr.f32.mxu0 0.0
    %3413 = vmatmul.mubr.f32.gmra.mxu0 %v3346
    %v3414 = vpop.f32.mrf.mxu0
    %v3415 = vadd.f32 %v3342, %v3414
    %v3416 = vpop.f32.mrf.mxu0
    %3417 = vdwg.mxu0
    %v3418 = vxor.u32 %v3415, 2147483648
    %v3419 = vmul.f32 %v3418, 1.442695
    %v3420 = vpow.pop %v3419
    %v3421 = vadd.f32 %v3420, 1.0
    %v3422 = vrcp.pop %v3421
    %v3423 = vmul.f32 1.0, %v3422
    %v3424 = vtanh.pop %v3415
    %v3425 = vmul.f32 %v3423, %v3335
    %3427 = vrot.lane.b32.xlu0 %v3424, 64
    %v3428 = vpop.permute.xlu0 %3427
    %v3430 = vmul.f32 %v3423, %v3428
    %3432 = vrot.lane.b32.xlu0 %v3430, 32
    %v3433 = vpop.permute.xlu0 %3432
    %v3435 = vadd.f32 %v3425, %v3433
    %v3436 = vtanh.pop %v3435
    %3438 = vrot.lane.b32.xlu0 %v3436, 64
    %v3439 = vpop.permute.xlu0 %3438
    %v3441 = vmul.f32 %v3423, %v3439
    %v3442 = vld [vmem:[#allocation2 + $0x3] sm:$0x1]
    %3444 = vrot.lane.b32.xlu0 %v3441, 32
    %v3445 = vpop.permute.xlu0 %3444
    %v3446 = vsel %vm3136, %v3445, 0
    %3448 = vmatprep.subr.mxu0 0.0
    %3449 = vmatpush1.msra.mxu0 0.0
    %3450 = vmatprep.subr.mxu0 0.0
    %3451 = vmatpush1.msra.mxu0 0.0
    %3452 = vmatprep.subr.mxu0 0.0
    %3453 = vmatpush1.msra.mxu0 0.0
    %3454 = vmatprep.subr.mxu0 0.0
    %3455 = vmatpush1.msra.mxu0 0.0
    %3456 = vmatprep.subr.mxu0 0.0
    %3457 = vmatpush1.msra.mxu0 0.0
    %3458 = vmatprep.subr.mxu0 0.0
    %3459 = vmatpush1.msra.mxu0 0.0
    %3460 = vmatprep.subr.mxu0 0.0
    %3461 = vmatpush1.msra.mxu0 0.0
    %3462 = vmatprep.subr.mxu0 0.0
    %3463 = vmatpush1.msra.mxu0 0.0
    %3464 = vmatprep.subr.mxu0 0.0
    %3465 = vmatpush1.msra.mxu0 0.0
    %3466 = vmatprep.subr.mxu0 0.0
    %3467 = vmatpush1.msra.mxu0 0.0
    %3468 = vmatprep.subr.mxu0 0.0
    %3469 = vmatpush1.msra.mxu0 0.0
    %3470 = vmatprep.subr.mxu0 0.0
    %3471 = vmatpush1.msra.mxu0 0.0
    %3472 = vmatprep.subr.mxu0 0.0
    %3473 = vmatpush1.msra.mxu0 %v3134
    %3474 = vmatprep.subr.mxu0 0.0
    %3475 = vmatpush1.msra.mxu0 %v3133
    %3476 = vmatprep.subr.mxu0 0.0
    %3477 = vmatpush1.msra.mxu0 %v3132
    %3478 = vmatprep.subr.mxu0 0.0
    %3479 = vmatpush1.msra.mxu0 %v3131
    %3480 = vmatprep.subr.mxu0 0.0
    %3481 = vmatpush2.msra.mxu0 0.0
    %3482 = vmatprep.subr.mxu0 0.0
    %3483 = vmatpush2.msra.mxu0 0.0
    %3484 = vmatprep.subr.mxu0 0.0
    %3485 = vmatpush2.msra.mxu0 0.0
    %3486 = vmatprep.subr.mxu0 0.0
    %3487 = vmatpush2.msra.mxu0 0.0
    %3488 = vmatprep.subr.mxu0 0.0
    %3489 = vmatpush2.msra.mxu0 0.0
    %3490 = vmatprep.subr.mxu0 0.0
    %3491 = vmatpush2.msra.mxu0 0.0
    %3492 = vmatprep.subr.mxu0 0.0
    %3493 = vmatpush2.msra.mxu0 0.0
    %3494 = vmatprep.subr.mxu0 0.0
    %3495 = vmatpush2.msra.mxu0 0.0
    %3496 = vmatprep.subr.mxu0 0.0
    %3497 = vmatpush2.msra.mxu0 0.0
    %3498 = vmatprep.subr.mxu0 0.0
    %3499 = vmatpush2.msra.mxu0 0.0
    %3500 = vmatprep.subr.mxu0 0.0
    %3501 = vmatpush2.msra.mxu0 0.0
    %3502 = vmatprep.subr.mxu0 0.0
    %3503 = vmatpush2.msra.mxu0 0.0
    %3504 = vmatprep.subr.mxu0 0.0
    %3505 = vmatpush2.msra.mxu0 0.0
    %3506 = vmatprep.subr.mxu0 0.0
    %3507 = vmatpush2.msra.mxu0 0.0
    %3508 = vmatprep.subr.mxu0 0.0
    %3509 = vmatpush2.msra.mxu0 0.0
    %3510 = vmatprep.subr.mxu0 0.0
    %3511 = vmatpush2.msra.mxu0 0.0
    %3512 = vmatprep.mubr.f32.mxu0 0.0
    %3513 = vmatmul.mubr.f32.gmra.mxu0 %v3446
    %v3514 = vpop.f32.mrf.mxu0
    %v3515 = vadd.f32 %v3442, %v3514
    %v3516 = vpop.f32.mrf.mxu0
    %3517 = vdwg.mxu0
    %v3518 = vxor.u32 %v3515, 2147483648
    %v3519 = vmul.f32 %v3518, 1.442695
    %v3520 = vpow.pop %v3519
    %v3521 = vadd.f32 %v3520, 1.0
    %v3522 = vrcp.pop %v3521
    %v3523 = vmul.f32 1.0, %v3522
    %v3524 = vtanh.pop %v3515
    %v3525 = vmul.f32 %v3523, %v3435
    %3527 = vrot.lane.b32.xlu0 %v3524, 64
    %v3528 = vpop.permute.xlu0 %3527
    %v3530 = vmul.f32 %v3523, %v3528
    %3532 = vrot.lane.b32.xlu0 %v3530, 32
    %v3533 = vpop.permute.xlu0 %3532
    %v3535 = vadd.f32 %v3525, %v3533
    %v3536 = vtanh.pop %v3535
    %3538 = vrot.lane.b32.xlu0 %v3536, 64
    %v3539 = vpop.permute.xlu0 %3538
    %v3541 = vmul.f32 %v3523, %v3539
    %v3542 = vld [vmem:[#allocation2 + $0x4] sm:$0x1]
    %3544 = vrot.lane.b32.xlu0 %v3541, 32
    %v3545 = vpop.permute.xlu0 %3544
    %v3546 = vsel %vm3136, %v3545, 0
    %3548 = vmatprep.subr.mxu0 0.0
    %3549 = vmatpush1.msra.mxu0 0.0
    %3550 = vmatprep.subr.mxu0 0.0
    %3551 = vmatpush1.msra.mxu0 0.0
    %3552 = vmatprep.subr.mxu0 0.0
    %3553 = vmatpush1.msra.mxu0 0.0
    %3554 = vmatprep.subr.mxu0 0.0
    %3555 = vmatpush1.msra.mxu0 0.0
    %3556 = vmatprep.subr.mxu0 0.0
    %3557 = vmatpush1.msra.mxu0 0.0
    %3558 = vmatprep.subr.mxu0 0.0
    %3559 = vmatpush1.msra.mxu0 0.0
    %3560 = vmatprep.subr.mxu0 0.0
    %3561 = vmatpush1.msra.mxu0 0.0
    %3562 = vmatprep.subr.mxu0 0.0
    %3563 = vmatpush1.msra.mxu0 0.0
    %3564 = vmatprep.subr.mxu0 0.0
    %3565 = vmatpush1.msra.mxu0 0.0
    %3566 = vmatprep.subr.mxu0 0.0
    %3567 = vmatpush1.msra.mxu0 0.0
    %3568 = vmatprep.subr.mxu0 0.0
    %3569 = vmatpush1.msra.mxu0 0.0
    %3570 = vmatprep.subr.mxu0 0.0
    %3571 = vmatpush1.msra.mxu0 0.0
    %3572 = vmatprep.subr.mxu0 0.0
    %3573 = vmatpush1.msra.mxu0 %v3134
    %3574 = vmatprep.subr.mxu0 0.0
    %3575 = vmatpush1.msra.mxu0 %v3133
    %3576 = vmatprep.subr.mxu0 0.0
    %3577 = vmatpush1.msra.mxu0 %v3132
    %3578 = vmatprep.subr.mxu0 0.0
    %3579 = vmatpush1.msra.mxu0 %v3131
    %3580 = vmatprep.subr.mxu0 0.0
    %3581 = vmatpush2.msra.mxu0 0.0
    %3582 = vmatprep.subr.mxu0 0.0
    %3583 = vmatpush2.msra.mxu0 0.0
    %3584 = vmatprep.subr.mxu0 0.0
    %3585 = vmatpush2.msra.mxu0 0.0
    %3586 = vmatprep.subr.mxu0 0.0
    %3587 = vmatpush2.msra.mxu0 0.0
    %3588 = vmatprep.subr.mxu0 0.0
    %3589 = vmatpush2.msra.mxu0 0.0
    %3590 = vmatprep.subr.mxu0 0.0
    %3591 = vmatpush2.msra.mxu0 0.0
    %3592 = vmatprep.subr.mxu0 0.0
    %3593 = vmatpush2.msra.mxu0 0.0
    %3594 = vmatprep.subr.mxu0 0.0
    %3595 = vmatpush2.msra.mxu0 0.0
    %3596 = vmatprep.subr.mxu0 0.0
    %3597 = vmatpush2.msra.mxu0 0.0
    %3598 = vmatprep.subr.mxu0 0.0
    %3599 = vmatpush2.msra.mxu0 0.0
    %3600 = vmatprep.subr.mxu0 0.0
    %3601 = vmatpush2.msra.mxu0 0.0
    %3602 = vmatprep.subr.mxu0 0.0
    %3603 = vmatpush2.msra.mxu0 0.0
    %3604 = vmatprep.subr.mxu0 0.0
    %3605 = vmatpush2.msra.mxu0 0.0
    %3606 = vmatprep.subr.mxu0 0.0
    %3607 = vmatpush2.msra.mxu0 0.0
    %3608 = vmatprep.subr.mxu0 0.0
    %3609 = vmatpush2.msra.mxu0 0.0
    %3610 = vmatprep.subr.mxu0 0.0
    %3611 = vmatpush2.msra.mxu0 0.0
    %3612 = vmatprep.mubr.f32.mxu0 0.0
    %3613 = vmatmul.mubr.f32.gmra.mxu0 %v3546
    %v3614 = vpop.f32.mrf.mxu0
    %v3615 = vadd.f32 %v3542, %v3614
    %v3616 = vpop.f32.mrf.mxu0
    %3617 = vdwg.mxu0
    %v3618 = vxor.u32 %v3615, 2147483648
    %v3619 = vmul.f32 %v3618, 1.442695
    %v3620 = vpow.pop %v3619
    %v3621 = vadd.f32 %v3620, 1.0
    %v3622 = vrcp.pop %v3621
    %v3623 = vmul.f32 1.0, %v3622
    %v3624 = vtanh.pop %v3615
    %v3625 = vmul.f32 %v3623, %v3535
    %3627 = vrot.lane.b32.xlu0 %v3624, 64
    %v3628 = vpop.permute.xlu0 %3627
    %v3630 = vmul.f32 %v3623, %v3628
    %3632 = vrot.lane.b32.xlu0 %v3630, 32
    %v3633 = vpop.permute.xlu0 %3632
    %v3635 = vadd.f32 %v3625, %v3633
    %v3636 = vtanh.pop %v3635
    %3638 = vrot.lane.b32.xlu0 %v3636, 64
    %v3639 = vpop.permute.xlu0 %3638
    %v3641 = vmul.f32 %v3623, %v3639
    %v3642 = vld [vmem:[#allocation2 + $0x5] sm:$0x1]
    %3644 = vrot.lane.b32.xlu0 %v3641, 32
    %v3645 = vpop.permute.xlu0 %3644
    %v3646 = vsel %vm3136, %v3645, 0
    %3648 = vmatprep.subr.mxu0 0.0
    %3649 = vmatpush1.msra.mxu0 0.0
    %3650 = vmatprep.subr.mxu0 0.0
    %3651 = vmatpush1.msra.mxu0 0.0
    %3652 = vmatprep.subr.mxu0 0.0
    %3653 = vmatpush1.msra.mxu0 0.0
    %3654 = vmatprep.subr.mxu0 0.0
    %3655 = vmatpush1.msra.mxu0 0.0
    %3656 = vmatprep.subr.mxu0 0.0
    %3657 = vmatpush1.msra.mxu0 0.0
    %3658 = vmatprep.subr.mxu0 0.0
    %3659 = vmatpush1.msra.mxu0 0.0
    %3660 = vmatprep.subr.mxu0 0.0
    %3661 = vmatpush1.msra.mxu0 0.0
    %3662 = vmatprep.subr.mxu0 0.0
    %3663 = vmatpush1.msra.mxu0 0.0
    %3664 = vmatprep.subr.mxu0 0.0
    %3665 = vmatpush1.msra.mxu0 0.0
    %3666 = vmatprep.subr.mxu0 0.0
    %3667 = vmatpush1.msra.mxu0 0.0
    %3668 = vmatprep.subr.mxu0 0.0
    %3669 = vmatpush1.msra.mxu0 0.0
    %3670 = vmatprep.subr.mxu0 0.0
    %3671 = vmatpush1.msra.mxu0 0.0
    %3672 = vmatprep.subr.mxu0 0.0
    %3673 = vmatpush1.msra.mxu0 %v3134
    %3674 = vmatprep.subr.mxu0 0.0
    %3675 = vmatpush1.msra.mxu0 %v3133
    %3676 = vmatprep.subr.mxu0 0.0
    %3677 = vmatpush1.msra.mxu0 %v3132
    %3678 = vmatprep.subr.mxu0 0.0
    %3679 = vmatpush1.msra.mxu0 %v3131
    %3680 = vmatprep.subr.mxu0 0.0
    %3681 = vmatpush2.msra.mxu0 0.0
    %3682 = vmatprep.subr.mxu0 0.0
    %3683 = vmatpush2.msra.mxu0 0.0
    %3684 = vmatprep.subr.mxu0 0.0
    %3685 = vmatpush2.msra.mxu0 0.0
    %3686 = vmatprep.subr.mxu0 0.0
    %3687 = vmatpush2.msra.mxu0 0.0
    %3688 = vmatprep.subr.mxu0 0.0
    %3689 = vmatpush2.msra.mxu0 0.0
    %3690 = vmatprep.subr.mxu0 0.0
    %3691 = vmatpush2.msra.mxu0 0.0
    %3692 = vmatprep.subr.mxu0 0.0
    %3693 = vmatpush2.msra.mxu0 0.0
    %3694 = vmatprep.subr.mxu0 0.0
    %3695 = vmatpush2.msra.mxu0 0.0
    %3696 = vmatprep.subr.mxu0 0.0
    %3697 = vmatpush2.msra.mxu0 0.0
    %3698 = vmatprep.subr.mxu0 0.0
    %3699 = vmatpush2.msra.mxu0 0.0
    %3700 = vmatprep.subr.mxu0 0.0
    %3701 = vmatpush2.msra.mxu0 0.0
    %3702 = vmatprep.subr.mxu0 0.0
    %3703 = vmatpush2.msra.mxu0 0.0
    %3704 = vmatprep.subr.mxu0 0.0
    %3705 = vmatpush2.msra.mxu0 0.0
    %3706 = vmatprep.subr.mxu0 0.0
    %3707 = vmatpush2.msra.mxu0 0.0
    %3708 = vmatprep.subr.mxu0 0.0
    %3709 = vmatpush2.msra.mxu0 0.0
    %3710 = vmatprep.subr.mxu0 0.0
    %3711 = vmatpush2.msra.mxu0 0.0
    %3712 = vmatprep.mubr.f32.mxu0 0.0
    %3713 = vmatmul.mubr.f32.gmra.mxu0 %v3646
    %v3714 = vpop.f32.mrf.mxu0
    %v3715 = vadd.f32 %v3642, %v3714
    %v3716 = vpop.f32.mrf.mxu0
    %3717 = vdwg.mxu0
    %v3718 = vxor.u32 %v3715, 2147483648
    %v3719 = vmul.f32 %v3718, 1.442695
    %v3720 = vpow.pop %v3719
    %v3721 = vadd.f32 %v3720, 1.0
    %v3722 = vrcp.pop %v3721
    %v3723 = vmul.f32 1.0, %v3722
    %v3724 = vtanh.pop %v3715
    %v3725 = vmul.f32 %v3723, %v3635
    %3727 = vrot.lane.b32.xlu0 %v3724, 64
    %v3728 = vpop.permute.xlu0 %3727
    %v3730 = vmul.f32 %v3723, %v3728
    %3732 = vrot.lane.b32.xlu0 %v3730, 32
    %v3733 = vpop.permute.xlu0 %3732
    %v3735 = vadd.f32 %v3725, %v3733
    %v3736 = vtanh.pop %v3735
    %3738 = vrot.lane.b32.xlu0 %v3736, 64
    %v3739 = vpop.permute.xlu0 %3738
    %v3741 = vmul.f32 %v3723, %v3739
    %v3742 = vld [vmem:[#allocation2 + $0x6] sm:$0x1]
    %3744 = vrot.lane.b32.xlu0 %v3741, 32
    %v3745 = vpop.permute.xlu0 %3744
    %v3746 = vsel %vm3136, %v3745, 0
    %3748 = vmatprep.subr.mxu0 0.0
    %3749 = vmatpush1.msra.mxu0 0.0
    %3750 = vmatprep.subr.mxu0 0.0
    %3751 = vmatpush1.msra.mxu0 0.0
    %3752 = vmatprep.subr.mxu0 0.0
    %3753 = vmatpush1.msra.mxu0 0.0
    %3754 = vmatprep.subr.mxu0 0.0
    %3755 = vmatpush1.msra.mxu0 0.0
    %3756 = vmatprep.subr.mxu0 0.0
    %3757 = vmatpush1.msra.mxu0 0.0
    %3758 = vmatprep.subr.mxu0 0.0
    %3759 = vmatpush1.msra.mxu0 0.0
    %3760 = vmatprep.subr.mxu0 0.0
    %3761 = vmatpush1.msra.mxu0 0.0
    %3762 = vmatprep.subr.mxu0 0.0
    %3763 = vmatpush1.msra.mxu0 0.0
    %3764 = vmatprep.subr.mxu0 0.0
    %3765 = vmatpush1.msra.mxu0 0.0
    %3766 = vmatprep.subr.mxu0 0.0
    %3767 = vmatpush1.msra.mxu0 0.0
    %3768 = vmatprep.subr.mxu0 0.0
    %3769 = vmatpush1.msra.mxu0 0.0
    %3770 = vmatprep.subr.mxu0 0.0
    %3771 = vmatpush1.msra.mxu0 0.0
    %3772 = vmatprep.subr.mxu0 0.0
    %3773 = vmatpush1.msra.mxu0 %v3134
    %3774 = vmatprep.subr.mxu0 0.0
    %3775 = vmatpush1.msra.mxu0 %v3133
    %3776 = vmatprep.subr.mxu0 0.0
    %3777 = vmatpush1.msra.mxu0 %v3132
    %3778 = vmatprep.subr.mxu0 0.0
    %3779 = vmatpush1.msra.mxu0 %v3131
    %3780 = vmatprep.subr.mxu0 0.0
    %3781 = vmatpush2.msra.mxu0 0.0
    %3782 = vmatprep.subr.mxu0 0.0
    %3783 = vmatpush2.msra.mxu0 0.0
    %3784 = vmatprep.subr.mxu0 0.0
    %3785 = vmatpush2.msra.mxu0 0.0
    %3786 = vmatprep.subr.mxu0 0.0
    %3787 = vmatpush2.msra.mxu0 0.0
    %3788 = vmatprep.subr.mxu0 0.0
    %3789 = vmatpush2.msra.mxu0 0.0
    %3790 = vmatprep.subr.mxu0 0.0
    %3791 = vmatpush2.msra.mxu0 0.0
    %3792 = vmatprep.subr.mxu0 0.0
    %3793 = vmatpush2.msra.mxu0 0.0
    %3794 = vmatprep.subr.mxu0 0.0
    %3795 = vmatpush2.msra.mxu0 0.0
    %3796 = vmatprep.subr.mxu0 0.0
    %3797 = vmatpush2.msra.mxu0 0.0
    %3798 = vmatprep.subr.mxu0 0.0
    %3799 = vmatpush2.msra.mxu0 0.0
    %3800 = vmatprep.subr.mxu0 0.0
    %3801 = vmatpush2.msra.mxu0 0.0
    %3802 = vmatprep.subr.mxu0 0.0
    %3803 = vmatpush2.msra.mxu0 0.0
    %3804 = vmatprep.subr.mxu0 0.0
    %3805 = vmatpush2.msra.mxu0 0.0
    %3806 = vmatprep.subr.mxu0 0.0
    %3807 = vmatpush2.msra.mxu0 0.0
    %3808 = vmatprep.subr.mxu0 0.0
    %3809 = vmatpush2.msra.mxu0 0.0
    %3810 = vmatprep.subr.mxu0 0.0
    %3811 = vmatpush2.msra.mxu0 0.0
    %3812 = vmatprep.mubr.f32.mxu0 0.0
    %3813 = vmatmul.mubr.f32.gmra.mxu0 %v3746
    %v3814 = vpop.f32.mrf.mxu0
    %v3815 = vadd.f32 %v3742, %v3814
    %v3816 = vpop.f32.mrf.mxu0
    %3817 = vdwg.mxu0
    %v3818 = vxor.u32 %v3815, 2147483648
    %v3819 = vmul.f32 %v3818, 1.442695
    %v3820 = vpow.pop %v3819
    %v3821 = vadd.f32 %v3820, 1.0
    %v3822 = vrcp.pop %v3821
    %v3823 = vmul.f32 1.0, %v3822
    %v3824 = vtanh.pop %v3815
    %v3825 = vmul.f32 %v3823, %v3735
    %3827 = vrot.lane.b32.xlu0 %v3824, 64
    %v3828 = vpop.permute.xlu0 %3827
    %v3830 = vmul.f32 %v3823, %v3828
    %3832 = vrot.lane.b32.xlu0 %v3830, 32
    %v3833 = vpop.permute.xlu0 %3832
    %v3835 = vadd.f32 %v3825, %v3833
    %v3836 = vtanh.pop %v3835
    %3838 = vrot.lane.b32.xlu0 %v3836, 64
    %v3839 = vpop.permute.xlu0 %3838
    %v3841 = vmul.f32 %v3823, %v3839
    %v3842 = vld [vmem:[#allocation2 + $0x7] sm:$0x1]
    %3844 = vrot.lane.b32.xlu0 %v3841, 32
    %v3845 = vpop.permute.xlu0 %3844
    %v3846 = vsel %vm3136, %v3845, 0
    %3848 = vmatprep.subr.mxu0 0.0
    %3849 = vmatpush1.msra.mxu0 0.0
    %3850 = vmatprep.subr.mxu0 0.0
    %3851 = vmatpush1.msra.mxu0 0.0
    %3852 = vmatprep.subr.mxu0 0.0
    %3853 = vmatpush1.msra.mxu0 0.0
    %3854 = vmatprep.subr.mxu0 0.0
    %3855 = vmatpush1.msra.mxu0 0.0
    %3856 = vmatprep.subr.mxu0 0.0
    %3857 = vmatpush1.msra.mxu0 0.0
    %3858 = vmatprep.subr.mxu0 0.0
    %3859 = vmatpush1.msra.mxu0 0.0
    %3860 = vmatprep.subr.mxu0 0.0
    %3861 = vmatpush1.msra.mxu0 0.0
    %3862 = vmatprep.subr.mxu0 0.0
    %3863 = vmatpush1.msra.mxu0 0.0
    %3864 = vmatprep.subr.mxu0 0.0
    %3865 = vmatpush1.msra.mxu0 0.0
    %3866 = vmatprep.subr.mxu0 0.0
    %3867 = vmatpush1.msra.mxu0 0.0
    %3868 = vmatprep.subr.mxu0 0.0
    %3869 = vmatpush1.msra.mxu0 0.0
    %3870 = vmatprep.subr.mxu0 0.0
    %3871 = vmatpush1.msra.mxu0 0.0
    %3872 = vmatprep.subr.mxu0 0.0
    %3873 = vmatpush1.msra.mxu0 %v3134
    %3874 = vmatprep.subr.mxu0 0.0
    %3875 = vmatpush1.msra.mxu0 %v3133
    %3876 = vmatprep.subr.mxu0 0.0
    %3877 = vmatpush1.msra.mxu0 %v3132
    %3878 = vmatprep.subr.mxu0 0.0
    %3879 = vmatpush1.msra.mxu0 %v3131
    %3880 = vmatprep.subr.mxu0 0.0
    %3881 = vmatpush2.msra.mxu0 0.0
    %3882 = vmatprep.subr.mxu0 0.0
    %3883 = vmatpush2.msra.mxu0 0.0
    %3884 = vmatprep.subr.mxu0 0.0
    %3885 = vmatpush2.msra.mxu0 0.0
    %3886 = vmatprep.subr.mxu0 0.0
    %3887 = vmatpush2.msra.mxu0 0.0
    %3888 = vmatprep.subr.mxu0 0.0
    %3889 = vmatpush2.msra.mxu0 0.0
    %3890 = vmatprep.subr.mxu0 0.0
    %3891 = vmatpush2.msra.mxu0 0.0
    %3892 = vmatprep.subr.mxu0 0.0
    %3893 = vmatpush2.msra.mxu0 0.0
    %3894 = vmatprep.subr.mxu0 0.0
    %3895 = vmatpush2.msra.mxu0 0.0
    %3896 = vmatprep.subr.mxu0 0.0
    %3897 = vmatpush2.msra.mxu0 0.0
    %3898 = vmatprep.subr.mxu0 0.0
    %3899 = vmatpush2.msra.mxu0 0.0
    %3900 = vmatprep.subr.mxu0 0.0
    %3901 = vmatpush2.msra.mxu0 0.0
    %3902 = vmatprep.subr.mxu0 0.0
    %3903 = vmatpush2.msra.mxu0 0.0
    %3904 = vmatprep.subr.mxu0 0.0
    %3905 = vmatpush2.msra.mxu0 0.0
    %3906 = vmatprep.subr.mxu0 0.0
    %3907 = vmatpush2.msra.mxu0 0.0
    %3908 = vmatprep.subr.mxu0 0.0
    %3909 = vmatpush2.msra.mxu0 0.0
    %3910 = vmatprep.subr.mxu0 0.0
    %3911 = vmatpush2.msra.mxu0 0.0
    %3912 = vmatprep.mubr.f32.mxu0 0.0
    %3913 = vmatmul.mubr.f32.gmra.mxu0 %v3846
    %v3914 = vpop.f32.mrf.mxu0
    %v3915 = vadd.f32 %v3842, %v3914
    %v3916 = vpop.f32.mrf.mxu0
    %3917 = vdwg.mxu0
    %v3918 = vxor.u32 %v3915, 2147483648
    %v3919 = vmul.f32 %v3918, 1.442695
    %v3920 = vpow.pop %v3919
    %v3921 = vadd.f32 %v3920, 1.0
    %v3922 = vrcp.pop %v3921
    %v3923 = vmul.f32 1.0, %v3922
    %v3924 = vtanh.pop %v3915
    %v3925 = vmul.f32 %v3923, %v3835
    %3927 = vrot.lane.b32.xlu0 %v3924, 64
    %v3928 = vpop.permute.xlu0 %3927
    %v3930 = vmul.f32 %v3923, %v3928
    %3932 = vrot.lane.b32.xlu0 %v3930, 32
    %v3933 = vpop.permute.xlu0 %3932
    %v3935 = vadd.f32 %v3925, %v3933
    %v3936 = vtanh.pop %v3935
    %3938 = vrot.lane.b32.xlu0 %v3936, 64
    %v3939 = vpop.permute.xlu0 %3938
    %v3941 = vmul.f32 %v3923, %v3939
    %3943 = vrot.lane.b32.xlu0 %v3941, 32
    %v3944 = vpop.permute.xlu0 %3943
    %vm3946 = vcmask 253952
    %3947 = vst.msk [vmem:[#allocation8] sm:$0x1] %vm3946, %v3944
    // Predicated region
    $region46: #{tpu_custom_call.1} parent=1 // pred_check
      _
    $region47: #{tpu_custom_call.1} parent=1 // pred_check_branch
      %3949 = sbr.rel (0) target = $region49
    $region48: #{tpu_custom_call.1} parent=1 // pred_region
      %s3951 = ssub.s32 16, 16
      %3952 = vsyncadd [#allocation5], %s3951
      %s3954 = sshll.u32 [#allocation8], 4
      %s3955 = int_to_ptr.vmem [resolvable:$true] %s3954
      %3957 = dma.vmem_to_hbm [thread:$0]  %s3955, 16, %s9, [#allocation5]
    $region49: #{tpu_custom_call.1} parent=1 // pred_fallthru
      _
    // Predicated region
    $region50: #{tpu_custom_call.1} parent=1 // pred_check
      _
    $region51: #{tpu_custom_call.1} parent=1 // pred_check_branch
      %3959 = sbr.rel (0) target = $region53
    $region52: #{tpu_custom_call.1} parent=1 // pred_region
      %3960 = dma.done [#allocation5], 16
    $region53: #{tpu_custom_call.1} parent=1 // pred_fallthru
      _
    %3961 = vsyncpa [#allocation4], 1
    %3962 = vsyncpa [#allocation7], 1
    %3963 = vsyncpa [#allocation5], 1

</llo_original>
